<compile_context>
chip_gen: v6e
topology: v6e:2x2x1
jax: 0.10.0
libtpu: 0.0.40
codegen_flags: <defaults>
</compile_context>

<pallas_src>
import functools

import jax
import jax.numpy as jnp
from jax.experimental import pallas as pl
from jax.experimental.pallas import tpu as pltpu


def _res_double_conv_kernel(x_ref, w1_ref, b1_ref, w2_ref, b2_ref,
                            wid_ref, bid_ref, o_ref, xp_ref, h1p_ref,
                            *, c_in, c_out, k, pad, h, w):
    """Fused ResDoubleConv forward for one batch element.

    x_ref  : (1, c_in, h, w)       VMEM  input image
    w1_ref : (c_out*c_in*k*k,)     SMEM  conv1 weights (BN1 folded)
    b1_ref : (c_out,)              SMEM  conv1 bias    (BN1 folded)
    w2_ref : (c_out*c_out*k*k,)    SMEM  conv2 weights (BN2 folded)
    b2_ref : (c_out,)              SMEM  conv2 bias    (BN2 folded)
    wid_ref: (c_out*c_in,)         SMEM  identity 1x1 weights (BN_id folded)
    bid_ref: (c_out,)              SMEM  identity bias (BN_id folded)
    o_ref  : (1, c_out, h, w)      VMEM  output
    xp_ref : (c_in,  h+2p, w+2p)   VMEM  zero-padded input scratch
    h1p_ref: (c_out, h+2p, w+2p)   VMEM  zero-padded conv1 activation scratch
    """
    # Stage the zero-padded input in VMEM (padding handled on-chip, not in HBM).
    xp_ref[...] = jnp.zeros_like(xp_ref)
    xp_ref[:, pad:pad + h, pad:pad + w] = x_ref[0]
    h1p_ref[...] = jnp.zeros_like(h1p_ref)

    # ---- conv1 (kxk) + BN1 (folded) + ReLU -> h1p interior -----------------
    acc1 = [jnp.zeros((h, w), jnp.float32) + b1_ref[oc] for oc in range(c_out)]
    for ic in range(c_in):
        for dh in range(k):
            for dw in range(k):
                patch = xp_ref[ic, dh:dh + h, dw:dw + w]
                for oc in range(c_out):
                    wv = w1_ref[((oc * c_in + ic) * k + dh) * k + dw]
                    acc1[oc] = acc1[oc] + wv * patch
    for oc in range(c_out):
        h1p_ref[oc, pad:pad + h, pad:pad + w] = jnp.maximum(acc1[oc], 0.0)

    # ---- conv2 (kxk) + BN2 (folded) -----------------------------------------
    acc2 = [jnp.zeros((h, w), jnp.float32) + b2_ref[oc] for oc in range(c_out)]
    for ic in range(c_out):
        for dh in range(k):
            for dw in range(k):
                patch = h1p_ref[ic, dh:dh + h, dw:dw + w]
                for oc in range(c_out):
                    wv = w2_ref[((oc * c_out + ic) * k + dh) * k + dw]
                    acc2[oc] = acc2[oc] + wv * patch

    # ---- identity branch: 1x1 conv (no bias) + BN_id (folded) ---------------
    res = [jnp.zeros((h, w), jnp.float32) + bid_ref[oc] for oc in range(c_out)]
    for ic in range(c_in):
        patch = xp_ref[ic, pad:pad + h, pad:pad + w]
        for oc in range(c_out):
            res[oc] = res[oc] + wid_ref[oc * c_in + ic] * patch

    # ---- residual add + final ReLU, store ------------------------------------
    for oc in range(c_out):
        o_ref[0, oc] = jnp.maximum(acc2[oc] + res[oc], 0.0).astype(o_ref.dtype)


def _fold_bn(w, b, gamma, beta, mean, var, eps):
    """Fold eval-mode BatchNorm2d into the preceding conv's weight/bias."""
    scale = gamma * jax.lax.rsqrt(var + eps)          # (c_out,)
    w_f = w * scale[:, None, None, None]
    if b is None:
        b = jnp.zeros_like(mean)
    b_f = (b - mean) * scale + beta
    return w_f, b_f


@functools.partial(jax.jit, static_argnames=("kernel_size",))
def res_double_conv_forward(x, params, *, kernel_size=3, eps=1e-5):
    """x: (N, C_in, H, W) f32 -> (N, C_out, H, W) f32 (ResDoubleConv forward)."""
    n, c_in, h, w = x.shape
    c_out = params["w1"].shape[0]
    k = kernel_size
    pad = (k - 1) // 2
    hp, wp = h + 2 * pad, w + 2 * pad

    # Fold eval-mode BN into the convs (tiny per-channel vectors, done under jit).
    w1_f, b1_f = _fold_bn(params["w1"], params["b1"], params["g1"],
                          params["beta1"], params["m1"], params["v1"], eps)
    w2_f, b2_f = _fold_bn(params["w2"], params["b2"], params["g2"],
                          params["beta2"], params["m2"], params["v2"], eps)
    wid_f, bid_f = _fold_bn(params["wid"], None, params["gid"],
                            params["betaid"], params["mid"], params["vid"], eps)

    kernel = functools.partial(
        _res_double_conv_kernel,
        c_in=c_in, c_out=c_out, k=k, pad=pad, h=h, w=w)

    smem = pl.BlockSpec(memory_space=pltpu.MemorySpace.SMEM)

    return pl.pallas_call(
        kernel,
        out_shape=jax.ShapeDtypeStruct((n, c_out, h, w), x.dtype),
        grid_spec=pltpu.PrefetchScalarGridSpec(
            num_scalar_prefetch=0,
            grid=(n,),
            in_specs=[
                pl.BlockSpec((1, c_in, h, w), lambda i: (i, 0, 0, 0)),
                smem,  # w1 (flattened, BN1 folded)
                smem,  # b1
                smem,  # w2 (flattened, BN2 folded)
                smem,  # b2
                smem,  # wid (flattened, BN_id folded)
                smem,  # bid
            ],
            out_specs=pl.BlockSpec((1, c_out, h, w), lambda i: (i, 0, 0, 0)),
            scratch_shapes=[
                pltpu.VMEM((c_in, hp, wp), jnp.float32),
                pltpu.VMEM((c_out, hp, wp), jnp.float32),
            ],
        ),
        compiler_params=pltpu.CompilerParams(
            dimension_semantics=("parallel",),
        ),
    )(x,
      w1_f.reshape(-1), b1_f,
      w2_f.reshape(-1), b2_f,
      wid_f.reshape(-1), bid_f)


if __name__ == "__main__":
    key = jax.random.PRNGKey(0)
    keys = jax.random.split(key, 20)

    N, C_IN, C_OUT, H, W, K = 2, 4, 4, 16, 16, 3

    x = jax.random.normal(keys[0], (N, C_IN, H, W), dtype=jnp.float32)

    params = {
        # conv_block: Conv2d(C_IN,C_OUT,3,p=1) -> BN -> ReLU -> Conv2d(C_OUT,C_OUT,3,p=1) -> BN
        "w1": jax.random.normal(keys[1], (C_OUT, C_IN, K, K), jnp.float32) * 0.2,
        "b1": jax.random.normal(keys[2], (C_OUT,), jnp.float32) * 0.1,
        "g1": 1.0 + 0.1 * jax.random.normal(keys[3], (C_OUT,), jnp.float32),
        "beta1": 0.1 * jax.random.normal(keys[4], (C_OUT,), jnp.float32),
        "m1": 0.1 * jax.random.normal(keys[5], (C_OUT,), jnp.float32),
        "v1": 1.0 + 0.2 * jax.random.uniform(keys[6], (C_OUT,), jnp.float32),
        "w2": jax.random.normal(keys[7], (C_OUT, C_OUT, K, K), jnp.float32) * 0.2,
        "b2": jax.random.normal(keys[8], (C_OUT,), jnp.float32) * 0.1,
        "g2": 1.0 + 0.1 * jax.random.normal(keys[9], (C_OUT,), jnp.float32),
        "beta2": 0.1 * jax.random.normal(keys[10], (C_OUT,), jnp.float32),
        "m2": 0.1 * jax.random.normal(keys[11], (C_OUT,), jnp.float32),
        "v2": 1.0 + 0.2 * jax.random.uniform(keys[12], (C_OUT,), jnp.float32),
        # identity_block: Conv2d(C_IN, C_OUT, 1, bias=False) -> BN
        "wid": jax.random.normal(keys[13], (C_OUT, C_IN, 1, 1), jnp.float32) * 0.2,
        "gid": 1.0 + 0.1 * jax.random.normal(keys[14], (C_OUT,), jnp.float32),
        "betaid": 0.1 * jax.random.normal(keys[15], (C_OUT,), jnp.float32),
        "mid": 0.1 * jax.random.normal(keys[16], (C_OUT,), jnp.float32),
        "vid": 1.0 + 0.2 * jax.random.uniform(keys[17], (C_OUT,), jnp.float32),
    }

    # Run the fused Pallas kernel.
    y = res_double_conv_forward(x, params, kernel_size=K)
    jax.block_until_ready(y)

    # Pure-JAX reference with the ORIGINAL (unfolded) parameters, eval-mode BN.
    def conv2d(inp, wgt, bias, padding):
        out = jax.lax.conv_general_dilated(
            inp, wgt, window_strides=(1, 1),
            padding=((padding, padding), (padding, padding)),
            dimension_numbers=("NCHW", "OIHW", "NCHW"))
        if bias is not None:
            out = out + bias[None, :, None, None]
        return out

    def bn(inp, gamma, beta, mean, var, eps=1e-5):
        inv = gamma / jnp.sqrt(var + eps)
        return ((inp - mean[None, :, None, None]) * inv[None, :, None, None]
                + beta[None, :, None, None])

    residual = bn(conv2d(x, params["wid"], None, 0),
                  params["gid"], params["betaid"], params["mid"], params["vid"])
    ref = conv2d(x, params["w1"], params["b1"], 1)
    ref = jnp.maximum(bn(ref, params["g1"], params["beta1"],
                         params["m1"], params["v1"]), 0.0)
    ref = conv2d(ref, params["w2"], params["b2"], 1)
    ref = bn(ref, params["g2"], params["beta2"], params["m2"], params["v2"])
    ref = jnp.maximum(ref + residual, 0.0)

    assert y.shape == (N, C_OUT, H, W)
    assert jnp.allclose(y, ref, atol=1e-4, rtol=1e-4), \
        float(jnp.max(jnp.abs(y - ref)))

    print("KERNEL_OK")
</pallas_src>

<mosaic_0001>
module attributes {stable_mosaic.version = 11 : i64} {
  func.func @_res_double_conv_kernel(%arg0: i32, %arg1: memref<1x4x16x16xf32, #tpu.memory_space<vmem>>, %arg2: memref<144xf32, #tpu.memory_space<smem>>, %arg3: memref<4xf32, #tpu.memory_space<smem>>, %arg4: memref<144xf32, #tpu.memory_space<smem>>, %arg5: memref<4xf32, #tpu.memory_space<smem>>, %arg6: memref<16xf32, #tpu.memory_space<smem>>, %arg7: memref<4xf32, #tpu.memory_space<smem>>, %arg8: memref<1x4x16x16xf32, #tpu.memory_space<vmem>>, %arg9: memref<4x18x18xf32, #tpu.memory_space<vmem>>, %arg10: memref<4x18x18xf32, #tpu.memory_space<vmem>>) attributes {dimension_semantics = [#tpu.dimension_semantics<parallel>], iteration_bounds = array<i64: 2>, scalar_prefetch = 0 : i64, scratch_operands = 2 : i64, tpu.core_type = #tpu.core_type<tc>, window_params = [{transform_indices = @transform_0, window_bounds = array<i64: 1, 4, 16, 16>}, {transform_indices = @transform_1, window_bounds = array<i64: 144>}, {transform_indices = @transform_2, window_bounds = array<i64: 4>}, {transform_indices = @transform_3, window_bounds = array<i64: 144>}, {transform_indices = @transform_4, window_bounds = array<i64: 4>}, {transform_indices = @transform_5, window_bounds = array<i64: 16>}, {transform_indices = @transform_6, window_bounds = array<i64: 4>}, {transform_indices = @transform_7, window_bounds = array<i64: 1, 4, 16, 16>}]} {
    %cst = arith.constant 0.000000e+00 : f32
    %0 = vector.broadcast %cst : f32 to vector<4x18x18xf32>
    %c0 = arith.constant 0 : index
    %c0_0 = arith.constant 0 : index
    %c0_1 = arith.constant 0 : index
    %1 = vector.load %arg9[%c0, %c0_0, %c0_1] : memref<4x18x18xf32, #tpu.memory_space<vmem>>, vector<4x18x18xf32>
    tpu.vector_store %arg9[%c0, %c0_0, %c0_1], %0 {strides = array<i32>} : memref<4x18x18xf32, #tpu.memory_space<vmem>>, vector<4x18x18xf32>,
    %c0_2 = arith.constant 0 : index
    %c0_3 = arith.constant 0 : index
    %c0_4 = arith.constant 0 : index
    %c0_5 = arith.constant 0 : index
    %2 = vector.load %arg1[%c0_2, %c0_3, %c0_4, %c0_5] : memref<1x4x16x16xf32, #tpu.memory_space<vmem>>, vector<1x4x16x16xf32>
    %3 = vector.shape_cast %2 : vector<1x4x16x16xf32> to vector<4x16x16xf32>
    %c0_6 = arith.constant 0 : index
    %c1 = arith.constant 1 : index
    %c1_7 = arith.constant 1 : index
    %4 = vector.load %arg9[%c0_6, %c1, %c1_7] : memref<4x18x18xf32, #tpu.memory_space<vmem>>, vector<4x16x16xf32>
    tpu.vector_store %arg9[%c0_6, %c1, %c1_7], %3 {strides = array<i32>} : memref<4x18x18xf32, #tpu.memory_space<vmem>>, vector<4x16x16xf32>,
    %cst_8 = arith.constant 0.000000e+00 : f32
    %5 = vector.broadcast %cst_8 : f32 to vector<4x18x18xf32>
    %c0_9 = arith.constant 0 : index
    %c0_10 = arith.constant 0 : index
    %c0_11 = arith.constant 0 : index
    %6 = vector.load %arg10[%c0_9, %c0_10, %c0_11] : memref<4x18x18xf32, #tpu.memory_space<vmem>>, vector<4x18x18xf32>
    tpu.vector_store %arg10[%c0_9, %c0_10, %c0_11], %5 {strides = array<i32>} : memref<4x18x18xf32, #tpu.memory_space<vmem>>, vector<4x18x18xf32>,
    %cst_12 = arith.constant 0.000000e+00 : f32
    %7 = vector.broadcast %cst_12 : f32 to vector<16x16xf32>
    %c0_13 = arith.constant 0 : index
    %8 = memref.load %arg3[%c0_13] : memref<4xf32, #tpu.memory_space<smem>>
    %9 = vector.broadcast %8 : f32 to vector<16x16xf32>
    %10 = arith.addf %7, %9 : vector<16x16xf32>
    %cst_14 = arith.constant 0.000000e+00 : f32
    %11 = vector.broadcast %cst_14 : f32 to vector<16x16xf32>
    %c1_15 = arith.constant 1 : index
    %12 = memref.load %arg3[%c1_15] : memref<4xf32, #tpu.memory_space<smem>>
    %13 = vector.broadcast %12 : f32 to vector<16x16xf32>
    %14 = arith.addf %11, %13 : vector<16x16xf32>
    %cst_16 = arith.constant 0.000000e+00 : f32
    %15 = vector.broadcast %cst_16 : f32 to vector<16x16xf32>
    %c2 = arith.constant 2 : index
    %16 = memref.load %arg3[%c2] : memref<4xf32, #tpu.memory_space<smem>>
    %17 = vector.broadcast %16 : f32 to vector<16x16xf32>
    %18 = arith.addf %15, %17 : vector<16x16xf32>
    %cst_17 = arith.constant 0.000000e+00 : f32
    %19 = vector.broadcast %cst_17 : f32 to vector<16x16xf32>
    %c3 = arith.constant 3 : index
    %20 = memref.load %arg3[%c3] : memref<4xf32, #tpu.memory_space<smem>>
    %21 = vector.broadcast %20 : f32 to vector<16x16xf32>
    %22 = arith.addf %19, %21 : vector<16x16xf32>
    %c0_18 = arith.constant 0 : index
    %c0_19 = arith.constant 0 : index
    %c0_20 = arith.constant 0 : index
    %23 = vector.load %arg9[%c0_18, %c0_19, %c0_20] : memref<4x18x18xf32, #tpu.memory_space<vmem>>, vector<1x16x16xf32>
    %24 = vector.shape_cast %23 : vector<1x16x16xf32> to vector<16x16xf32>
    %c0_21 = arith.constant 0 : index
    %25 = memref.load %arg2[%c0_21] : memref<144xf32, #tpu.memory_space<smem>>
    %26 = vector.broadcast %25 : f32 to vector<16x16xf32>
    %27 = arith.mulf %26, %24 : vector<16x16xf32>
    %28 = arith.addf %10, %27 : vector<16x16xf32>
    %c36 = arith.constant 36 : index
    %29 = memref.load %arg2[%c36] : memref<144xf32, #tpu.memory_space<smem>>
    %30 = vector.broadcast %29 : f32 to vector<16x16xf32>
    %31 = arith.mulf %30, %24 : vector<16x16xf32>
    %32 = arith.addf %14, %31 : vector<16x16xf32>
    %c72 = arith.constant 72 : index
    %33 = memref.load %arg2[%c72] : memref<144xf32, #tpu.memory_space<smem>>
    %34 = vector.broadcast %33 : f32 to vector<16x16xf32>
    %35 = arith.mulf %34, %24 : vector<16x16xf32>
    %36 = arith.addf %18, %35 : vector<16x16xf32>
    %c108 = arith.constant 108 : index
    %37 = memref.load %arg2[%c108] : memref<144xf32, #tpu.memory_space<smem>>
    %38 = vector.broadcast %37 : f32 to vector<16x16xf32>
    %39 = arith.mulf %38, %24 : vector<16x16xf32>
    %40 = arith.addf %22, %39 : vector<16x16xf32>
    %c0_22 = arith.constant 0 : index
    %c0_23 = arith.constant 0 : index
    %c1_24 = arith.constant 1 : index
    %41 = vector.load %arg9[%c0_22, %c0_23, %c1_24] : memref<4x18x18xf32, #tpu.memory_space<vmem>>, vector<1x16x16xf32>
    %42 = vector.shape_cast %41 : vector<1x16x16xf32> to vector<16x16xf32>
    %c1_25 = arith.constant 1 : index
    %43 = memref.load %arg2[%c1_25] : memref<144xf32, #tpu.memory_space<smem>>
    %44 = vector.broadcast %43 : f32 to vector<16x16xf32>
    %45 = arith.mulf %44, %42 : vector<16x16xf32>
    %46 = arith.addf %28, %45 : vector<16x16xf32>
    %c37 = arith.constant 37 : index
    %47 = memref.load %arg2[%c37] : memref<144xf32, #tpu.memory_space<smem>>
    %48 = vector.broadcast %47 : f32 to vector<16x16xf32>
    %49 = arith.mulf %48, %42 : vector<16x16xf32>
    %50 = arith.addf %32, %49 : vector<16x16xf32>
    %c73 = arith.constant 73 : index
    %51 = memref.load %arg2[%c73] : memref<144xf32, #tpu.memory_space<smem>>
    %52 = vector.broadcast %51 : f32 to vector<16x16xf32>
    %53 = arith.mulf %52, %42 : vector<16x16xf32>
    %54 = arith.addf %36, %53 : vector<16x16xf32>
    %c109 = arith.constant 109 : index
    %55 = memref.load %arg2[%c109] : memref<144xf32, #tpu.memory_space<smem>>
    %56 = vector.broadcast %55 : f32 to vector<16x16xf32>
    %57 = arith.mulf %56, %42 : vector<16x16xf32>
    %58 = arith.addf %40, %57 : vector<16x16xf32>
    %c0_26 = arith.constant 0 : index
    %c0_27 = arith.constant 0 : index
    %c2_28 = arith.constant 2 : index
    %59 = vector.load %arg9[%c0_26, %c0_27, %c2_28] : memref<4x18x18xf32, #tpu.memory_space<vmem>>, vector<1x16x16xf32>
    %60 = vector.shape_cast %59 : vector<1x16x16xf32> to vector<16x16xf32>
    %c2_29 = arith.constant 2 : index
    %61 = memref.load %arg2[%c2_29] : memref<144xf32, #tpu.memory_space<smem>>
    %62 = vector.broadcast %61 : f32 to vector<16x16xf32>
    %63 = arith.mulf %62, %60 : vector<16x16xf32>
    %64 = arith.addf %46, %63 : vector<16x16xf32>
    %c38 = arith.constant 38 : index
    %65 = memref.load %arg2[%c38] : memref<144xf32, #tpu.memory_space<smem>>
    %66 = vector.broadcast %65 : f32 to vector<16x16xf32>
    %67 = arith.mulf %66, %60 : vector<16x16xf32>
    %68 = arith.addf %50, %67 : vector<16x16xf32>
    %c74 = arith.constant 74 : index
    %69 = memref.load %arg2[%c74] : memref<144xf32, #tpu.memory_space<smem>>
    %70 = vector.broadcast %69 : f32 to vector<16x16xf32>
    %71 = arith.mulf %70, %60 : vector<16x16xf32>
    %72 = arith.addf %54, %71 : vector<16x16xf32>
    %c110 = arith.constant 110 : index
    %73 = memref.load %arg2[%c110] : memref<144xf32, #tpu.memory_space<smem>>
    %74 = vector.broadcast %73 : f32 to vector<16x16xf32>
    %75 = arith.mulf %74, %60 : vector<16x16xf32>
    %76 = arith.addf %58, %75 : vector<16x16xf32>
    %c0_30 = arith.constant 0 : index
    %c1_31 = arith.constant 1 : index
    %c0_32 = arith.constant 0 : index
    %77 = vector.load %arg9[%c0_30, %c1_31, %c0_32] : memref<4x18x18xf32, #tpu.memory_space<vmem>>, vector<1x16x16xf32>
    %78 = vector.shape_cast %77 : vector<1x16x16xf32> to vector<16x16xf32>
    %c3_33 = arith.constant 3 : index
    %79 = memref.load %arg2[%c3_33] : memref<144xf32, #tpu.memory_space<smem>>
    %80 = vector.broadcast %79 : f32 to vector<16x16xf32>
    %81 = arith.mulf %80, %78 : vector<16x16xf32>
    %82 = arith.addf %64, %81 : vector<16x16xf32>
    %c39 = arith.constant 39 : index
    %83 = memref.load %arg2[%c39] : memref<144xf32, #tpu.memory_space<smem>>
    %84 = vector.broadcast %83 : f32 to vector<16x16xf32>
    %85 = arith.mulf %84, %78 : vector<16x16xf32>
    %86 = arith.addf %68, %85 : vector<16x16xf32>
    %c75 = arith.constant 75 : index
    %87 = memref.load %arg2[%c75] : memref<144xf32, #tpu.memory_space<smem>>
    %88 = vector.broadcast %87 : f32 to vector<16x16xf32>
    %89 = arith.mulf %88, %78 : vector<16x16xf32>
    %90 = arith.addf %72, %89 : vector<16x16xf32>
    %c111 = arith.constant 111 : index
    %91 = memref.load %arg2[%c111] : memref<144xf32, #tpu.memory_space<smem>>
    %92 = vector.broadcast %91 : f32 to vector<16x16xf32>
    %93 = arith.mulf %92, %78 : vector<16x16xf32>
    %94 = arith.addf %76, %93 : vector<16x16xf32>
    %c0_34 = arith.constant 0 : index
    %c1_35 = arith.constant 1 : index
    %c1_36 = arith.constant 1 : index
    %95 = vector.load %arg9[%c0_34, %c1_35, %c1_36] : memref<4x18x18xf32, #tpu.memory_space<vmem>>, vector<1x16x16xf32>
    %96 = vector.shape_cast %95 : vector<1x16x16xf32> to vector<16x16xf32>
    %c4 = arith.constant 4 : index
    %97 = memref.load %arg2[%c4] : memref<144xf32, #tpu.memory_space<smem>>
    %98 = vector.broadcast %97 : f32 to vector<16x16xf32>
    %99 = arith.mulf %98, %96 : vector<16x16xf32>
    %100 = arith.addf %82, %99 : vector<16x16xf32>
    %c40 = arith.constant 40 : index
    %101 = memref.load %arg2[%c40] : memref<144xf32, #tpu.memory_space<smem>>
    %102 = vector.broadcast %101 : f32 to vector<16x16xf32>
    %103 = arith.mulf %102, %96 : vector<16x16xf32>
    %104 = arith.addf %86, %103 : vector<16x16xf32>
    %c76 = arith.constant 76 : index
    %105 = memref.load %arg2[%c76] : memref<144xf32, #tpu.memory_space<smem>>
    %106 = vector.broadcast %105 : f32 to vector<16x16xf32>
    %107 = arith.mulf %106, %96 : vector<16x16xf32>
    %108 = arith.addf %90, %107 : vector<16x16xf32>
    %c112 = arith.constant 112 : index
    %109 = memref.load %arg2[%c112] : memref<144xf32, #tpu.memory_space<smem>>
    %110 = vector.broadcast %109 : f32 to vector<16x16xf32>
    %111 = arith.mulf %110, %96 : vector<16x16xf32>
    %112 = arith.addf %94, %111 : vector<16x16xf32>
    %c0_37 = arith.constant 0 : index
    %c1_38 = arith.constant 1 : index
    %c2_39 = arith.constant 2 : index
    %113 = vector.load %arg9[%c0_37, %c1_38, %c2_39] : memref<4x18x18xf32, #tpu.memory_space<vmem>>, vector<1x16x16xf32>
    %114 = vector.shape_cast %113 : vector<1x16x16xf32> to vector<16x16xf32>
    %c5 = arith.constant 5 : index
    %115 = memref.load %arg2[%c5] : memref<144xf32, #tpu.memory_space<smem>>
    %116 = vector.broadcast %115 : f32 to vector<16x16xf32>
    %117 = arith.mulf %116, %114 : vector<16x16xf32>
    %118 = arith.addf %100, %117 : vector<16x16xf32>
    %c41 = arith.constant 41 : index
    %119 = memref.load %arg2[%c41] : memref<144xf32, #tpu.memory_space<smem>>
    %120 = vector.broadcast %119 : f32 to vector<16x16xf32>
    %121 = arith.mulf %120, %114 : vector<16x16xf32>
    %122 = arith.addf %104, %121 : vector<16x16xf32>
    %c77 = arith.constant 77 : index
    %123 = memref.load %arg2[%c77] : memref<144xf32, #tpu.memory_space<smem>>
    %124 = vector.broadcast %123 : f32 to vector<16x16xf32>
    %125 = arith.mulf %124, %114 : vector<16x16xf32>
    %126 = arith.addf %108, %125 : vector<16x16xf32>
    %c113 = arith.constant 113 : index
    %127 = memref.load %arg2[%c113] : memref<144xf32, #tpu.memory_space<smem>>
    %128 = vector.broadcast %127 : f32 to vector<16x16xf32>
    %129 = arith.mulf %128, %114 : vector<16x16xf32>
    %130 = arith.addf %112, %129 : vector<16x16xf32>
    %c0_40 = arith.constant 0 : index
    %c2_41 = arith.constant 2 : index
    %c0_42 = arith.constant 0 : index
    %131 = vector.load %arg9[%c0_40, %c2_41, %c0_42] : memref<4x18x18xf32, #tpu.memory_space<vmem>>, vector<1x16x16xf32>
    %132 = vector.shape_cast %131 : vector<1x16x16xf32> to vector<16x16xf32>
    %c6 = arith.constant 6 : index
    %133 = memref.load %arg2[%c6] : memref<144xf32, #tpu.memory_space<smem>>
    %134 = vector.broadcast %133 : f32 to vector<16x16xf32>
    %135 = arith.mulf %134, %132 : vector<16x16xf32>
    %136 = arith.addf %118, %135 : vector<16x16xf32>
    %c42 = arith.constant 42 : index
    %137 = memref.load %arg2[%c42] : memref<144xf32, #tpu.memory_space<smem>>
    %138 = vector.broadcast %137 : f32 to vector<16x16xf32>
    %139 = arith.mulf %138, %132 : vector<16x16xf32>
    %140 = arith.addf %122, %139 : vector<16x16xf32>
    %c78 = arith.constant 78 : index
    %141 = memref.load %arg2[%c78] : memref<144xf32, #tpu.memory_space<smem>>
    %142 = vector.broadcast %141 : f32 to vector<16x16xf32>
    %143 = arith.mulf %142, %132 : vector<16x16xf32>
    %144 = arith.addf %126, %143 : vector<16x16xf32>
    %c114 = arith.constant 114 : index
    %145 = memref.load %arg2[%c114] : memref<144xf32, #tpu.memory_space<smem>>
    %146 = vector.broadcast %145 : f32 to vector<16x16xf32>
    %147 = arith.mulf %146, %132 : vector<16x16xf32>
    %148 = arith.addf %130, %147 : vector<16x16xf32>
    %c0_43 = arith.constant 0 : index
    %c2_44 = arith.constant 2 : index
    %c1_45 = arith.constant 1 : index
    %149 = vector.load %arg9[%c0_43, %c2_44, %c1_45] : memref<4x18x18xf32, #tpu.memory_space<vmem>>, vector<1x16x16xf32>
    %150 = vector.shape_cast %149 : vector<1x16x16xf32> to vector<16x16xf32>
    %c7 = arith.constant 7 : index
    %151 = memref.load %arg2[%c7] : memref<144xf32, #tpu.memory_space<smem>>
    %152 = vector.broadcast %151 : f32 to vector<16x16xf32>
    %153 = arith.mulf %152, %150 : vector<16x16xf32>
    %154 = arith.addf %136, %153 : vector<16x16xf32>
    %c43 = arith.constant 43 : index
    %155 = memref.load %arg2[%c43] : memref<144xf32, #tpu.memory_space<smem>>
    %156 = vector.broadcast %155 : f32 to vector<16x16xf32>
    %157 = arith.mulf %156, %150 : vector<16x16xf32>
    %158 = arith.addf %140, %157 : vector<16x16xf32>
    %c79 = arith.constant 79 : index
    %159 = memref.load %arg2[%c79] : memref<144xf32, #tpu.memory_space<smem>>
    %160 = vector.broadcast %159 : f32 to vector<16x16xf32>
    %161 = arith.mulf %160, %150 : vector<16x16xf32>
    %162 = arith.addf %144, %161 : vector<16x16xf32>
    %c115 = arith.constant 115 : index
    %163 = memref.load %arg2[%c115] : memref<144xf32, #tpu.memory_space<smem>>
    %164 = vector.broadcast %163 : f32 to vector<16x16xf32>
    %165 = arith.mulf %164, %150 : vector<16x16xf32>
    %166 = arith.addf %148, %165 : vector<16x16xf32>
    %c0_46 = arith.constant 0 : index
    %c2_47 = arith.constant 2 : index
    %c2_48 = arith.constant 2 : index
    %167 = vector.load %arg9[%c0_46, %c2_47, %c2_48] : memref<4x18x18xf32, #tpu.memory_space<vmem>>, vector<1x16x16xf32>
    %168 = vector.shape_cast %167 : vector<1x16x16xf32> to vector<16x16xf32>
    %c8 = arith.constant 8 : index
    %169 = memref.load %arg2[%c8] : memref<144xf32, #tpu.memory_space<smem>>
    %170 = vector.broadcast %169 : f32 to vector<16x16xf32>
    %171 = arith.mulf %170, %168 : vector<16x16xf32>
    %172 = arith.addf %154, %171 : vector<16x16xf32>
    %c44 = arith.constant 44 : index
    %173 = memref.load %arg2[%c44] : memref<144xf32, #tpu.memory_space<smem>>
    %174 = vector.broadcast %173 : f32 to vector<16x16xf32>
    %175 = arith.mulf %174, %168 : vector<16x16xf32>
    %176 = arith.addf %158, %175 : vector<16x16xf32>
    %c80 = arith.constant 80 : index
    %177 = memref.load %arg2[%c80] : memref<144xf32, #tpu.memory_space<smem>>
    %178 = vector.broadcast %177 : f32 to vector<16x16xf32>
    %179 = arith.mulf %178, %168 : vector<16x16xf32>
    %180 = arith.addf %162, %179 : vector<16x16xf32>
    %c116 = arith.constant 116 : index
    %181 = memref.load %arg2[%c116] : memref<144xf32, #tpu.memory_space<smem>>
    %182 = vector.broadcast %181 : f32 to vector<16x16xf32>
    %183 = arith.mulf %182, %168 : vector<16x16xf32>
    %184 = arith.addf %166, %183 : vector<16x16xf32>
    %c1_49 = arith.constant 1 : index
    %c0_50 = arith.constant 0 : index
    %c0_51 = arith.constant 0 : index
    %185 = vector.load %arg9[%c1_49, %c0_50, %c0_51] : memref<4x18x18xf32, #tpu.memory_space<vmem>>, vector<1x16x16xf32>
    %186 = vector.shape_cast %185 : vector<1x16x16xf32> to vector<16x16xf32>
    %c9 = arith.constant 9 : index
    %187 = memref.load %arg2[%c9] : memref<144xf32, #tpu.memory_space<smem>>
    %188 = vector.broadcast %187 : f32 to vector<16x16xf32>
    %189 = arith.mulf %188, %186 : vector<16x16xf32>
    %190 = arith.addf %172, %189 : vector<16x16xf32>
    %c45 = arith.constant 45 : index
    %191 = memref.load %arg2[%c45] : memref<144xf32, #tpu.memory_space<smem>>
    %192 = vector.broadcast %191 : f32 to vector<16x16xf32>
    %193 = arith.mulf %192, %186 : vector<16x16xf32>
    %194 = arith.addf %176, %193 : vector<16x16xf32>
    %c81 = arith.constant 81 : index
    %195 = memref.load %arg2[%c81] : memref<144xf32, #tpu.memory_space<smem>>
    %196 = vector.broadcast %195 : f32 to vector<16x16xf32>
    %197 = arith.mulf %196, %186 : vector<16x16xf32>
    %198 = arith.addf %180, %197 : vector<16x16xf32>
    %c117 = arith.constant 117 : index
    %199 = memref.load %arg2[%c117] : memref<144xf32, #tpu.memory_space<smem>>
    %200 = vector.broadcast %199 : f32 to vector<16x16xf32>
    %201 = arith.mulf %200, %186 : vector<16x16xf32>
    %202 = arith.addf %184, %201 : vector<16x16xf32>
    %c1_52 = arith.constant 1 : index
    %c0_53 = arith.constant 0 : index
    %c1_54 = arith.constant 1 : index
    %203 = vector.load %arg9[%c1_52, %c0_53, %c1_54] : memref<4x18x18xf32, #tpu.memory_space<vmem>>, vector<1x16x16xf32>
    %204 = vector.shape_cast %203 : vector<1x16x16xf32> to vector<16x16xf32>
    %c10 = arith.constant 10 : index
    %205 = memref.load %arg2[%c10] : memref<144xf32, #tpu.memory_space<smem>>
    %206 = vector.broadcast %205 : f32 to vector<16x16xf32>
    %207 = arith.mulf %206, %204 : vector<16x16xf32>
    %208 = arith.addf %190, %207 : vector<16x16xf32>
    %c46 = arith.constant 46 : index
    %209 = memref.load %arg2[%c46] : memref<144xf32, #tpu.memory_space<smem>>
    %210 = vector.broadcast %209 : f32 to vector<16x16xf32>
    %211 = arith.mulf %210, %204 : vector<16x16xf32>
    %212 = arith.addf %194, %211 : vector<16x16xf32>
    %c82 = arith.constant 82 : index
    %213 = memref.load %arg2[%c82] : memref<144xf32, #tpu.memory_space<smem>>
    %214 = vector.broadcast %213 : f32 to vector<16x16xf32>
    %215 = arith.mulf %214, %204 : vector<16x16xf32>
    %216 = arith.addf %198, %215 : vector<16x16xf32>
    %c118 = arith.constant 118 : index
    %217 = memref.load %arg2[%c118] : memref<144xf32, #tpu.memory_space<smem>>
    %218 = vector.broadcast %217 : f32 to vector<16x16xf32>
    %219 = arith.mulf %218, %204 : vector<16x16xf32>
    %220 = arith.addf %202, %219 : vector<16x16xf32>
    %c1_55 = arith.constant 1 : index
    %c0_56 = arith.constant 0 : index
    %c2_57 = arith.constant 2 : index
    %221 = vector.load %arg9[%c1_55, %c0_56, %c2_57] : memref<4x18x18xf32, #tpu.memory_space<vmem>>, vector<1x16x16xf32>
    %222 = vector.shape_cast %221 : vector<1x16x16xf32> to vector<16x16xf32>
    %c11 = arith.constant 11 : index
    %223 = memref.load %arg2[%c11] : memref<144xf32, #tpu.memory_space<smem>>
    %224 = vector.broadcast %223 : f32 to vector<16x16xf32>
    %225 = arith.mulf %224, %222 : vector<16x16xf32>
    %226 = arith.addf %208, %225 : vector<16x16xf32>
    %c47 = arith.constant 47 : index
    %227 = memref.load %arg2[%c47] : memref<144xf32, #tpu.memory_space<smem>>
    %228 = vector.broadcast %227 : f32 to vector<16x16xf32>
    %229 = arith.mulf %228, %222 : vector<16x16xf32>
    %230 = arith.addf %212, %229 : vector<16x16xf32>
    %c83 = arith.constant 83 : index
    %231 = memref.load %arg2[%c83] : memref<144xf32, #tpu.memory_space<smem>>
    %232 = vector.broadcast %231 : f32 to vector<16x16xf32>
    %233 = arith.mulf %232, %222 : vector<16x16xf32>
    %234 = arith.addf %216, %233 : vector<16x16xf32>
    %c119 = arith.constant 119 : index
    %235 = memref.load %arg2[%c119] : memref<144xf32, #tpu.memory_space<smem>>
    %236 = vector.broadcast %235 : f32 to vector<16x16xf32>
    %237 = arith.mulf %236, %222 : vector<16x16xf32>
    %238 = arith.addf %220, %237 : vector<16x16xf32>
    %c1_58 = arith.constant 1 : index
    %c1_59 = arith.constant 1 : index
    %c0_60 = arith.constant 0 : index
    %239 = vector.load %arg9[%c1_58, %c1_59, %c0_60] : memref<4x18x18xf32, #tpu.memory_space<vmem>>, vector<1x16x16xf32>
    %240 = vector.shape_cast %239 : vector<1x16x16xf32> to vector<16x16xf32>
    %c12 = arith.constant 12 : index
    %241 = memref.load %arg2[%c12] : memref<144xf32, #tpu.memory_space<smem>>
    %242 = vector.broadcast %241 : f32 to vector<16x16xf32>
    %243 = arith.mulf %242, %240 : vector<16x16xf32>
    %244 = arith.addf %226, %243 : vector<16x16xf32>
    %c48 = arith.constant 48 : index
    %245 = memref.load %arg2[%c48] : memref<144xf32, #tpu.memory_space<smem>>
    %246 = vector.broadcast %245 : f32 to vector<16x16xf32>
    %247 = arith.mulf %246, %240 : vector<16x16xf32>
    %248 = arith.addf %230, %247 : vector<16x16xf32>
    %c84 = arith.constant 84 : index
    %249 = memref.load %arg2[%c84] : memref<144xf32, #tpu.memory_space<smem>>
    %250 = vector.broadcast %249 : f32 to vector<16x16xf32>
    %251 = arith.mulf %250, %240 : vector<16x16xf32>
    %252 = arith.addf %234, %251 : vector<16x16xf32>
    %c120 = arith.constant 120 : index
    %253 = memref.load %arg2[%c120] : memref<144xf32, #tpu.memory_space<smem>>
    %254 = vector.broadcast %253 : f32 to vector<16x16xf32>
    %255 = arith.mulf %254, %240 : vector<16x16xf32>
    %256 = arith.addf %238, %255 : vector<16x16xf32>
    %c1_61 = arith.constant 1 : index
    %c1_62 = arith.constant 1 : index
    %c1_63 = arith.constant 1 : index
    %257 = vector.load %arg9[%c1_61, %c1_62, %c1_63] : memref<4x18x18xf32, #tpu.memory_space<vmem>>, vector<1x16x16xf32>
    %258 = vector.shape_cast %257 : vector<1x16x16xf32> to vector<16x16xf32>
    %c13 = arith.constant 13 : index
    %259 = memref.load %arg2[%c13] : memref<144xf32, #tpu.memory_space<smem>>
    %260 = vector.broadcast %259 : f32 to vector<16x16xf32>
    %261 = arith.mulf %260, %258 : vector<16x16xf32>
    %262 = arith.addf %244, %261 : vector<16x16xf32>
    %c49 = arith.constant 49 : index
    %263 = memref.load %arg2[%c49] : memref<144xf32, #tpu.memory_space<smem>>
    %264 = vector.broadcast %263 : f32 to vector<16x16xf32>
    %265 = arith.mulf %264, %258 : vector<16x16xf32>
    %266 = arith.addf %248, %265 : vector<16x16xf32>
    %c85 = arith.constant 85 : index
    %267 = memref.load %arg2[%c85] : memref<144xf32, #tpu.memory_space<smem>>
    %268 = vector.broadcast %267 : f32 to vector<16x16xf32>
    %269 = arith.mulf %268, %258 : vector<16x16xf32>
    %270 = arith.addf %252, %269 : vector<16x16xf32>
    %c121 = arith.constant 121 : index
    %271 = memref.load %arg2[%c121] : memref<144xf32, #tpu.memory_space<smem>>
    %272 = vector.broadcast %271 : f32 to vector<16x16xf32>
    %273 = arith.mulf %272, %258 : vector<16x16xf32>
    %274 = arith.addf %256, %273 : vector<16x16xf32>
    %c1_64 = arith.constant 1 : index
    %c1_65 = arith.constant 1 : index
    %c2_66 = arith.constant 2 : index
    %275 = vector.load %arg9[%c1_64, %c1_65, %c2_66] : memref<4x18x18xf32, #tpu.memory_space<vmem>>, vector<1x16x16xf32>
    %276 = vector.shape_cast %275 : vector<1x16x16xf32> to vector<16x16xf32>
    %c14 = arith.constant 14 : index
    %277 = memref.load %arg2[%c14] : memref<144xf32, #tpu.memory_space<smem>>
    %278 = vector.broadcast %277 : f32 to vector<16x16xf32>
    %279 = arith.mulf %278, %276 : vector<16x16xf32>
    %280 = arith.addf %262, %279 : vector<16x16xf32>
    %c50 = arith.constant 50 : index
    %281 = memref.load %arg2[%c50] : memref<144xf32, #tpu.memory_space<smem>>
    %282 = vector.broadcast %281 : f32 to vector<16x16xf32>
    %283 = arith.mulf %282, %276 : vector<16x16xf32>
    %284 = arith.addf %266, %283 : vector<16x16xf32>
    %c86 = arith.constant 86 : index
    %285 = memref.load %arg2[%c86] : memref<144xf32, #tpu.memory_space<smem>>
    %286 = vector.broadcast %285 : f32 to vector<16x16xf32>
    %287 = arith.mulf %286, %276 : vector<16x16xf32>
    %288 = arith.addf %270, %287 : vector<16x16xf32>
    %c122 = arith.constant 122 : index
    %289 = memref.load %arg2[%c122] : memref<144xf32, #tpu.memory_space<smem>>
    %290 = vector.broadcast %289 : f32 to vector<16x16xf32>
    %291 = arith.mulf %290, %276 : vector<16x16xf32>
    %292 = arith.addf %274, %291 : vector<16x16xf32>
    %c1_67 = arith.constant 1 : index
    %c2_68 = arith.constant 2 : index
    %c0_69 = arith.constant 0 : index
    %293 = vector.load %arg9[%c1_67, %c2_68, %c0_69] : memref<4x18x18xf32, #tpu.memory_space<vmem>>, vector<1x16x16xf32>
    %294 = vector.shape_cast %293 : vector<1x16x16xf32> to vector<16x16xf32>
    %c15 = arith.constant 15 : index
    %295 = memref.load %arg2[%c15] : memref<144xf32, #tpu.memory_space<smem>>
    %296 = vector.broadcast %295 : f32 to vector<16x16xf32>
    %297 = arith.mulf %296, %294 : vector<16x16xf32>
    %298 = arith.addf %280, %297 : vector<16x16xf32>
    %c51 = arith.constant 51 : index
    %299 = memref.load %arg2[%c51] : memref<144xf32, #tpu.memory_space<smem>>
    %300 = vector.broadcast %299 : f32 to vector<16x16xf32>
    %301 = arith.mulf %300, %294 : vector<16x16xf32>
    %302 = arith.addf %284, %301 : vector<16x16xf32>
    %c87 = arith.constant 87 : index
    %303 = memref.load %arg2[%c87] : memref<144xf32, #tpu.memory_space<smem>>
    %304 = vector.broadcast %303 : f32 to vector<16x16xf32>
    %305 = arith.mulf %304, %294 : vector<16x16xf32>
    %306 = arith.addf %288, %305 : vector<16x16xf32>
    %c123 = arith.constant 123 : index
    %307 = memref.load %arg2[%c123] : memref<144xf32, #tpu.memory_space<smem>>
    %308 = vector.broadcast %307 : f32 to vector<16x16xf32>
    %309 = arith.mulf %308, %294 : vector<16x16xf32>
    %310 = arith.addf %292, %309 : vector<16x16xf32>
    %c1_70 = arith.constant 1 : index
    %c2_71 = arith.constant 2 : index
    %c1_72 = arith.constant 1 : index
    %311 = vector.load %arg9[%c1_70, %c2_71, %c1_72] : memref<4x18x18xf32, #tpu.memory_space<vmem>>, vector<1x16x16xf32>
    %312 = vector.shape_cast %311 : vector<1x16x16xf32> to vector<16x16xf32>
    %c16 = arith.constant 16 : index
    %313 = memref.load %arg2[%c16] : memref<144xf32, #tpu.memory_space<smem>>
    %314 = vector.broadcast %313 : f32 to vector<16x16xf32>
    %315 = arith.mulf %314, %312 : vector<16x16xf32>
    %316 = arith.addf %298, %315 : vector<16x16xf32>
    %c52 = arith.constant 52 : index
    %317 = memref.load %arg2[%c52] : memref<144xf32, #tpu.memory_space<smem>>
    %318 = vector.broadcast %317 : f32 to vector<16x16xf32>
    %319 = arith.mulf %318, %312 : vector<16x16xf32>
    %320 = arith.addf %302, %319 : vector<16x16xf32>
    %c88 = arith.constant 88 : index
    %321 = memref.load %arg2[%c88] : memref<144xf32, #tpu.memory_space<smem>>
    %322 = vector.broadcast %321 : f32 to vector<16x16xf32>
    %323 = arith.mulf %322, %312 : vector<16x16xf32>
    %324 = arith.addf %306, %323 : vector<16x16xf32>
    %c124 = arith.constant 124 : index
    %325 = memref.load %arg2[%c124] : memref<144xf32, #tpu.memory_space<smem>>
    %326 = vector.broadcast %325 : f32 to vector<16x16xf32>
    %327 = arith.mulf %326, %312 : vector<16x16xf32>
    %328 = arith.addf %310, %327 : vector<16x16xf32>
    %c1_73 = arith.constant 1 : index
    %c2_74 = arith.constant 2 : index
    %c2_75 = arith.constant 2 : index
    %329 = vector.load %arg9[%c1_73, %c2_74, %c2_75] : memref<4x18x18xf32, #tpu.memory_space<vmem>>, vector<1x16x16xf32>
    %330 = vector.shape_cast %329 : vector<1x16x16xf32> to vector<16x16xf32>
    %c17 = arith.constant 17 : index
    %331 = memref.load %arg2[%c17] : memref<144xf32, #tpu.memory_space<smem>>
    %332 = vector.broadcast %331 : f32 to vector<16x16xf32>
    %333 = arith.mulf %332, %330 : vector<16x16xf32>
    %334 = arith.addf %316, %333 : vector<16x16xf32>
    %c53 = arith.constant 53 : index
    %335 = memref.load %arg2[%c53] : memref<144xf32, #tpu.memory_space<smem>>
    %336 = vector.broadcast %335 : f32 to vector<16x16xf32>
    %337 = arith.mulf %336, %330 : vector<16x16xf32>
    %338 = arith.addf %320, %337 : vector<16x16xf32>
    %c89 = arith.constant 89 : index
    %339 = memref.load %arg2[%c89] : memref<144xf32, #tpu.memory_space<smem>>
    %340 = vector.broadcast %339 : f32 to vector<16x16xf32>
    %341 = arith.mulf %340, %330 : vector<16x16xf32>
    %342 = arith.addf %324, %341 : vector<16x16xf32>
    %c125 = arith.constant 125 : index
    %343 = memref.load %arg2[%c125] : memref<144xf32, #tpu.memory_space<smem>>
    %344 = vector.broadcast %343 : f32 to vector<16x16xf32>
    %345 = arith.mulf %344, %330 : vector<16x16xf32>
    %346 = arith.addf %328, %345 : vector<16x16xf32>
    %c2_76 = arith.constant 2 : index
    %c0_77 = arith.constant 0 : index
    %c0_78 = arith.constant 0 : index
    %347 = vector.load %arg9[%c2_76, %c0_77, %c0_78] : memref<4x18x18xf32, #tpu.memory_space<vmem>>, vector<1x16x16xf32>
    %348 = vector.shape_cast %347 : vector<1x16x16xf32> to vector<16x16xf32>
    %c18 = arith.constant 18 : index
    %349 = memref.load %arg2[%c18] : memref<144xf32, #tpu.memory_space<smem>>
    %350 = vector.broadcast %349 : f32 to vector<16x16xf32>
    %351 = arith.mulf %350, %348 : vector<16x16xf32>
    %352 = arith.addf %334, %351 : vector<16x16xf32>
    %c54 = arith.constant 54 : index
    %353 = memref.load %arg2[%c54] : memref<144xf32, #tpu.memory_space<smem>>
    %354 = vector.broadcast %353 : f32 to vector<16x16xf32>
    %355 = arith.mulf %354, %348 : vector<16x16xf32>
    %356 = arith.addf %338, %355 : vector<16x16xf32>
    %c90 = arith.constant 90 : index
    %357 = memref.load %arg2[%c90] : memref<144xf32, #tpu.memory_space<smem>>
    %358 = vector.broadcast %357 : f32 to vector<16x16xf32>
    %359 = arith.mulf %358, %348 : vector<16x16xf32>
    %360 = arith.addf %342, %359 : vector<16x16xf32>
    %c126 = arith.constant 126 : index
    %361 = memref.load %arg2[%c126] : memref<144xf32, #tpu.memory_space<smem>>
    %362 = vector.broadcast %361 : f32 to vector<16x16xf32>
    %363 = arith.mulf %362, %348 : vector<16x16xf32>
    %364 = arith.addf %346, %363 : vector<16x16xf32>
    %c2_79 = arith.constant 2 : index
    %c0_80 = arith.constant 0 : index
    %c1_81 = arith.constant 1 : index
    %365 = vector.load %arg9[%c2_79, %c0_80, %c1_81] : memref<4x18x18xf32, #tpu.memory_space<vmem>>, vector<1x16x16xf32>
    %366 = vector.shape_cast %365 : vector<1x16x16xf32> to vector<16x16xf32>
    %c19 = arith.constant 19 : index
    %367 = memref.load %arg2[%c19] : memref<144xf32, #tpu.memory_space<smem>>
    %368 = vector.broadcast %367 : f32 to vector<16x16xf32>
    %369 = arith.mulf %368, %366 : vector<16x16xf32>
    %370 = arith.addf %352, %369 : vector<16x16xf32>
    %c55 = arith.constant 55 : index
    %371 = memref.load %arg2[%c55] : memref<144xf32, #tpu.memory_space<smem>>
    %372 = vector.broadcast %371 : f32 to vector<16x16xf32>
    %373 = arith.mulf %372, %366 : vector<16x16xf32>
    %374 = arith.addf %356, %373 : vector<16x16xf32>
    %c91 = arith.constant 91 : index
    %375 = memref.load %arg2[%c91] : memref<144xf32, #tpu.memory_space<smem>>
    %376 = vector.broadcast %375 : f32 to vector<16x16xf32>
    %377 = arith.mulf %376, %366 : vector<16x16xf32>
    %378 = arith.addf %360, %377 : vector<16x16xf32>
    %c127 = arith.constant 127 : index
    %379 = memref.load %arg2[%c127] : memref<144xf32, #tpu.memory_space<smem>>
    %380 = vector.broadcast %379 : f32 to vector<16x16xf32>
    %381 = arith.mulf %380, %366 : vector<16x16xf32>
    %382 = arith.addf %364, %381 : vector<16x16xf32>
    %c2_82 = arith.constant 2 : index
    %c0_83 = arith.constant 0 : index
    %c2_84 = arith.constant 2 : index
    %383 = vector.load %arg9[%c2_82, %c0_83, %c2_84] : memref<4x18x18xf32, #tpu.memory_space<vmem>>, vector<1x16x16xf32>
    %384 = vector.shape_cast %383 : vector<1x16x16xf32> to vector<16x16xf32>
    %c20 = arith.constant 20 : index
    %385 = memref.load %arg2[%c20] : memref<144xf32, #tpu.memory_space<smem>>
    %386 = vector.broadcast %385 : f32 to vector<16x16xf32>
    %387 = arith.mulf %386, %384 : vector<16x16xf32>
    %388 = arith.addf %370, %387 : vector<16x16xf32>
    %c56 = arith.constant 56 : index
    %389 = memref.load %arg2[%c56] : memref<144xf32, #tpu.memory_space<smem>>
    %390 = vector.broadcast %389 : f32 to vector<16x16xf32>
    %391 = arith.mulf %390, %384 : vector<16x16xf32>
    %392 = arith.addf %374, %391 : vector<16x16xf32>
    %c92 = arith.constant 92 : index
    %393 = memref.load %arg2[%c92] : memref<144xf32, #tpu.memory_space<smem>>
    %394 = vector.broadcast %393 : f32 to vector<16x16xf32>
    %395 = arith.mulf %394, %384 : vector<16x16xf32>
    %396 = arith.addf %378, %395 : vector<16x16xf32>
    %c128 = arith.constant 128 : index
    %397 = memref.load %arg2[%c128] : memref<144xf32, #tpu.memory_space<smem>>
    %398 = vector.broadcast %397 : f32 to vector<16x16xf32>
    %399 = arith.mulf %398, %384 : vector<16x16xf32>
    %400 = arith.addf %382, %399 : vector<16x16xf32>
    %c2_85 = arith.constant 2 : index
    %c1_86 = arith.constant 1 : index
    %c0_87 = arith.constant 0 : index
    %401 = vector.load %arg9[%c2_85, %c1_86, %c0_87] : memref<4x18x18xf32, #tpu.memory_space<vmem>>, vector<1x16x16xf32>
    %402 = vector.shape_cast %401 : vector<1x16x16xf32> to vector<16x16xf32>
    %c21 = arith.constant 21 : index
    %403 = memref.load %arg2[%c21] : memref<144xf32, #tpu.memory_space<smem>>
    %404 = vector.broadcast %403 : f32 to vector<16x16xf32>
    %405 = arith.mulf %404, %402 : vector<16x16xf32>
    %406 = arith.addf %388, %405 : vector<16x16xf32>
    %c57 = arith.constant 57 : index
    %407 = memref.load %arg2[%c57] : memref<144xf32, #tpu.memory_space<smem>>
    %408 = vector.broadcast %407 : f32 to vector<16x16xf32>
    %409 = arith.mulf %408, %402 : vector<16x16xf32>
    %410 = arith.addf %392, %409 : vector<16x16xf32>
    %c93 = arith.constant 93 : index
    %411 = memref.load %arg2[%c93] : memref<144xf32, #tpu.memory_space<smem>>
    %412 = vector.broadcast %411 : f32 to vector<16x16xf32>
    %413 = arith.mulf %412, %402 : vector<16x16xf32>
    %414 = arith.addf %396, %413 : vector<16x16xf32>
    %c129 = arith.constant 129 : index
    %415 = memref.load %arg2[%c129] : memref<144xf32, #tpu.memory_space<smem>>
    %416 = vector.broadcast %415 : f32 to vector<16x16xf32>
    %417 = arith.mulf %416, %402 : vector<16x16xf32>
    %418 = arith.addf %400, %417 : vector<16x16xf32>
    %c2_88 = arith.constant 2 : index
    %c1_89 = arith.constant 1 : index
    %c1_90 = arith.constant 1 : index
    %419 = vector.load %arg9[%c2_88, %c1_89, %c1_90] : memref<4x18x18xf32, #tpu.memory_space<vmem>>, vector<1x16x16xf32>
    %420 = vector.shape_cast %419 : vector<1x16x16xf32> to vector<16x16xf32>
    %c22 = arith.constant 22 : index
    %421 = memref.load %arg2[%c22] : memref<144xf32, #tpu.memory_space<smem>>
    %422 = vector.broadcast %421 : f32 to vector<16x16xf32>
    %423 = arith.mulf %422, %420 : vector<16x16xf32>
    %424 = arith.addf %406, %423 : vector<16x16xf32>
    %c58 = arith.constant 58 : index
    %425 = memref.load %arg2[%c58] : memref<144xf32, #tpu.memory_space<smem>>
    %426 = vector.broadcast %425 : f32 to vector<16x16xf32>
    %427 = arith.mulf %426, %420 : vector<16x16xf32>
    %428 = arith.addf %410, %427 : vector<16x16xf32>
    %c94 = arith.constant 94 : index
    %429 = memref.load %arg2[%c94] : memref<144xf32, #tpu.memory_space<smem>>
    %430 = vector.broadcast %429 : f32 to vector<16x16xf32>
    %431 = arith.mulf %430, %420 : vector<16x16xf32>
    %432 = arith.addf %414, %431 : vector<16x16xf32>
    %c130 = arith.constant 130 : index
    %433 = memref.load %arg2[%c130] : memref<144xf32, #tpu.memory_space<smem>>
    %434 = vector.broadcast %433 : f32 to vector<16x16xf32>
    %435 = arith.mulf %434, %420 : vector<16x16xf32>
    %436 = arith.addf %418, %435 : vector<16x16xf32>
    %c2_91 = arith.constant 2 : index
    %c1_92 = arith.constant 1 : index
    %c2_93 = arith.constant 2 : index
    %437 = vector.load %arg9[%c2_91, %c1_92, %c2_93] : memref<4x18x18xf32, #tpu.memory_space<vmem>>, vector<1x16x16xf32>
    %438 = vector.shape_cast %437 : vector<1x16x16xf32> to vector<16x16xf32>
    %c23 = arith.constant 23 : index
    %439 = memref.load %arg2[%c23] : memref<144xf32, #tpu.memory_space<smem>>
    %440 = vector.broadcast %439 : f32 to vector<16x16xf32>
    %441 = arith.mulf %440, %438 : vector<16x16xf32>
    %442 = arith.addf %424, %441 : vector<16x16xf32>
    %c59 = arith.constant 59 : index
    %443 = memref.load %arg2[%c59] : memref<144xf32, #tpu.memory_space<smem>>
    %444 = vector.broadcast %443 : f32 to vector<16x16xf32>
    %445 = arith.mulf %444, %438 : vector<16x16xf32>
    %446 = arith.addf %428, %445 : vector<16x16xf32>
    %c95 = arith.constant 95 : index
    %447 = memref.load %arg2[%c95] : memref<144xf32, #tpu.memory_space<smem>>
    %448 = vector.broadcast %447 : f32 to vector<16x16xf32>
    %449 = arith.mulf %448, %438 : vector<16x16xf32>
    %450 = arith.addf %432, %449 : vector<16x16xf32>
    %c131 = arith.constant 131 : index
    %451 = memref.load %arg2[%c131] : memref<144xf32, #tpu.memory_space<smem>>
    %452 = vector.broadcast %451 : f32 to vector<16x16xf32>
    %453 = arith.mulf %452, %438 : vector<16x16xf32>
    %454 = arith.addf %436, %453 : vector<16x16xf32>
    %c2_94 = arith.constant 2 : index
    %c2_95 = arith.constant 2 : index
    %c0_96 = arith.constant 0 : index
    %455 = vector.load %arg9[%c2_94, %c2_95, %c0_96] : memref<4x18x18xf32, #tpu.memory_space<vmem>>, vector<1x16x16xf32>
    %456 = vector.shape_cast %455 : vector<1x16x16xf32> to vector<16x16xf32>
    %c24 = arith.constant 24 : index
    %457 = memref.load %arg2[%c24] : memref<144xf32, #tpu.memory_space<smem>>
    %458 = vector.broadcast %457 : f32 to vector<16x16xf32>
    %459 = arith.mulf %458, %456 : vector<16x16xf32>
    %460 = arith.addf %442, %459 : vector<16x16xf32>
    %c60 = arith.constant 60 : index
    %461 = memref.load %arg2[%c60] : memref<144xf32, #tpu.memory_space<smem>>
    %462 = vector.broadcast %461 : f32 to vector<16x16xf32>
    %463 = arith.mulf %462, %456 : vector<16x16xf32>
    %464 = arith.addf %446, %463 : vector<16x16xf32>
    %c96 = arith.constant 96 : index
    %465 = memref.load %arg2[%c96] : memref<144xf32, #tpu.memory_space<smem>>
    %466 = vector.broadcast %465 : f32 to vector<16x16xf32>
    %467 = arith.mulf %466, %456 : vector<16x16xf32>
    %468 = arith.addf %450, %467 : vector<16x16xf32>
    %c132 = arith.constant 132 : index
    %469 = memref.load %arg2[%c132] : memref<144xf32, #tpu.memory_space<smem>>
    %470 = vector.broadcast %469 : f32 to vector<16x16xf32>
    %471 = arith.mulf %470, %456 : vector<16x16xf32>
    %472 = arith.addf %454, %471 : vector<16x16xf32>
    %c2_97 = arith.constant 2 : index
    %c2_98 = arith.constant 2 : index
    %c1_99 = arith.constant 1 : index
    %473 = vector.load %arg9[%c2_97, %c2_98, %c1_99] : memref<4x18x18xf32, #tpu.memory_space<vmem>>, vector<1x16x16xf32>
    %474 = vector.shape_cast %473 : vector<1x16x16xf32> to vector<16x16xf32>
    %c25 = arith.constant 25 : index
    %475 = memref.load %arg2[%c25] : memref<144xf32, #tpu.memory_space<smem>>
    %476 = vector.broadcast %475 : f32 to vector<16x16xf32>
    %477 = arith.mulf %476, %474 : vector<16x16xf32>
    %478 = arith.addf %460, %477 : vector<16x16xf32>
    %c61 = arith.constant 61 : index
    %479 = memref.load %arg2[%c61] : memref<144xf32, #tpu.memory_space<smem>>
    %480 = vector.broadcast %479 : f32 to vector<16x16xf32>
    %481 = arith.mulf %480, %474 : vector<16x16xf32>
    %482 = arith.addf %464, %481 : vector<16x16xf32>
    %c97 = arith.constant 97 : index
    %483 = memref.load %arg2[%c97] : memref<144xf32, #tpu.memory_space<smem>>
    %484 = vector.broadcast %483 : f32 to vector<16x16xf32>
    %485 = arith.mulf %484, %474 : vector<16x16xf32>
    %486 = arith.addf %468, %485 : vector<16x16xf32>
    %c133 = arith.constant 133 : index
    %487 = memref.load %arg2[%c133] : memref<144xf32, #tpu.memory_space<smem>>
    %488 = vector.broadcast %487 : f32 to vector<16x16xf32>
    %489 = arith.mulf %488, %474 : vector<16x16xf32>
    %490 = arith.addf %472, %489 : vector<16x16xf32>
    %c2_100 = arith.constant 2 : index
    %c2_101 = arith.constant 2 : index
    %c2_102 = arith.constant 2 : index
    %491 = vector.load %arg9[%c2_100, %c2_101, %c2_102] : memref<4x18x18xf32, #tpu.memory_space<vmem>>, vector<1x16x16xf32>
    %492 = vector.shape_cast %491 : vector<1x16x16xf32> to vector<16x16xf32>
    %c26 = arith.constant 26 : index
    %493 = memref.load %arg2[%c26] : memref<144xf32, #tpu.memory_space<smem>>
    %494 = vector.broadcast %493 : f32 to vector<16x16xf32>
    %495 = arith.mulf %494, %492 : vector<16x16xf32>
    %496 = arith.addf %478, %495 : vector<16x16xf32>
    %c62 = arith.constant 62 : index
    %497 = memref.load %arg2[%c62] : memref<144xf32, #tpu.memory_space<smem>>
    %498 = vector.broadcast %497 : f32 to vector<16x16xf32>
    %499 = arith.mulf %498, %492 : vector<16x16xf32>
    %500 = arith.addf %482, %499 : vector<16x16xf32>
    %c98 = arith.constant 98 : index
    %501 = memref.load %arg2[%c98] : memref<144xf32, #tpu.memory_space<smem>>
    %502 = vector.broadcast %501 : f32 to vector<16x16xf32>
    %503 = arith.mulf %502, %492 : vector<16x16xf32>
    %504 = arith.addf %486, %503 : vector<16x16xf32>
    %c134 = arith.constant 134 : index
    %505 = memref.load %arg2[%c134] : memref<144xf32, #tpu.memory_space<smem>>
    %506 = vector.broadcast %505 : f32 to vector<16x16xf32>
    %507 = arith.mulf %506, %492 : vector<16x16xf32>
    %508 = arith.addf %490, %507 : vector<16x16xf32>
    %c3_103 = arith.constant 3 : index
    %c0_104 = arith.constant 0 : index
    %c0_105 = arith.constant 0 : index
    %509 = vector.load %arg9[%c3_103, %c0_104, %c0_105] : memref<4x18x18xf32, #tpu.memory_space<vmem>>, vector<1x16x16xf32>
    %510 = vector.shape_cast %509 : vector<1x16x16xf32> to vector<16x16xf32>
    %c27 = arith.constant 27 : index
    %511 = memref.load %arg2[%c27] : memref<144xf32, #tpu.memory_space<smem>>
    %512 = vector.broadcast %511 : f32 to vector<16x16xf32>
    %513 = arith.mulf %512, %510 : vector<16x16xf32>
    %514 = arith.addf %496, %513 : vector<16x16xf32>
    %c63 = arith.constant 63 : index
    %515 = memref.load %arg2[%c63] : memref<144xf32, #tpu.memory_space<smem>>
    %516 = vector.broadcast %515 : f32 to vector<16x16xf32>
    %517 = arith.mulf %516, %510 : vector<16x16xf32>
    %518 = arith.addf %500, %517 : vector<16x16xf32>
    %c99 = arith.constant 99 : index
    %519 = memref.load %arg2[%c99] : memref<144xf32, #tpu.memory_space<smem>>
    %520 = vector.broadcast %519 : f32 to vector<16x16xf32>
    %521 = arith.mulf %520, %510 : vector<16x16xf32>
    %522 = arith.addf %504, %521 : vector<16x16xf32>
    %c135 = arith.constant 135 : index
    %523 = memref.load %arg2[%c135] : memref<144xf32, #tpu.memory_space<smem>>
    %524 = vector.broadcast %523 : f32 to vector<16x16xf32>
    %525 = arith.mulf %524, %510 : vector<16x16xf32>
    %526 = arith.addf %508, %525 : vector<16x16xf32>
    %c3_106 = arith.constant 3 : index
    %c0_107 = arith.constant 0 : index
    %c1_108 = arith.constant 1 : index
    %527 = vector.load %arg9[%c3_106, %c0_107, %c1_108] : memref<4x18x18xf32, #tpu.memory_space<vmem>>, vector<1x16x16xf32>
    %528 = vector.shape_cast %527 : vector<1x16x16xf32> to vector<16x16xf32>
    %c28 = arith.constant 28 : index
    %529 = memref.load %arg2[%c28] : memref<144xf32, #tpu.memory_space<smem>>
    %530 = vector.broadcast %529 : f32 to vector<16x16xf32>
    %531 = arith.mulf %530, %528 : vector<16x16xf32>
    %532 = arith.addf %514, %531 : vector<16x16xf32>
    %c64 = arith.constant 64 : index
    %533 = memref.load %arg2[%c64] : memref<144xf32, #tpu.memory_space<smem>>
    %534 = vector.broadcast %533 : f32 to vector<16x16xf32>
    %535 = arith.mulf %534, %528 : vector<16x16xf32>
    %536 = arith.addf %518, %535 : vector<16x16xf32>
    %c100 = arith.constant 100 : index
    %537 = memref.load %arg2[%c100] : memref<144xf32, #tpu.memory_space<smem>>
    %538 = vector.broadcast %537 : f32 to vector<16x16xf32>
    %539 = arith.mulf %538, %528 : vector<16x16xf32>
    %540 = arith.addf %522, %539 : vector<16x16xf32>
    %c136 = arith.constant 136 : index
    %541 = memref.load %arg2[%c136] : memref<144xf32, #tpu.memory_space<smem>>
    %542 = vector.broadcast %541 : f32 to vector<16x16xf32>
    %543 = arith.mulf %542, %528 : vector<16x16xf32>
    %544 = arith.addf %526, %543 : vector<16x16xf32>
    %c3_109 = arith.constant 3 : index
    %c0_110 = arith.constant 0 : index
    %c2_111 = arith.constant 2 : index
    %545 = vector.load %arg9[%c3_109, %c0_110, %c2_111] : memref<4x18x18xf32, #tpu.memory_space<vmem>>, vector<1x16x16xf32>
    %546 = vector.shape_cast %545 : vector<1x16x16xf32> to vector<16x16xf32>
    %c29 = arith.constant 29 : index
    %547 = memref.load %arg2[%c29] : memref<144xf32, #tpu.memory_space<smem>>
    %548 = vector.broadcast %547 : f32 to vector<16x16xf32>
    %549 = arith.mulf %548, %546 : vector<16x16xf32>
    %550 = arith.addf %532, %549 : vector<16x16xf32>
    %c65 = arith.constant 65 : index
    %551 = memref.load %arg2[%c65] : memref<144xf32, #tpu.memory_space<smem>>
    %552 = vector.broadcast %551 : f32 to vector<16x16xf32>
    %553 = arith.mulf %552, %546 : vector<16x16xf32>
    %554 = arith.addf %536, %553 : vector<16x16xf32>
    %c101 = arith.constant 101 : index
    %555 = memref.load %arg2[%c101] : memref<144xf32, #tpu.memory_space<smem>>
    %556 = vector.broadcast %555 : f32 to vector<16x16xf32>
    %557 = arith.mulf %556, %546 : vector<16x16xf32>
    %558 = arith.addf %540, %557 : vector<16x16xf32>
    %c137 = arith.constant 137 : index
    %559 = memref.load %arg2[%c137] : memref<144xf32, #tpu.memory_space<smem>>
    %560 = vector.broadcast %559 : f32 to vector<16x16xf32>
    %561 = arith.mulf %560, %546 : vector<16x16xf32>
    %562 = arith.addf %544, %561 : vector<16x16xf32>
    %c3_112 = arith.constant 3 : index
    %c1_113 = arith.constant 1 : index
    %c0_114 = arith.constant 0 : index
    %563 = vector.load %arg9[%c3_112, %c1_113, %c0_114] : memref<4x18x18xf32, #tpu.memory_space<vmem>>, vector<1x16x16xf32>
    %564 = vector.shape_cast %563 : vector<1x16x16xf32> to vector<16x16xf32>
    %c30 = arith.constant 30 : index
    %565 = memref.load %arg2[%c30] : memref<144xf32, #tpu.memory_space<smem>>
    %566 = vector.broadcast %565 : f32 to vector<16x16xf32>
    %567 = arith.mulf %566, %564 : vector<16x16xf32>
    %568 = arith.addf %550, %567 : vector<16x16xf32>
    %c66 = arith.constant 66 : index
    %569 = memref.load %arg2[%c66] : memref<144xf32, #tpu.memory_space<smem>>
    %570 = vector.broadcast %569 : f32 to vector<16x16xf32>
    %571 = arith.mulf %570, %564 : vector<16x16xf32>
    %572 = arith.addf %554, %571 : vector<16x16xf32>
    %c102 = arith.constant 102 : index
    %573 = memref.load %arg2[%c102] : memref<144xf32, #tpu.memory_space<smem>>
    %574 = vector.broadcast %573 : f32 to vector<16x16xf32>
    %575 = arith.mulf %574, %564 : vector<16x16xf32>
    %576 = arith.addf %558, %575 : vector<16x16xf32>
    %c138 = arith.constant 138 : index
    %577 = memref.load %arg2[%c138] : memref<144xf32, #tpu.memory_space<smem>>
    %578 = vector.broadcast %577 : f32 to vector<16x16xf32>
    %579 = arith.mulf %578, %564 : vector<16x16xf32>
    %580 = arith.addf %562, %579 : vector<16x16xf32>
    %c3_115 = arith.constant 3 : index
    %c1_116 = arith.constant 1 : index
    %c1_117 = arith.constant 1 : index
    %581 = vector.load %arg9[%c3_115, %c1_116, %c1_117] : memref<4x18x18xf32, #tpu.memory_space<vmem>>, vector<1x16x16xf32>
    %582 = vector.shape_cast %581 : vector<1x16x16xf32> to vector<16x16xf32>
    %c31 = arith.constant 31 : index
    %583 = memref.load %arg2[%c31] : memref<144xf32, #tpu.memory_space<smem>>
    %584 = vector.broadcast %583 : f32 to vector<16x16xf32>
    %585 = arith.mulf %584, %582 : vector<16x16xf32>
    %586 = arith.addf %568, %585 : vector<16x16xf32>
    %c67 = arith.constant 67 : index
    %587 = memref.load %arg2[%c67] : memref<144xf32, #tpu.memory_space<smem>>
    %588 = vector.broadcast %587 : f32 to vector<16x16xf32>
    %589 = arith.mulf %588, %582 : vector<16x16xf32>
    %590 = arith.addf %572, %589 : vector<16x16xf32>
    %c103 = arith.constant 103 : index
    %591 = memref.load %arg2[%c103] : memref<144xf32, #tpu.memory_space<smem>>
    %592 = vector.broadcast %591 : f32 to vector<16x16xf32>
    %593 = arith.mulf %592, %582 : vector<16x16xf32>
    %594 = arith.addf %576, %593 : vector<16x16xf32>
    %c139 = arith.constant 139 : index
    %595 = memref.load %arg2[%c139] : memref<144xf32, #tpu.memory_space<smem>>
    %596 = vector.broadcast %595 : f32 to vector<16x16xf32>
    %597 = arith.mulf %596, %582 : vector<16x16xf32>
    %598 = arith.addf %580, %597 : vector<16x16xf32>
    %c3_118 = arith.constant 3 : index
    %c1_119 = arith.constant 1 : index
    %c2_120 = arith.constant 2 : index
    %599 = vector.load %arg9[%c3_118, %c1_119, %c2_120] : memref<4x18x18xf32, #tpu.memory_space<vmem>>, vector<1x16x16xf32>
    %600 = vector.shape_cast %599 : vector<1x16x16xf32> to vector<16x16xf32>
    %c32 = arith.constant 32 : index
    %601 = memref.load %arg2[%c32] : memref<144xf32, #tpu.memory_space<smem>>
    %602 = vector.broadcast %601 : f32 to vector<16x16xf32>
    %603 = arith.mulf %602, %600 : vector<16x16xf32>
    %604 = arith.addf %586, %603 : vector<16x16xf32>
    %c68 = arith.constant 68 : index
    %605 = memref.load %arg2[%c68] : memref<144xf32, #tpu.memory_space<smem>>
    %606 = vector.broadcast %605 : f32 to vector<16x16xf32>
    %607 = arith.mulf %606, %600 : vector<16x16xf32>
    %608 = arith.addf %590, %607 : vector<16x16xf32>
    %c104 = arith.constant 104 : index
    %609 = memref.load %arg2[%c104] : memref<144xf32, #tpu.memory_space<smem>>
    %610 = vector.broadcast %609 : f32 to vector<16x16xf32>
    %611 = arith.mulf %610, %600 : vector<16x16xf32>
    %612 = arith.addf %594, %611 : vector<16x16xf32>
    %c140 = arith.constant 140 : index
    %613 = memref.load %arg2[%c140] : memref<144xf32, #tpu.memory_space<smem>>
    %614 = vector.broadcast %613 : f32 to vector<16x16xf32>
    %615 = arith.mulf %614, %600 : vector<16x16xf32>
    %616 = arith.addf %598, %615 : vector<16x16xf32>
    %c3_121 = arith.constant 3 : index
    %c2_122 = arith.constant 2 : index
    %c0_123 = arith.constant 0 : index
    %617 = vector.load %arg9[%c3_121, %c2_122, %c0_123] : memref<4x18x18xf32, #tpu.memory_space<vmem>>, vector<1x16x16xf32>
    %618 = vector.shape_cast %617 : vector<1x16x16xf32> to vector<16x16xf32>
    %c33 = arith.constant 33 : index
    %619 = memref.load %arg2[%c33] : memref<144xf32, #tpu.memory_space<smem>>
    %620 = vector.broadcast %619 : f32 to vector<16x16xf32>
    %621 = arith.mulf %620, %618 : vector<16x16xf32>
    %622 = arith.addf %604, %621 : vector<16x16xf32>
    %c69 = arith.constant 69 : index
    %623 = memref.load %arg2[%c69] : memref<144xf32, #tpu.memory_space<smem>>
    %624 = vector.broadcast %623 : f32 to vector<16x16xf32>
    %625 = arith.mulf %624, %618 : vector<16x16xf32>
    %626 = arith.addf %608, %625 : vector<16x16xf32>
    %c105 = arith.constant 105 : index
    %627 = memref.load %arg2[%c105] : memref<144xf32, #tpu.memory_space<smem>>
    %628 = vector.broadcast %627 : f32 to vector<16x16xf32>
    %629 = arith.mulf %628, %618 : vector<16x16xf32>
    %630 = arith.addf %612, %629 : vector<16x16xf32>
    %c141 = arith.constant 141 : index
    %631 = memref.load %arg2[%c141] : memref<144xf32, #tpu.memory_space<smem>>
    %632 = vector.broadcast %631 : f32 to vector<16x16xf32>
    %633 = arith.mulf %632, %618 : vector<16x16xf32>
    %634 = arith.addf %616, %633 : vector<16x16xf32>
    %c3_124 = arith.constant 3 : index
    %c2_125 = arith.constant 2 : index
    %c1_126 = arith.constant 1 : index
    %635 = vector.load %arg9[%c3_124, %c2_125, %c1_126] : memref<4x18x18xf32, #tpu.memory_space<vmem>>, vector<1x16x16xf32>
    %636 = vector.shape_cast %635 : vector<1x16x16xf32> to vector<16x16xf32>
    %c34 = arith.constant 34 : index
    %637 = memref.load %arg2[%c34] : memref<144xf32, #tpu.memory_space<smem>>
    %638 = vector.broadcast %637 : f32 to vector<16x16xf32>
    %639 = arith.mulf %638, %636 : vector<16x16xf32>
    %640 = arith.addf %622, %639 : vector<16x16xf32>
    %c70 = arith.constant 70 : index
    %641 = memref.load %arg2[%c70] : memref<144xf32, #tpu.memory_space<smem>>
    %642 = vector.broadcast %641 : f32 to vector<16x16xf32>
    %643 = arith.mulf %642, %636 : vector<16x16xf32>
    %644 = arith.addf %626, %643 : vector<16x16xf32>
    %c106 = arith.constant 106 : index
    %645 = memref.load %arg2[%c106] : memref<144xf32, #tpu.memory_space<smem>>
    %646 = vector.broadcast %645 : f32 to vector<16x16xf32>
    %647 = arith.mulf %646, %636 : vector<16x16xf32>
    %648 = arith.addf %630, %647 : vector<16x16xf32>
    %c142 = arith.constant 142 : index
    %649 = memref.load %arg2[%c142] : memref<144xf32, #tpu.memory_space<smem>>
    %650 = vector.broadcast %649 : f32 to vector<16x16xf32>
    %651 = arith.mulf %650, %636 : vector<16x16xf32>
    %652 = arith.addf %634, %651 : vector<16x16xf32>
    %c3_127 = arith.constant 3 : index
    %c2_128 = arith.constant 2 : index
    %c2_129 = arith.constant 2 : index
    %653 = vector.load %arg9[%c3_127, %c2_128, %c2_129] : memref<4x18x18xf32, #tpu.memory_space<vmem>>, vector<1x16x16xf32>
    %654 = vector.shape_cast %653 : vector<1x16x16xf32> to vector<16x16xf32>
    %c35 = arith.constant 35 : index
    %655 = memref.load %arg2[%c35] : memref<144xf32, #tpu.memory_space<smem>>
    %656 = vector.broadcast %655 : f32 to vector<16x16xf32>
    %657 = arith.mulf %656, %654 : vector<16x16xf32>
    %658 = arith.addf %640, %657 : vector<16x16xf32>
    %c71 = arith.constant 71 : index
    %659 = memref.load %arg2[%c71] : memref<144xf32, #tpu.memory_space<smem>>
    %660 = vector.broadcast %659 : f32 to vector<16x16xf32>
    %661 = arith.mulf %660, %654 : vector<16x16xf32>
    %662 = arith.addf %644, %661 : vector<16x16xf32>
    %c107 = arith.constant 107 : index
    %663 = memref.load %arg2[%c107] : memref<144xf32, #tpu.memory_space<smem>>
    %664 = vector.broadcast %663 : f32 to vector<16x16xf32>
    %665 = arith.mulf %664, %654 : vector<16x16xf32>
    %666 = arith.addf %648, %665 : vector<16x16xf32>
    %c143 = arith.constant 143 : index
    %667 = memref.load %arg2[%c143] : memref<144xf32, #tpu.memory_space<smem>>
    %668 = vector.broadcast %667 : f32 to vector<16x16xf32>
    %669 = arith.mulf %668, %654 : vector<16x16xf32>
    %670 = arith.addf %652, %669 : vector<16x16xf32>
    %cst_130 = arith.constant 0.000000e+00 : f32
    %671 = vector.broadcast %cst_130 : f32 to vector<16x16xf32>
    %672 = arith.maximumf %658, %671 : vector<16x16xf32>
    %c0_131 = arith.constant 0 : index
    %c1_132 = arith.constant 1 : index
    %c1_133 = arith.constant 1 : index
    %673 = vector.load %arg10[%c0_131, %c1_132, %c1_133] : memref<4x18x18xf32, #tpu.memory_space<vmem>>, vector<1x16x16xf32>
    %674 = vector.shape_cast %673 : vector<1x16x16xf32> to vector<16x16xf32>
    %675 = vector.shape_cast %672 : vector<16x16xf32> to vector<1x16x16xf32>
    tpu.vector_store %arg10[%c0_131, %c1_132, %c1_133], %675 {strides = array<i32>} : memref<4x18x18xf32, #tpu.memory_space<vmem>>, vector<1x16x16xf32>,
    %cst_134 = arith.constant 0.000000e+00 : f32
    %676 = vector.broadcast %cst_134 : f32 to vector<16x16xf32>
    %677 = arith.maximumf %662, %676 : vector<16x16xf32>
    %c1_135 = arith.constant 1 : index
    %c1_136 = arith.constant 1 : index
    %c1_137 = arith.constant 1 : index
    %678 = vector.load %arg10[%c1_135, %c1_136, %c1_137] : memref<4x18x18xf32, #tpu.memory_space<vmem>>, vector<1x16x16xf32>
    %679 = vector.shape_cast %678 : vector<1x16x16xf32> to vector<16x16xf32>
    %680 = vector.shape_cast %677 : vector<16x16xf32> to vector<1x16x16xf32>
    tpu.vector_store %arg10[%c1_135, %c1_136, %c1_137], %680 {strides = array<i32>} : memref<4x18x18xf32, #tpu.memory_space<vmem>>, vector<1x16x16xf32>,
    %cst_138 = arith.constant 0.000000e+00 : f32
    %681 = vector.broadcast %cst_138 : f32 to vector<16x16xf32>
    %682 = arith.maximumf %666, %681 : vector<16x16xf32>
    %c2_139 = arith.constant 2 : index
    %c1_140 = arith.constant 1 : index
    %c1_141 = arith.constant 1 : index
    %683 = vector.load %arg10[%c2_139, %c1_140, %c1_141] : memref<4x18x18xf32, #tpu.memory_space<vmem>>, vector<1x16x16xf32>
    %684 = vector.shape_cast %683 : vector<1x16x16xf32> to vector<16x16xf32>
    %685 = vector.shape_cast %682 : vector<16x16xf32> to vector<1x16x16xf32>
    tpu.vector_store %arg10[%c2_139, %c1_140, %c1_141], %685 {strides = array<i32>} : memref<4x18x18xf32, #tpu.memory_space<vmem>>, vector<1x16x16xf32>,
    %cst_142 = arith.constant 0.000000e+00 : f32
    %686 = vector.broadcast %cst_142 : f32 to vector<16x16xf32>
    %687 = arith.maximumf %670, %686 : vector<16x16xf32>
    %c3_143 = arith.constant 3 : index
    %c1_144 = arith.constant 1 : index
    %c1_145 = arith.constant 1 : index
    %688 = vector.load %arg10[%c3_143, %c1_144, %c1_145] : memref<4x18x18xf32, #tpu.memory_space<vmem>>, vector<1x16x16xf32>
    %689 = vector.shape_cast %688 : vector<1x16x16xf32> to vector<16x16xf32>
    %690 = vector.shape_cast %687 : vector<16x16xf32> to vector<1x16x16xf32>
    tpu.vector_store %arg10[%c3_143, %c1_144, %c1_145], %690 {strides = array<i32>} : memref<4x18x18xf32, #tpu.memory_space<vmem>>, vector<1x16x16xf32>,
    %cst_146 = arith.constant 0.000000e+00 : f32
    %691 = vector.broadcast %cst_146 : f32 to vector<16x16xf32>
    %c0_147 = arith.constant 0 : index
    %692 = memref.load %arg5[%c0_147] : memref<4xf32, #tpu.memory_space<smem>>
    %693 = vector.broadcast %692 : f32 to vector<16x16xf32>
    %694 = arith.addf %691, %693 : vector<16x16xf32>
    %cst_148 = arith.constant 0.000000e+00 : f32
    %695 = vector.broadcast %cst_148 : f32 to vector<16x16xf32>
    %c1_149 = arith.constant 1 : index
    %696 = memref.load %arg5[%c1_149] : memref<4xf32, #tpu.memory_space<smem>>
    %697 = vector.broadcast %696 : f32 to vector<16x16xf32>
    %698 = arith.addf %695, %697 : vector<16x16xf32>
    %cst_150 = arith.constant 0.000000e+00 : f32
    %699 = vector.broadcast %cst_150 : f32 to vector<16x16xf32>
    %c2_151 = arith.constant 2 : index
    %700 = memref.load %arg5[%c2_151] : memref<4xf32, #tpu.memory_space<smem>>
    %701 = vector.broadcast %700 : f32 to vector<16x16xf32>
    %702 = arith.addf %699, %701 : vector<16x16xf32>
    %cst_152 = arith.constant 0.000000e+00 : f32
    %703 = vector.broadcast %cst_152 : f32 to vector<16x16xf32>
    %c3_153 = arith.constant 3 : index
    %704 = memref.load %arg5[%c3_153] : memref<4xf32, #tpu.memory_space<smem>>
    %705 = vector.broadcast %704 : f32 to vector<16x16xf32>
    %706 = arith.addf %703, %705 : vector<16x16xf32>
    %c0_154 = arith.constant 0 : index
    %c0_155 = arith.constant 0 : index
    %c0_156 = arith.constant 0 : index
    %707 = vector.load %arg10[%c0_154, %c0_155, %c0_156] : memref<4x18x18xf32, #tpu.memory_space<vmem>>, vector<1x16x16xf32>
    %708 = vector.shape_cast %707 : vector<1x16x16xf32> to vector<16x16xf32>
    %c0_157 = arith.constant 0 : index
    %709 = memref.load %arg4[%c0_157] : memref<144xf32, #tpu.memory_space<smem>>
    %710 = vector.broadcast %709 : f32 to vector<16x16xf32>
    %711 = arith.mulf %710, %708 : vector<16x16xf32>
    %712 = arith.addf %694, %711 : vector<16x16xf32>
    %c36_158 = arith.constant 36 : index
    %713 = memref.load %arg4[%c36_158] : memref<144xf32, #tpu.memory_space<smem>>
    %714 = vector.broadcast %713 : f32 to vector<16x16xf32>
    %715 = arith.mulf %714, %708 : vector<16x16xf32>
    %716 = arith.addf %698, %715 : vector<16x16xf32>
    %c72_159 = arith.constant 72 : index
    %717 = memref.load %arg4[%c72_159] : memref<144xf32, #tpu.memory_space<smem>>
    %718 = vector.broadcast %717 : f32 to vector<16x16xf32>
    %719 = arith.mulf %718, %708 : vector<16x16xf32>
    %720 = arith.addf %702, %719 : vector<16x16xf32>
    %c108_160 = arith.constant 108 : index
    %721 = memref.load %arg4[%c108_160] : memref<144xf32, #tpu.memory_space<smem>>
    %722 = vector.broadcast %721 : f32 to vector<16x16xf32>
    %723 = arith.mulf %722, %708 : vector<16x16xf32>
    %724 = arith.addf %706, %723 : vector<16x16xf32>
    %c0_161 = arith.constant 0 : index
    %c0_162 = arith.constant 0 : index
    %c1_163 = arith.constant 1 : index
    %725 = vector.load %arg10[%c0_161, %c0_162, %c1_163] : memref<4x18x18xf32, #tpu.memory_space<vmem>>, vector<1x16x16xf32>
    %726 = vector.shape_cast %725 : vector<1x16x16xf32> to vector<16x16xf32>
    %c1_164 = arith.constant 1 : index
    %727 = memref.load %arg4[%c1_164] : memref<144xf32, #tpu.memory_space<smem>>
    %728 = vector.broadcast %727 : f32 to vector<16x16xf32>
    %729 = arith.mulf %728, %726 : vector<16x16xf32>
    %730 = arith.addf %712, %729 : vector<16x16xf32>
    %c37_165 = arith.constant 37 : index
    %731 = memref.load %arg4[%c37_165] : memref<144xf32, #tpu.memory_space<smem>>
    %732 = vector.broadcast %731 : f32 to vector<16x16xf32>
    %733 = arith.mulf %732, %726 : vector<16x16xf32>
    %734 = arith.addf %716, %733 : vector<16x16xf32>
    %c73_166 = arith.constant 73 : index
    %735 = memref.load %arg4[%c73_166] : memref<144xf32, #tpu.memory_space<smem>>
    %736 = vector.broadcast %735 : f32 to vector<16x16xf32>
    %737 = arith.mulf %736, %726 : vector<16x16xf32>
    %738 = arith.addf %720, %737 : vector<16x16xf32>
    %c109_167 = arith.constant 109 : index
    %739 = memref.load %arg4[%c109_167] : memref<144xf32, #tpu.memory_space<smem>>
    %740 = vector.broadcast %739 : f32 to vector<16x16xf32>
    %741 = arith.mulf %740, %726 : vector<16x16xf32>
    %742 = arith.addf %724, %741 : vector<16x16xf32>
    %c0_168 = arith.constant 0 : index
    %c0_169 = arith.constant 0 : index
    %c2_170 = arith.constant 2 : index
    %743 = vector.load %arg10[%c0_168, %c0_169, %c2_170] : memref<4x18x18xf32, #tpu.memory_space<vmem>>, vector<1x16x16xf32>
    %744 = vector.shape_cast %743 : vector<1x16x16xf32> to vector<16x16xf32>
    %c2_171 = arith.constant 2 : index
    %745 = memref.load %arg4[%c2_171] : memref<144xf32, #tpu.memory_space<smem>>
    %746 = vector.broadcast %745 : f32 to vector<16x16xf32>
    %747 = arith.mulf %746, %744 : vector<16x16xf32>
    %748 = arith.addf %730, %747 : vector<16x16xf32>
    %c38_172 = arith.constant 38 : index
    %749 = memref.load %arg4[%c38_172] : memref<144xf32, #tpu.memory_space<smem>>
    %750 = vector.broadcast %749 : f32 to vector<16x16xf32>
    %751 = arith.mulf %750, %744 : vector<16x16xf32>
    %752 = arith.addf %734, %751 : vector<16x16xf32>
    %c74_173 = arith.constant 74 : index
    %753 = memref.load %arg4[%c74_173] : memref<144xf32, #tpu.memory_space<smem>>
    %754 = vector.broadcast %753 : f32 to vector<16x16xf32>
    %755 = arith.mulf %754, %744 : vector<16x16xf32>
    %756 = arith.addf %738, %755 : vector<16x16xf32>
    %c110_174 = arith.constant 110 : index
    %757 = memref.load %arg4[%c110_174] : memref<144xf32, #tpu.memory_space<smem>>
    %758 = vector.broadcast %757 : f32 to vector<16x16xf32>
    %759 = arith.mulf %758, %744 : vector<16x16xf32>
    %760 = arith.addf %742, %759 : vector<16x16xf32>
    %c0_175 = arith.constant 0 : index
    %c1_176 = arith.constant 1 : index
    %c0_177 = arith.constant 0 : index
    %761 = vector.load %arg10[%c0_175, %c1_176, %c0_177] : memref<4x18x18xf32, #tpu.memory_space<vmem>>, vector<1x16x16xf32>
    %762 = vector.shape_cast %761 : vector<1x16x16xf32> to vector<16x16xf32>
    %c3_178 = arith.constant 3 : index
    %763 = memref.load %arg4[%c3_178] : memref<144xf32, #tpu.memory_space<smem>>
    %764 = vector.broadcast %763 : f32 to vector<16x16xf32>
    %765 = arith.mulf %764, %762 : vector<16x16xf32>
    %766 = arith.addf %748, %765 : vector<16x16xf32>
    %c39_179 = arith.constant 39 : index
    %767 = memref.load %arg4[%c39_179] : memref<144xf32, #tpu.memory_space<smem>>
    %768 = vector.broadcast %767 : f32 to vector<16x16xf32>
    %769 = arith.mulf %768, %762 : vector<16x16xf32>
    %770 = arith.addf %752, %769 : vector<16x16xf32>
    %c75_180 = arith.constant 75 : index
    %771 = memref.load %arg4[%c75_180] : memref<144xf32, #tpu.memory_space<smem>>
    %772 = vector.broadcast %771 : f32 to vector<16x16xf32>
    %773 = arith.mulf %772, %762 : vector<16x16xf32>
    %774 = arith.addf %756, %773 : vector<16x16xf32>
    %c111_181 = arith.constant 111 : index
    %775 = memref.load %arg4[%c111_181] : memref<144xf32, #tpu.memory_space<smem>>
    %776 = vector.broadcast %775 : f32 to vector<16x16xf32>
    %777 = arith.mulf %776, %762 : vector<16x16xf32>
    %778 = arith.addf %760, %777 : vector<16x16xf32>
    %c0_182 = arith.constant 0 : index
    %c1_183 = arith.constant 1 : index
    %c1_184 = arith.constant 1 : index
    %779 = vector.load %arg10[%c0_182, %c1_183, %c1_184] : memref<4x18x18xf32, #tpu.memory_space<vmem>>, vector<1x16x16xf32>
    %780 = vector.shape_cast %779 : vector<1x16x16xf32> to vector<16x16xf32>
    %c4_185 = arith.constant 4 : index
    %781 = memref.load %arg4[%c4_185] : memref<144xf32, #tpu.memory_space<smem>>
    %782 = vector.broadcast %781 : f32 to vector<16x16xf32>
    %783 = arith.mulf %782, %780 : vector<16x16xf32>
    %784 = arith.addf %766, %783 : vector<16x16xf32>
    %c40_186 = arith.constant 40 : index
    %785 = memref.load %arg4[%c40_186] : memref<144xf32, #tpu.memory_space<smem>>
    %786 = vector.broadcast %785 : f32 to vector<16x16xf32>
    %787 = arith.mulf %786, %780 : vector<16x16xf32>
    %788 = arith.addf %770, %787 : vector<16x16xf32>
    %c76_187 = arith.constant 76 : index
    %789 = memref.load %arg4[%c76_187] : memref<144xf32, #tpu.memory_space<smem>>
    %790 = vector.broadcast %789 : f32 to vector<16x16xf32>
    %791 = arith.mulf %790, %780 : vector<16x16xf32>
    %792 = arith.addf %774, %791 : vector<16x16xf32>
    %c112_188 = arith.constant 112 : index
    %793 = memref.load %arg4[%c112_188] : memref<144xf32, #tpu.memory_space<smem>>
    %794 = vector.broadcast %793 : f32 to vector<16x16xf32>
    %795 = arith.mulf %794, %780 : vector<16x16xf32>
    %796 = arith.addf %778, %795 : vector<16x16xf32>
    %c0_189 = arith.constant 0 : index
    %c1_190 = arith.constant 1 : index
    %c2_191 = arith.constant 2 : index
    %797 = vector.load %arg10[%c0_189, %c1_190, %c2_191] : memref<4x18x18xf32, #tpu.memory_space<vmem>>, vector<1x16x16xf32>
    %798 = vector.shape_cast %797 : vector<1x16x16xf32> to vector<16x16xf32>
    %c5_192 = arith.constant 5 : index
    %799 = memref.load %arg4[%c5_192] : memref<144xf32, #tpu.memory_space<smem>>
    %800 = vector.broadcast %799 : f32 to vector<16x16xf32>
    %801 = arith.mulf %800, %798 : vector<16x16xf32>
    %802 = arith.addf %784, %801 : vector<16x16xf32>
    %c41_193 = arith.constant 41 : index
    %803 = memref.load %arg4[%c41_193] : memref<144xf32, #tpu.memory_space<smem>>
    %804 = vector.broadcast %803 : f32 to vector<16x16xf32>
    %805 = arith.mulf %804, %798 : vector<16x16xf32>
    %806 = arith.addf %788, %805 : vector<16x16xf32>
    %c77_194 = arith.constant 77 : index
    %807 = memref.load %arg4[%c77_194] : memref<144xf32, #tpu.memory_space<smem>>
    %808 = vector.broadcast %807 : f32 to vector<16x16xf32>
    %809 = arith.mulf %808, %798 : vector<16x16xf32>
    %810 = arith.addf %792, %809 : vector<16x16xf32>
    %c113_195 = arith.constant 113 : index
    %811 = memref.load %arg4[%c113_195] : memref<144xf32, #tpu.memory_space<smem>>
    %812 = vector.broadcast %811 : f32 to vector<16x16xf32>
    %813 = arith.mulf %812, %798 : vector<16x16xf32>
    %814 = arith.addf %796, %813 : vector<16x16xf32>
    %c0_196 = arith.constant 0 : index
    %c2_197 = arith.constant 2 : index
    %c0_198 = arith.constant 0 : index
    %815 = vector.load %arg10[%c0_196, %c2_197, %c0_198] : memref<4x18x18xf32, #tpu.memory_space<vmem>>, vector<1x16x16xf32>
    %816 = vector.shape_cast %815 : vector<1x16x16xf32> to vector<16x16xf32>
    %c6_199 = arith.constant 6 : index
    %817 = memref.load %arg4[%c6_199] : memref<144xf32, #tpu.memory_space<smem>>
    %818 = vector.broadcast %817 : f32 to vector<16x16xf32>
    %819 = arith.mulf %818, %816 : vector<16x16xf32>
    %820 = arith.addf %802, %819 : vector<16x16xf32>
    %c42_200 = arith.constant 42 : index
    %821 = memref.load %arg4[%c42_200] : memref<144xf32, #tpu.memory_space<smem>>
    %822 = vector.broadcast %821 : f32 to vector<16x16xf32>
    %823 = arith.mulf %822, %816 : vector<16x16xf32>
    %824 = arith.addf %806, %823 : vector<16x16xf32>
    %c78_201 = arith.constant 78 : index
    %825 = memref.load %arg4[%c78_201] : memref<144xf32, #tpu.memory_space<smem>>
    %826 = vector.broadcast %825 : f32 to vector<16x16xf32>
    %827 = arith.mulf %826, %816 : vector<16x16xf32>
    %828 = arith.addf %810, %827 : vector<16x16xf32>
    %c114_202 = arith.constant 114 : index
    %829 = memref.load %arg4[%c114_202] : memref<144xf32, #tpu.memory_space<smem>>
    %830 = vector.broadcast %829 : f32 to vector<16x16xf32>
    %831 = arith.mulf %830, %816 : vector<16x16xf32>
    %832 = arith.addf %814, %831 : vector<16x16xf32>
    %c0_203 = arith.constant 0 : index
    %c2_204 = arith.constant 2 : index
    %c1_205 = arith.constant 1 : index
    %833 = vector.load %arg10[%c0_203, %c2_204, %c1_205] : memref<4x18x18xf32, #tpu.memory_space<vmem>>, vector<1x16x16xf32>
    %834 = vector.shape_cast %833 : vector<1x16x16xf32> to vector<16x16xf32>
    %c7_206 = arith.constant 7 : index
    %835 = memref.load %arg4[%c7_206] : memref<144xf32, #tpu.memory_space<smem>>
    %836 = vector.broadcast %835 : f32 to vector<16x16xf32>
    %837 = arith.mulf %836, %834 : vector<16x16xf32>
    %838 = arith.addf %820, %837 : vector<16x16xf32>
    %c43_207 = arith.constant 43 : index
    %839 = memref.load %arg4[%c43_207] : memref<144xf32, #tpu.memory_space<smem>>
    %840 = vector.broadcast %839 : f32 to vector<16x16xf32>
    %841 = arith.mulf %840, %834 : vector<16x16xf32>
    %842 = arith.addf %824, %841 : vector<16x16xf32>
    %c79_208 = arith.constant 79 : index
    %843 = memref.load %arg4[%c79_208] : memref<144xf32, #tpu.memory_space<smem>>
    %844 = vector.broadcast %843 : f32 to vector<16x16xf32>
    %845 = arith.mulf %844, %834 : vector<16x16xf32>
    %846 = arith.addf %828, %845 : vector<16x16xf32>
    %c115_209 = arith.constant 115 : index
    %847 = memref.load %arg4[%c115_209] : memref<144xf32, #tpu.memory_space<smem>>
    %848 = vector.broadcast %847 : f32 to vector<16x16xf32>
    %849 = arith.mulf %848, %834 : vector<16x16xf32>
    %850 = arith.addf %832, %849 : vector<16x16xf32>
    %c0_210 = arith.constant 0 : index
    %c2_211 = arith.constant 2 : index
    %c2_212 = arith.constant 2 : index
    %851 = vector.load %arg10[%c0_210, %c2_211, %c2_212] : memref<4x18x18xf32, #tpu.memory_space<vmem>>, vector<1x16x16xf32>
    %852 = vector.shape_cast %851 : vector<1x16x16xf32> to vector<16x16xf32>
    %c8_213 = arith.constant 8 : index
    %853 = memref.load %arg4[%c8_213] : memref<144xf32, #tpu.memory_space<smem>>
    %854 = vector.broadcast %853 : f32 to vector<16x16xf32>
    %855 = arith.mulf %854, %852 : vector<16x16xf32>
    %856 = arith.addf %838, %855 : vector<16x16xf32>
    %c44_214 = arith.constant 44 : index
    %857 = memref.load %arg4[%c44_214] : memref<144xf32, #tpu.memory_space<smem>>
    %858 = vector.broadcast %857 : f32 to vector<16x16xf32>
    %859 = arith.mulf %858, %852 : vector<16x16xf32>
    %860 = arith.addf %842, %859 : vector<16x16xf32>
    %c80_215 = arith.constant 80 : index
    %861 = memref.load %arg4[%c80_215] : memref<144xf32, #tpu.memory_space<smem>>
    %862 = vector.broadcast %861 : f32 to vector<16x16xf32>
    %863 = arith.mulf %862, %852 : vector<16x16xf32>
    %864 = arith.addf %846, %863 : vector<16x16xf32>
    %c116_216 = arith.constant 116 : index
    %865 = memref.load %arg4[%c116_216] : memref<144xf32, #tpu.memory_space<smem>>
    %866 = vector.broadcast %865 : f32 to vector<16x16xf32>
    %867 = arith.mulf %866, %852 : vector<16x16xf32>
    %868 = arith.addf %850, %867 : vector<16x16xf32>
    %c1_217 = arith.constant 1 : index
    %c0_218 = arith.constant 0 : index
    %c0_219 = arith.constant 0 : index
    %869 = vector.load %arg10[%c1_217, %c0_218, %c0_219] : memref<4x18x18xf32, #tpu.memory_space<vmem>>, vector<1x16x16xf32>
    %870 = vector.shape_cast %869 : vector<1x16x16xf32> to vector<16x16xf32>
    %c9_220 = arith.constant 9 : index
    %871 = memref.load %arg4[%c9_220] : memref<144xf32, #tpu.memory_space<smem>>
    %872 = vector.broadcast %871 : f32 to vector<16x16xf32>
    %873 = arith.mulf %872, %870 : vector<16x16xf32>
    %874 = arith.addf %856, %873 : vector<16x16xf32>
    %c45_221 = arith.constant 45 : index
    %875 = memref.load %arg4[%c45_221] : memref<144xf32, #tpu.memory_space<smem>>
    %876 = vector.broadcast %875 : f32 to vector<16x16xf32>
    %877 = arith.mulf %876, %870 : vector<16x16xf32>
    %878 = arith.addf %860, %877 : vector<16x16xf32>
    %c81_222 = arith.constant 81 : index
    %879 = memref.load %arg4[%c81_222] : memref<144xf32, #tpu.memory_space<smem>>
    %880 = vector.broadcast %879 : f32 to vector<16x16xf32>
    %881 = arith.mulf %880, %870 : vector<16x16xf32>
    %882 = arith.addf %864, %881 : vector<16x16xf32>
    %c117_223 = arith.constant 117 : index
    %883 = memref.load %arg4[%c117_223] : memref<144xf32, #tpu.memory_space<smem>>
    %884 = vector.broadcast %883 : f32 to vector<16x16xf32>
    %885 = arith.mulf %884, %870 : vector<16x16xf32>
    %886 = arith.addf %868, %885 : vector<16x16xf32>
    %c1_224 = arith.constant 1 : index
    %c0_225 = arith.constant 0 : index
    %c1_226 = arith.constant 1 : index
    %887 = vector.load %arg10[%c1_224, %c0_225, %c1_226] : memref<4x18x18xf32, #tpu.memory_space<vmem>>, vector<1x16x16xf32>
    %888 = vector.shape_cast %887 : vector<1x16x16xf32> to vector<16x16xf32>
    %c10_227 = arith.constant 10 : index
    %889 = memref.load %arg4[%c10_227] : memref<144xf32, #tpu.memory_space<smem>>
    %890 = vector.broadcast %889 : f32 to vector<16x16xf32>
    %891 = arith.mulf %890, %888 : vector<16x16xf32>
    %892 = arith.addf %874, %891 : vector<16x16xf32>
    %c46_228 = arith.constant 46 : index
    %893 = memref.load %arg4[%c46_228] : memref<144xf32, #tpu.memory_space<smem>>
    %894 = vector.broadcast %893 : f32 to vector<16x16xf32>
    %895 = arith.mulf %894, %888 : vector<16x16xf32>
    %896 = arith.addf %878, %895 : vector<16x16xf32>
    %c82_229 = arith.constant 82 : index
    %897 = memref.load %arg4[%c82_229] : memref<144xf32, #tpu.memory_space<smem>>
    %898 = vector.broadcast %897 : f32 to vector<16x16xf32>
    %899 = arith.mulf %898, %888 : vector<16x16xf32>
    %900 = arith.addf %882, %899 : vector<16x16xf32>
    %c118_230 = arith.constant 118 : index
    %901 = memref.load %arg4[%c118_230] : memref<144xf32, #tpu.memory_space<smem>>
    %902 = vector.broadcast %901 : f32 to vector<16x16xf32>
    %903 = arith.mulf %902, %888 : vector<16x16xf32>
    %904 = arith.addf %886, %903 : vector<16x16xf32>
    %c1_231 = arith.constant 1 : index
    %c0_232 = arith.constant 0 : index
    %c2_233 = arith.constant 2 : index
    %905 = vector.load %arg10[%c1_231, %c0_232, %c2_233] : memref<4x18x18xf32, #tpu.memory_space<vmem>>, vector<1x16x16xf32>
    %906 = vector.shape_cast %905 : vector<1x16x16xf32> to vector<16x16xf32>
    %c11_234 = arith.constant 11 : index
    %907 = memref.load %arg4[%c11_234] : memref<144xf32, #tpu.memory_space<smem>>
    %908 = vector.broadcast %907 : f32 to vector<16x16xf32>
    %909 = arith.mulf %908, %906 : vector<16x16xf32>
    %910 = arith.addf %892, %909 : vector<16x16xf32>
    %c47_235 = arith.constant 47 : index
    %911 = memref.load %arg4[%c47_235] : memref<144xf32, #tpu.memory_space<smem>>
    %912 = vector.broadcast %911 : f32 to vector<16x16xf32>
    %913 = arith.mulf %912, %906 : vector<16x16xf32>
    %914 = arith.addf %896, %913 : vector<16x16xf32>
    %c83_236 = arith.constant 83 : index
    %915 = memref.load %arg4[%c83_236] : memref<144xf32, #tpu.memory_space<smem>>
    %916 = vector.broadcast %915 : f32 to vector<16x16xf32>
    %917 = arith.mulf %916, %906 : vector<16x16xf32>
    %918 = arith.addf %900, %917 : vector<16x16xf32>
    %c119_237 = arith.constant 119 : index
    %919 = memref.load %arg4[%c119_237] : memref<144xf32, #tpu.memory_space<smem>>
    %920 = vector.broadcast %919 : f32 to vector<16x16xf32>
    %921 = arith.mulf %920, %906 : vector<16x16xf32>
    %922 = arith.addf %904, %921 : vector<16x16xf32>
    %c1_238 = arith.constant 1 : index
    %c1_239 = arith.constant 1 : index
    %c0_240 = arith.constant 0 : index
    %923 = vector.load %arg10[%c1_238, %c1_239, %c0_240] : memref<4x18x18xf32, #tpu.memory_space<vmem>>, vector<1x16x16xf32>
    %924 = vector.shape_cast %923 : vector<1x16x16xf32> to vector<16x16xf32>
    %c12_241 = arith.constant 12 : index
    %925 = memref.load %arg4[%c12_241] : memref<144xf32, #tpu.memory_space<smem>>
    %926 = vector.broadcast %925 : f32 to vector<16x16xf32>
    %927 = arith.mulf %926, %924 : vector<16x16xf32>
    %928 = arith.addf %910, %927 : vector<16x16xf32>
    %c48_242 = arith.constant 48 : index
    %929 = memref.load %arg4[%c48_242] : memref<144xf32, #tpu.memory_space<smem>>
    %930 = vector.broadcast %929 : f32 to vector<16x16xf32>
    %931 = arith.mulf %930, %924 : vector<16x16xf32>
    %932 = arith.addf %914, %931 : vector<16x16xf32>
    %c84_243 = arith.constant 84 : index
    %933 = memref.load %arg4[%c84_243] : memref<144xf32, #tpu.memory_space<smem>>
    %934 = vector.broadcast %933 : f32 to vector<16x16xf32>
    %935 = arith.mulf %934, %924 : vector<16x16xf32>
    %936 = arith.addf %918, %935 : vector<16x16xf32>
    %c120_244 = arith.constant 120 : index
    %937 = memref.load %arg4[%c120_244] : memref<144xf32, #tpu.memory_space<smem>>
    %938 = vector.broadcast %937 : f32 to vector<16x16xf32>
    %939 = arith.mulf %938, %924 : vector<16x16xf32>
    %940 = arith.addf %922, %939 : vector<16x16xf32>
    %c1_245 = arith.constant 1 : index
    %c1_246 = arith.constant 1 : index
    %c1_247 = arith.constant 1 : index
    %941 = vector.load %arg10[%c1_245, %c1_246, %c1_247] : memref<4x18x18xf32, #tpu.memory_space<vmem>>, vector<1x16x16xf32>
    %942 = vector.shape_cast %941 : vector<1x16x16xf32> to vector<16x16xf32>
    %c13_248 = arith.constant 13 : index
    %943 = memref.load %arg4[%c13_248] : memref<144xf32, #tpu.memory_space<smem>>
    %944 = vector.broadcast %943 : f32 to vector<16x16xf32>
    %945 = arith.mulf %944, %942 : vector<16x16xf32>
    %946 = arith.addf %928, %945 : vector<16x16xf32>
    %c49_249 = arith.constant 49 : index
    %947 = memref.load %arg4[%c49_249] : memref<144xf32, #tpu.memory_space<smem>>
    %948 = vector.broadcast %947 : f32 to vector<16x16xf32>
    %949 = arith.mulf %948, %942 : vector<16x16xf32>
    %950 = arith.addf %932, %949 : vector<16x16xf32>
    %c85_250 = arith.constant 85 : index
    %951 = memref.load %arg4[%c85_250] : memref<144xf32, #tpu.memory_space<smem>>
    %952 = vector.broadcast %951 : f32 to vector<16x16xf32>
    %953 = arith.mulf %952, %942 : vector<16x16xf32>
    %954 = arith.addf %936, %953 : vector<16x16xf32>
    %c121_251 = arith.constant 121 : index
    %955 = memref.load %arg4[%c121_251] : memref<144xf32, #tpu.memory_space<smem>>
    %956 = vector.broadcast %955 : f32 to vector<16x16xf32>
    %957 = arith.mulf %956, %942 : vector<16x16xf32>
    %958 = arith.addf %940, %957 : vector<16x16xf32>
    %c1_252 = arith.constant 1 : index
    %c1_253 = arith.constant 1 : index
    %c2_254 = arith.constant 2 : index
    %959 = vector.load %arg10[%c1_252, %c1_253, %c2_254] : memref<4x18x18xf32, #tpu.memory_space<vmem>>, vector<1x16x16xf32>
    %960 = vector.shape_cast %959 : vector<1x16x16xf32> to vector<16x16xf32>
    %c14_255 = arith.constant 14 : index
    %961 = memref.load %arg4[%c14_255] : memref<144xf32, #tpu.memory_space<smem>>
    %962 = vector.broadcast %961 : f32 to vector<16x16xf32>
    %963 = arith.mulf %962, %960 : vector<16x16xf32>
    %964 = arith.addf %946, %963 : vector<16x16xf32>
    %c50_256 = arith.constant 50 : index
    %965 = memref.load %arg4[%c50_256] : memref<144xf32, #tpu.memory_space<smem>>
    %966 = vector.broadcast %965 : f32 to vector<16x16xf32>
    %967 = arith.mulf %966, %960 : vector<16x16xf32>
    %968 = arith.addf %950, %967 : vector<16x16xf32>
    %c86_257 = arith.constant 86 : index
    %969 = memref.load %arg4[%c86_257] : memref<144xf32, #tpu.memory_space<smem>>
    %970 = vector.broadcast %969 : f32 to vector<16x16xf32>
    %971 = arith.mulf %970, %960 : vector<16x16xf32>
    %972 = arith.addf %954, %971 : vector<16x16xf32>
    %c122_258 = arith.constant 122 : index
    %973 = memref.load %arg4[%c122_258] : memref<144xf32, #tpu.memory_space<smem>>
    %974 = vector.broadcast %973 : f32 to vector<16x16xf32>
    %975 = arith.mulf %974, %960 : vector<16x16xf32>
    %976 = arith.addf %958, %975 : vector<16x16xf32>
    %c1_259 = arith.constant 1 : index
    %c2_260 = arith.constant 2 : index
    %c0_261 = arith.constant 0 : index
    %977 = vector.load %arg10[%c1_259, %c2_260, %c0_261] : memref<4x18x18xf32, #tpu.memory_space<vmem>>, vector<1x16x16xf32>
    %978 = vector.shape_cast %977 : vector<1x16x16xf32> to vector<16x16xf32>
    %c15_262 = arith.constant 15 : index
    %979 = memref.load %arg4[%c15_262] : memref<144xf32, #tpu.memory_space<smem>>
    %980 = vector.broadcast %979 : f32 to vector<16x16xf32>
    %981 = arith.mulf %980, %978 : vector<16x16xf32>
    %982 = arith.addf %964, %981 : vector<16x16xf32>
    %c51_263 = arith.constant 51 : index
    %983 = memref.load %arg4[%c51_263] : memref<144xf32, #tpu.memory_space<smem>>
    %984 = vector.broadcast %983 : f32 to vector<16x16xf32>
    %985 = arith.mulf %984, %978 : vector<16x16xf32>
    %986 = arith.addf %968, %985 : vector<16x16xf32>
    %c87_264 = arith.constant 87 : index
    %987 = memref.load %arg4[%c87_264] : memref<144xf32, #tpu.memory_space<smem>>
    %988 = vector.broadcast %987 : f32 to vector<16x16xf32>
    %989 = arith.mulf %988, %978 : vector<16x16xf32>
    %990 = arith.addf %972, %989 : vector<16x16xf32>
    %c123_265 = arith.constant 123 : index
    %991 = memref.load %arg4[%c123_265] : memref<144xf32, #tpu.memory_space<smem>>
    %992 = vector.broadcast %991 : f32 to vector<16x16xf32>
    %993 = arith.mulf %992, %978 : vector<16x16xf32>
    %994 = arith.addf %976, %993 : vector<16x16xf32>
    %c1_266 = arith.constant 1 : index
    %c2_267 = arith.constant 2 : index
    %c1_268 = arith.constant 1 : index
    %995 = vector.load %arg10[%c1_266, %c2_267, %c1_268] : memref<4x18x18xf32, #tpu.memory_space<vmem>>, vector<1x16x16xf32>
    %996 = vector.shape_cast %995 : vector<1x16x16xf32> to vector<16x16xf32>
    %c16_269 = arith.constant 16 : index
    %997 = memref.load %arg4[%c16_269] : memref<144xf32, #tpu.memory_space<smem>>
    %998 = vector.broadcast %997 : f32 to vector<16x16xf32>
    %999 = arith.mulf %998, %996 : vector<16x16xf32>
    %1000 = arith.addf %982, %999 : vector<16x16xf32>
    %c52_270 = arith.constant 52 : index
    %1001 = memref.load %arg4[%c52_270] : memref<144xf32, #tpu.memory_space<smem>>
    %1002 = vector.broadcast %1001 : f32 to vector<16x16xf32>
    %1003 = arith.mulf %1002, %996 : vector<16x16xf32>
    %1004 = arith.addf %986, %1003 : vector<16x16xf32>
    %c88_271 = arith.constant 88 : index
    %1005 = memref.load %arg4[%c88_271] : memref<144xf32, #tpu.memory_space<smem>>
    %1006 = vector.broadcast %1005 : f32 to vector<16x16xf32>
    %1007 = arith.mulf %1006, %996 : vector<16x16xf32>
    %1008 = arith.addf %990, %1007 : vector<16x16xf32>
    %c124_272 = arith.constant 124 : index
    %1009 = memref.load %arg4[%c124_272] : memref<144xf32, #tpu.memory_space<smem>>
    %1010 = vector.broadcast %1009 : f32 to vector<16x16xf32>
    %1011 = arith.mulf %1010, %996 : vector<16x16xf32>
    %1012 = arith.addf %994, %1011 : vector<16x16xf32>
    %c1_273 = arith.constant 1 : index
    %c2_274 = arith.constant 2 : index
    %c2_275 = arith.constant 2 : index
    %1013 = vector.load %arg10[%c1_273, %c2_274, %c2_275] : memref<4x18x18xf32, #tpu.memory_space<vmem>>, vector<1x16x16xf32>
    %1014 = vector.shape_cast %1013 : vector<1x16x16xf32> to vector<16x16xf32>
    %c17_276 = arith.constant 17 : index
    %1015 = memref.load %arg4[%c17_276] : memref<144xf32, #tpu.memory_space<smem>>
    %1016 = vector.broadcast %1015 : f32 to vector<16x16xf32>
    %1017 = arith.mulf %1016, %1014 : vector<16x16xf32>
    %1018 = arith.addf %1000, %1017 : vector<16x16xf32>
    %c53_277 = arith.constant 53 : index
    %1019 = memref.load %arg4[%c53_277] : memref<144xf32, #tpu.memory_space<smem>>
    %1020 = vector.broadcast %1019 : f32 to vector<16x16xf32>
    %1021 = arith.mulf %1020, %1014 : vector<16x16xf32>
    %1022 = arith.addf %1004, %1021 : vector<16x16xf32>
    %c89_278 = arith.constant 89 : index
    %1023 = memref.load %arg4[%c89_278] : memref<144xf32, #tpu.memory_space<smem>>
    %1024 = vector.broadcast %1023 : f32 to vector<16x16xf32>
    %1025 = arith.mulf %1024, %1014 : vector<16x16xf32>
    %1026 = arith.addf %1008, %1025 : vector<16x16xf32>
    %c125_279 = arith.constant 125 : index
    %1027 = memref.load %arg4[%c125_279] : memref<144xf32, #tpu.memory_space<smem>>
    %1028 = vector.broadcast %1027 : f32 to vector<16x16xf32>
    %1029 = arith.mulf %1028, %1014 : vector<16x16xf32>
    %1030 = arith.addf %1012, %1029 : vector<16x16xf32>
    %c2_280 = arith.constant 2 : index
    %c0_281 = arith.constant 0 : index
    %c0_282 = arith.constant 0 : index
    %1031 = vector.load %arg10[%c2_280, %c0_281, %c0_282] : memref<4x18x18xf32, #tpu.memory_space<vmem>>, vector<1x16x16xf32>
    %1032 = vector.shape_cast %1031 : vector<1x16x16xf32> to vector<16x16xf32>
    %c18_283 = arith.constant 18 : index
    %1033 = memref.load %arg4[%c18_283] : memref<144xf32, #tpu.memory_space<smem>>
    %1034 = vector.broadcast %1033 : f32 to vector<16x16xf32>
    %1035 = arith.mulf %1034, %1032 : vector<16x16xf32>
    %1036 = arith.addf %1018, %1035 : vector<16x16xf32>
    %c54_284 = arith.constant 54 : index
    %1037 = memref.load %arg4[%c54_284] : memref<144xf32, #tpu.memory_space<smem>>
    %1038 = vector.broadcast %1037 : f32 to vector<16x16xf32>
    %1039 = arith.mulf %1038, %1032 : vector<16x16xf32>
    %1040 = arith.addf %1022, %1039 : vector<16x16xf32>
    %c90_285 = arith.constant 90 : index
    %1041 = memref.load %arg4[%c90_285] : memref<144xf32, #tpu.memory_space<smem>>
    %1042 = vector.broadcast %1041 : f32 to vector<16x16xf32>
    %1043 = arith.mulf %1042, %1032 : vector<16x16xf32>
    %1044 = arith.addf %1026, %1043 : vector<16x16xf32>
    %c126_286 = arith.constant 126 : index
    %1045 = memref.load %arg4[%c126_286] : memref<144xf32, #tpu.memory_space<smem>>
    %1046 = vector.broadcast %1045 : f32 to vector<16x16xf32>
    %1047 = arith.mulf %1046, %1032 : vector<16x16xf32>
    %1048 = arith.addf %1030, %1047 : vector<16x16xf32>
    %c2_287 = arith.constant 2 : index
    %c0_288 = arith.constant 0 : index
    %c1_289 = arith.constant 1 : index
    %1049 = vector.load %arg10[%c2_287, %c0_288, %c1_289] : memref<4x18x18xf32, #tpu.memory_space<vmem>>, vector<1x16x16xf32>
    %1050 = vector.shape_cast %1049 : vector<1x16x16xf32> to vector<16x16xf32>
    %c19_290 = arith.constant 19 : index
    %1051 = memref.load %arg4[%c19_290] : memref<144xf32, #tpu.memory_space<smem>>
    %1052 = vector.broadcast %1051 : f32 to vector<16x16xf32>
    %1053 = arith.mulf %1052, %1050 : vector<16x16xf32>
    %1054 = arith.addf %1036, %1053 : vector<16x16xf32>
    %c55_291 = arith.constant 55 : index
    %1055 = memref.load %arg4[%c55_291] : memref<144xf32, #tpu.memory_space<smem>>
    %1056 = vector.broadcast %1055 : f32 to vector<16x16xf32>
    %1057 = arith.mulf %1056, %1050 : vector<16x16xf32>
    %1058 = arith.addf %1040, %1057 : vector<16x16xf32>
    %c91_292 = arith.constant 91 : index
    %1059 = memref.load %arg4[%c91_292] : memref<144xf32, #tpu.memory_space<smem>>
    %1060 = vector.broadcast %1059 : f32 to vector<16x16xf32>
    %1061 = arith.mulf %1060, %1050 : vector<16x16xf32>
    %1062 = arith.addf %1044, %1061 : vector<16x16xf32>
    %c127_293 = arith.constant 127 : index
    %1063 = memref.load %arg4[%c127_293] : memref<144xf32, #tpu.memory_space<smem>>
    %1064 = vector.broadcast %1063 : f32 to vector<16x16xf32>
    %1065 = arith.mulf %1064, %1050 : vector<16x16xf32>
    %1066 = arith.addf %1048, %1065 : vector<16x16xf32>
    %c2_294 = arith.constant 2 : index
    %c0_295 = arith.constant 0 : index
    %c2_296 = arith.constant 2 : index
    %1067 = vector.load %arg10[%c2_294, %c0_295, %c2_296] : memref<4x18x18xf32, #tpu.memory_space<vmem>>, vector<1x16x16xf32>
    %1068 = vector.shape_cast %1067 : vector<1x16x16xf32> to vector<16x16xf32>
    %c20_297 = arith.constant 20 : index
    %1069 = memref.load %arg4[%c20_297] : memref<144xf32, #tpu.memory_space<smem>>
    %1070 = vector.broadcast %1069 : f32 to vector<16x16xf32>
    %1071 = arith.mulf %1070, %1068 : vector<16x16xf32>
    %1072 = arith.addf %1054, %1071 : vector<16x16xf32>
    %c56_298 = arith.constant 56 : index
    %1073 = memref.load %arg4[%c56_298] : memref<144xf32, #tpu.memory_space<smem>>
    %1074 = vector.broadcast %1073 : f32 to vector<16x16xf32>
    %1075 = arith.mulf %1074, %1068 : vector<16x16xf32>
    %1076 = arith.addf %1058, %1075 : vector<16x16xf32>
    %c92_299 = arith.constant 92 : index
    %1077 = memref.load %arg4[%c92_299] : memref<144xf32, #tpu.memory_space<smem>>
    %1078 = vector.broadcast %1077 : f32 to vector<16x16xf32>
    %1079 = arith.mulf %1078, %1068 : vector<16x16xf32>
    %1080 = arith.addf %1062, %1079 : vector<16x16xf32>
    %c128_300 = arith.constant 128 : index
    %1081 = memref.load %arg4[%c128_300] : memref<144xf32, #tpu.memory_space<smem>>
    %1082 = vector.broadcast %1081 : f32 to vector<16x16xf32>
    %1083 = arith.mulf %1082, %1068 : vector<16x16xf32>
    %1084 = arith.addf %1066, %1083 : vector<16x16xf32>
    %c2_301 = arith.constant 2 : index
    %c1_302 = arith.constant 1 : index
    %c0_303 = arith.constant 0 : index
    %1085 = vector.load %arg10[%c2_301, %c1_302, %c0_303] : memref<4x18x18xf32, #tpu.memory_space<vmem>>, vector<1x16x16xf32>
    %1086 = vector.shape_cast %1085 : vector<1x16x16xf32> to vector<16x16xf32>
    %c21_304 = arith.constant 21 : index
    %1087 = memref.load %arg4[%c21_304] : memref<144xf32, #tpu.memory_space<smem>>
    %1088 = vector.broadcast %1087 : f32 to vector<16x16xf32>
    %1089 = arith.mulf %1088, %1086 : vector<16x16xf32>
    %1090 = arith.addf %1072, %1089 : vector<16x16xf32>
    %c57_305 = arith.constant 57 : index
    %1091 = memref.load %arg4[%c57_305] : memref<144xf32, #tpu.memory_space<smem>>
    %1092 = vector.broadcast %1091 : f32 to vector<16x16xf32>
    %1093 = arith.mulf %1092, %1086 : vector<16x16xf32>
    %1094 = arith.addf %1076, %1093 : vector<16x16xf32>
    %c93_306 = arith.constant 93 : index
    %1095 = memref.load %arg4[%c93_306] : memref<144xf32, #tpu.memory_space<smem>>
    %1096 = vector.broadcast %1095 : f32 to vector<16x16xf32>
    %1097 = arith.mulf %1096, %1086 : vector<16x16xf32>
    %1098 = arith.addf %1080, %1097 : vector<16x16xf32>
    %c129_307 = arith.constant 129 : index
    %1099 = memref.load %arg4[%c129_307] : memref<144xf32, #tpu.memory_space<smem>>
    %1100 = vector.broadcast %1099 : f32 to vector<16x16xf32>
    %1101 = arith.mulf %1100, %1086 : vector<16x16xf32>
    %1102 = arith.addf %1084, %1101 : vector<16x16xf32>
    %c2_308 = arith.constant 2 : index
    %c1_309 = arith.constant 1 : index
    %c1_310 = arith.constant 1 : index
    %1103 = vector.load %arg10[%c2_308, %c1_309, %c1_310] : memref<4x18x18xf32, #tpu.memory_space<vmem>>, vector<1x16x16xf32>
    %1104 = vector.shape_cast %1103 : vector<1x16x16xf32> to vector<16x16xf32>
    %c22_311 = arith.constant 22 : index
    %1105 = memref.load %arg4[%c22_311] : memref<144xf32, #tpu.memory_space<smem>>
    %1106 = vector.broadcast %1105 : f32 to vector<16x16xf32>
    %1107 = arith.mulf %1106, %1104 : vector<16x16xf32>
    %1108 = arith.addf %1090, %1107 : vector<16x16xf32>
    %c58_312 = arith.constant 58 : index
    %1109 = memref.load %arg4[%c58_312] : memref<144xf32, #tpu.memory_space<smem>>
    %1110 = vector.broadcast %1109 : f32 to vector<16x16xf32>
    %1111 = arith.mulf %1110, %1104 : vector<16x16xf32>
    %1112 = arith.addf %1094, %1111 : vector<16x16xf32>
    %c94_313 = arith.constant 94 : index
    %1113 = memref.load %arg4[%c94_313] : memref<144xf32, #tpu.memory_space<smem>>
    %1114 = vector.broadcast %1113 : f32 to vector<16x16xf32>
    %1115 = arith.mulf %1114, %1104 : vector<16x16xf32>
    %1116 = arith.addf %1098, %1115 : vector<16x16xf32>
    %c130_314 = arith.constant 130 : index
    %1117 = memref.load %arg4[%c130_314] : memref<144xf32, #tpu.memory_space<smem>>
    %1118 = vector.broadcast %1117 : f32 to vector<16x16xf32>
    %1119 = arith.mulf %1118, %1104 : vector<16x16xf32>
    %1120 = arith.addf %1102, %1119 : vector<16x16xf32>
    %c2_315 = arith.constant 2 : index
    %c1_316 = arith.constant 1 : index
    %c2_317 = arith.constant 2 : index
    %1121 = vector.load %arg10[%c2_315, %c1_316, %c2_317] : memref<4x18x18xf32, #tpu.memory_space<vmem>>, vector<1x16x16xf32>
    %1122 = vector.shape_cast %1121 : vector<1x16x16xf32> to vector<16x16xf32>
    %c23_318 = arith.constant 23 : index
    %1123 = memref.load %arg4[%c23_318] : memref<144xf32, #tpu.memory_space<smem>>
    %1124 = vector.broadcast %1123 : f32 to vector<16x16xf32>
    %1125 = arith.mulf %1124, %1122 : vector<16x16xf32>
    %1126 = arith.addf %1108, %1125 : vector<16x16xf32>
    %c59_319 = arith.constant 59 : index
    %1127 = memref.load %arg4[%c59_319] : memref<144xf32, #tpu.memory_space<smem>>
    %1128 = vector.broadcast %1127 : f32 to vector<16x16xf32>
    %1129 = arith.mulf %1128, %1122 : vector<16x16xf32>
    %1130 = arith.addf %1112, %1129 : vector<16x16xf32>
    %c95_320 = arith.constant 95 : index
    %1131 = memref.load %arg4[%c95_320] : memref<144xf32, #tpu.memory_space<smem>>
    %1132 = vector.broadcast %1131 : f32 to vector<16x16xf32>
    %1133 = arith.mulf %1132, %1122 : vector<16x16xf32>
    %1134 = arith.addf %1116, %1133 : vector<16x16xf32>
    %c131_321 = arith.constant 131 : index
    %1135 = memref.load %arg4[%c131_321] : memref<144xf32, #tpu.memory_space<smem>>
    %1136 = vector.broadcast %1135 : f32 to vector<16x16xf32>
    %1137 = arith.mulf %1136, %1122 : vector<16x16xf32>
    %1138 = arith.addf %1120, %1137 : vector<16x16xf32>
    %c2_322 = arith.constant 2 : index
    %c2_323 = arith.constant 2 : index
    %c0_324 = arith.constant 0 : index
    %1139 = vector.load %arg10[%c2_322, %c2_323, %c0_324] : memref<4x18x18xf32, #tpu.memory_space<vmem>>, vector<1x16x16xf32>
    %1140 = vector.shape_cast %1139 : vector<1x16x16xf32> to vector<16x16xf32>
    %c24_325 = arith.constant 24 : index
    %1141 = memref.load %arg4[%c24_325] : memref<144xf32, #tpu.memory_space<smem>>
    %1142 = vector.broadcast %1141 : f32 to vector<16x16xf32>
    %1143 = arith.mulf %1142, %1140 : vector<16x16xf32>
    %1144 = arith.addf %1126, %1143 : vector<16x16xf32>
    %c60_326 = arith.constant 60 : index
    %1145 = memref.load %arg4[%c60_326] : memref<144xf32, #tpu.memory_space<smem>>
    %1146 = vector.broadcast %1145 : f32 to vector<16x16xf32>
    %1147 = arith.mulf %1146, %1140 : vector<16x16xf32>
    %1148 = arith.addf %1130, %1147 : vector<16x16xf32>
    %c96_327 = arith.constant 96 : index
    %1149 = memref.load %arg4[%c96_327] : memref<144xf32, #tpu.memory_space<smem>>
    %1150 = vector.broadcast %1149 : f32 to vector<16x16xf32>
    %1151 = arith.mulf %1150, %1140 : vector<16x16xf32>
    %1152 = arith.addf %1134, %1151 : vector<16x16xf32>
    %c132_328 = arith.constant 132 : index
    %1153 = memref.load %arg4[%c132_328] : memref<144xf32, #tpu.memory_space<smem>>
    %1154 = vector.broadcast %1153 : f32 to vector<16x16xf32>
    %1155 = arith.mulf %1154, %1140 : vector<16x16xf32>
    %1156 = arith.addf %1138, %1155 : vector<16x16xf32>
    %c2_329 = arith.constant 2 : index
    %c2_330 = arith.constant 2 : index
    %c1_331 = arith.constant 1 : index
    %1157 = vector.load %arg10[%c2_329, %c2_330, %c1_331] : memref<4x18x18xf32, #tpu.memory_space<vmem>>, vector<1x16x16xf32>
    %1158 = vector.shape_cast %1157 : vector<1x16x16xf32> to vector<16x16xf32>
    %c25_332 = arith.constant 25 : index
    %1159 = memref.load %arg4[%c25_332] : memref<144xf32, #tpu.memory_space<smem>>
    %1160 = vector.broadcast %1159 : f32 to vector<16x16xf32>
    %1161 = arith.mulf %1160, %1158 : vector<16x16xf32>
    %1162 = arith.addf %1144, %1161 : vector<16x16xf32>
    %c61_333 = arith.constant 61 : index
    %1163 = memref.load %arg4[%c61_333] : memref<144xf32, #tpu.memory_space<smem>>
    %1164 = vector.broadcast %1163 : f32 to vector<16x16xf32>
    %1165 = arith.mulf %1164, %1158 : vector<16x16xf32>
    %1166 = arith.addf %1148, %1165 : vector<16x16xf32>
    %c97_334 = arith.constant 97 : index
    %1167 = memref.load %arg4[%c97_334] : memref<144xf32, #tpu.memory_space<smem>>
    %1168 = vector.broadcast %1167 : f32 to vector<16x16xf32>
    %1169 = arith.mulf %1168, %1158 : vector<16x16xf32>
    %1170 = arith.addf %1152, %1169 : vector<16x16xf32>
    %c133_335 = arith.constant 133 : index
    %1171 = memref.load %arg4[%c133_335] : memref<144xf32, #tpu.memory_space<smem>>
    %1172 = vector.broadcast %1171 : f32 to vector<16x16xf32>
    %1173 = arith.mulf %1172, %1158 : vector<16x16xf32>
    %1174 = arith.addf %1156, %1173 : vector<16x16xf32>
    %c2_336 = arith.constant 2 : index
    %c2_337 = arith.constant 2 : index
    %c2_338 = arith.constant 2 : index
    %1175 = vector.load %arg10[%c2_336, %c2_337, %c2_338] : memref<4x18x18xf32, #tpu.memory_space<vmem>>, vector<1x16x16xf32>
    %1176 = vector.shape_cast %1175 : vector<1x16x16xf32> to vector<16x16xf32>
    %c26_339 = arith.constant 26 : index
    %1177 = memref.load %arg4[%c26_339] : memref<144xf32, #tpu.memory_space<smem>>
    %1178 = vector.broadcast %1177 : f32 to vector<16x16xf32>
    %1179 = arith.mulf %1178, %1176 : vector<16x16xf32>
    %1180 = arith.addf %1162, %1179 : vector<16x16xf32>
    %c62_340 = arith.constant 62 : index
    %1181 = memref.load %arg4[%c62_340] : memref<144xf32, #tpu.memory_space<smem>>
    %1182 = vector.broadcast %1181 : f32 to vector<16x16xf32>
    %1183 = arith.mulf %1182, %1176 : vector<16x16xf32>
    %1184 = arith.addf %1166, %1183 : vector<16x16xf32>
    %c98_341 = arith.constant 98 : index
    %1185 = memref.load %arg4[%c98_341] : memref<144xf32, #tpu.memory_space<smem>>
    %1186 = vector.broadcast %1185 : f32 to vector<16x16xf32>
    %1187 = arith.mulf %1186, %1176 : vector<16x16xf32>
    %1188 = arith.addf %1170, %1187 : vector<16x16xf32>
    %c134_342 = arith.constant 134 : index
    %1189 = memref.load %arg4[%c134_342] : memref<144xf32, #tpu.memory_space<smem>>
    %1190 = vector.broadcast %1189 : f32 to vector<16x16xf32>
    %1191 = arith.mulf %1190, %1176 : vector<16x16xf32>
    %1192 = arith.addf %1174, %1191 : vector<16x16xf32>
    %c3_343 = arith.constant 3 : index
    %c0_344 = arith.constant 0 : index
    %c0_345 = arith.constant 0 : index
    %1193 = vector.load %arg10[%c3_343, %c0_344, %c0_345] : memref<4x18x18xf32, #tpu.memory_space<vmem>>, vector<1x16x16xf32>
    %1194 = vector.shape_cast %1193 : vector<1x16x16xf32> to vector<16x16xf32>
    %c27_346 = arith.constant 27 : index
    %1195 = memref.load %arg4[%c27_346] : memref<144xf32, #tpu.memory_space<smem>>
    %1196 = vector.broadcast %1195 : f32 to vector<16x16xf32>
    %1197 = arith.mulf %1196, %1194 : vector<16x16xf32>
    %1198 = arith.addf %1180, %1197 : vector<16x16xf32>
    %c63_347 = arith.constant 63 : index
    %1199 = memref.load %arg4[%c63_347] : memref<144xf32, #tpu.memory_space<smem>>
    %1200 = vector.broadcast %1199 : f32 to vector<16x16xf32>
    %1201 = arith.mulf %1200, %1194 : vector<16x16xf32>
    %1202 = arith.addf %1184, %1201 : vector<16x16xf32>
    %c99_348 = arith.constant 99 : index
    %1203 = memref.load %arg4[%c99_348] : memref<144xf32, #tpu.memory_space<smem>>
    %1204 = vector.broadcast %1203 : f32 to vector<16x16xf32>
    %1205 = arith.mulf %1204, %1194 : vector<16x16xf32>
    %1206 = arith.addf %1188, %1205 : vector<16x16xf32>
    %c135_349 = arith.constant 135 : index
    %1207 = memref.load %arg4[%c135_349] : memref<144xf32, #tpu.memory_space<smem>>
    %1208 = vector.broadcast %1207 : f32 to vector<16x16xf32>
    %1209 = arith.mulf %1208, %1194 : vector<16x16xf32>
    %1210 = arith.addf %1192, %1209 : vector<16x16xf32>
    %c3_350 = arith.constant 3 : index
    %c0_351 = arith.constant 0 : index
    %c1_352 = arith.constant 1 : index
    %1211 = vector.load %arg10[%c3_350, %c0_351, %c1_352] : memref<4x18x18xf32, #tpu.memory_space<vmem>>, vector<1x16x16xf32>
    %1212 = vector.shape_cast %1211 : vector<1x16x16xf32> to vector<16x16xf32>
    %c28_353 = arith.constant 28 : index
    %1213 = memref.load %arg4[%c28_353] : memref<144xf32, #tpu.memory_space<smem>>
    %1214 = vector.broadcast %1213 : f32 to vector<16x16xf32>
    %1215 = arith.mulf %1214, %1212 : vector<16x16xf32>
    %1216 = arith.addf %1198, %1215 : vector<16x16xf32>
    %c64_354 = arith.constant 64 : index
    %1217 = memref.load %arg4[%c64_354] : memref<144xf32, #tpu.memory_space<smem>>
    %1218 = vector.broadcast %1217 : f32 to vector<16x16xf32>
    %1219 = arith.mulf %1218, %1212 : vector<16x16xf32>
    %1220 = arith.addf %1202, %1219 : vector<16x16xf32>
    %c100_355 = arith.constant 100 : index
    %1221 = memref.load %arg4[%c100_355] : memref<144xf32, #tpu.memory_space<smem>>
    %1222 = vector.broadcast %1221 : f32 to vector<16x16xf32>
    %1223 = arith.mulf %1222, %1212 : vector<16x16xf32>
    %1224 = arith.addf %1206, %1223 : vector<16x16xf32>
    %c136_356 = arith.constant 136 : index
    %1225 = memref.load %arg4[%c136_356] : memref<144xf32, #tpu.memory_space<smem>>
    %1226 = vector.broadcast %1225 : f32 to vector<16x16xf32>
    %1227 = arith.mulf %1226, %1212 : vector<16x16xf32>
    %1228 = arith.addf %1210, %1227 : vector<16x16xf32>
    %c3_357 = arith.constant 3 : index
    %c0_358 = arith.constant 0 : index
    %c2_359 = arith.constant 2 : index
    %1229 = vector.load %arg10[%c3_357, %c0_358, %c2_359] : memref<4x18x18xf32, #tpu.memory_space<vmem>>, vector<1x16x16xf32>
    %1230 = vector.shape_cast %1229 : vector<1x16x16xf32> to vector<16x16xf32>
    %c29_360 = arith.constant 29 : index
    %1231 = memref.load %arg4[%c29_360] : memref<144xf32, #tpu.memory_space<smem>>
    %1232 = vector.broadcast %1231 : f32 to vector<16x16xf32>
    %1233 = arith.mulf %1232, %1230 : vector<16x16xf32>
    %1234 = arith.addf %1216, %1233 : vector<16x16xf32>
    %c65_361 = arith.constant 65 : index
    %1235 = memref.load %arg4[%c65_361] : memref<144xf32, #tpu.memory_space<smem>>
    %1236 = vector.broadcast %1235 : f32 to vector<16x16xf32>
    %1237 = arith.mulf %1236, %1230 : vector<16x16xf32>
    %1238 = arith.addf %1220, %1237 : vector<16x16xf32>
    %c101_362 = arith.constant 101 : index
    %1239 = memref.load %arg4[%c101_362] : memref<144xf32, #tpu.memory_space<smem>>
    %1240 = vector.broadcast %1239 : f32 to vector<16x16xf32>
    %1241 = arith.mulf %1240, %1230 : vector<16x16xf32>
    %1242 = arith.addf %1224, %1241 : vector<16x16xf32>
    %c137_363 = arith.constant 137 : index
    %1243 = memref.load %arg4[%c137_363] : memref<144xf32, #tpu.memory_space<smem>>
    %1244 = vector.broadcast %1243 : f32 to vector<16x16xf32>
    %1245 = arith.mulf %1244, %1230 : vector<16x16xf32>
    %1246 = arith.addf %1228, %1245 : vector<16x16xf32>
    %c3_364 = arith.constant 3 : index
    %c1_365 = arith.constant 1 : index
    %c0_366 = arith.constant 0 : index
    %1247 = vector.load %arg10[%c3_364, %c1_365, %c0_366] : memref<4x18x18xf32, #tpu.memory_space<vmem>>, vector<1x16x16xf32>
    %1248 = vector.shape_cast %1247 : vector<1x16x16xf32> to vector<16x16xf32>
    %c30_367 = arith.constant 30 : index
    %1249 = memref.load %arg4[%c30_367] : memref<144xf32, #tpu.memory_space<smem>>
    %1250 = vector.broadcast %1249 : f32 to vector<16x16xf32>
    %1251 = arith.mulf %1250, %1248 : vector<16x16xf32>
    %1252 = arith.addf %1234, %1251 : vector<16x16xf32>
    %c66_368 = arith.constant 66 : index
    %1253 = memref.load %arg4[%c66_368] : memref<144xf32, #tpu.memory_space<smem>>
    %1254 = vector.broadcast %1253 : f32 to vector<16x16xf32>
    %1255 = arith.mulf %1254, %1248 : vector<16x16xf32>
    %1256 = arith.addf %1238, %1255 : vector<16x16xf32>
    %c102_369 = arith.constant 102 : index
    %1257 = memref.load %arg4[%c102_369] : memref<144xf32, #tpu.memory_space<smem>>
    %1258 = vector.broadcast %1257 : f32 to vector<16x16xf32>
    %1259 = arith.mulf %1258, %1248 : vector<16x16xf32>
    %1260 = arith.addf %1242, %1259 : vector<16x16xf32>
    %c138_370 = arith.constant 138 : index
    %1261 = memref.load %arg4[%c138_370] : memref<144xf32, #tpu.memory_space<smem>>
    %1262 = vector.broadcast %1261 : f32 to vector<16x16xf32>
    %1263 = arith.mulf %1262, %1248 : vector<16x16xf32>
    %1264 = arith.addf %1246, %1263 : vector<16x16xf32>
    %c3_371 = arith.constant 3 : index
    %c1_372 = arith.constant 1 : index
    %c1_373 = arith.constant 1 : index
    %1265 = vector.load %arg10[%c3_371, %c1_372, %c1_373] : memref<4x18x18xf32, #tpu.memory_space<vmem>>, vector<1x16x16xf32>
    %1266 = vector.shape_cast %1265 : vector<1x16x16xf32> to vector<16x16xf32>
    %c31_374 = arith.constant 31 : index
    %1267 = memref.load %arg4[%c31_374] : memref<144xf32, #tpu.memory_space<smem>>
    %1268 = vector.broadcast %1267 : f32 to vector<16x16xf32>
    %1269 = arith.mulf %1268, %1266 : vector<16x16xf32>
    %1270 = arith.addf %1252, %1269 : vector<16x16xf32>
    %c67_375 = arith.constant 67 : index
    %1271 = memref.load %arg4[%c67_375] : memref<144xf32, #tpu.memory_space<smem>>
    %1272 = vector.broadcast %1271 : f32 to vector<16x16xf32>
    %1273 = arith.mulf %1272, %1266 : vector<16x16xf32>
    %1274 = arith.addf %1256, %1273 : vector<16x16xf32>
    %c103_376 = arith.constant 103 : index
    %1275 = memref.load %arg4[%c103_376] : memref<144xf32, #tpu.memory_space<smem>>
    %1276 = vector.broadcast %1275 : f32 to vector<16x16xf32>
    %1277 = arith.mulf %1276, %1266 : vector<16x16xf32>
    %1278 = arith.addf %1260, %1277 : vector<16x16xf32>
    %c139_377 = arith.constant 139 : index
    %1279 = memref.load %arg4[%c139_377] : memref<144xf32, #tpu.memory_space<smem>>
    %1280 = vector.broadcast %1279 : f32 to vector<16x16xf32>
    %1281 = arith.mulf %1280, %1266 : vector<16x16xf32>
    %1282 = arith.addf %1264, %1281 : vector<16x16xf32>
    %c3_378 = arith.constant 3 : index
    %c1_379 = arith.constant 1 : index
    %c2_380 = arith.constant 2 : index
    %1283 = vector.load %arg10[%c3_378, %c1_379, %c2_380] : memref<4x18x18xf32, #tpu.memory_space<vmem>>, vector<1x16x16xf32>
    %1284 = vector.shape_cast %1283 : vector<1x16x16xf32> to vector<16x16xf32>
    %c32_381 = arith.constant 32 : index
    %1285 = memref.load %arg4[%c32_381] : memref<144xf32, #tpu.memory_space<smem>>
    %1286 = vector.broadcast %1285 : f32 to vector<16x16xf32>
    %1287 = arith.mulf %1286, %1284 : vector<16x16xf32>
    %1288 = arith.addf %1270, %1287 : vector<16x16xf32>
    %c68_382 = arith.constant 68 : index
    %1289 = memref.load %arg4[%c68_382] : memref<144xf32, #tpu.memory_space<smem>>
    %1290 = vector.broadcast %1289 : f32 to vector<16x16xf32>
    %1291 = arith.mulf %1290, %1284 : vector<16x16xf32>
    %1292 = arith.addf %1274, %1291 : vector<16x16xf32>
    %c104_383 = arith.constant 104 : index
    %1293 = memref.load %arg4[%c104_383] : memref<144xf32, #tpu.memory_space<smem>>
    %1294 = vector.broadcast %1293 : f32 to vector<16x16xf32>
    %1295 = arith.mulf %1294, %1284 : vector<16x16xf32>
    %1296 = arith.addf %1278, %1295 : vector<16x16xf32>
    %c140_384 = arith.constant 140 : index
    %1297 = memref.load %arg4[%c140_384] : memref<144xf32, #tpu.memory_space<smem>>
    %1298 = vector.broadcast %1297 : f32 to vector<16x16xf32>
    %1299 = arith.mulf %1298, %1284 : vector<16x16xf32>
    %1300 = arith.addf %1282, %1299 : vector<16x16xf32>
    %c3_385 = arith.constant 3 : index
    %c2_386 = arith.constant 2 : index
    %c0_387 = arith.constant 0 : index
    %1301 = vector.load %arg10[%c3_385, %c2_386, %c0_387] : memref<4x18x18xf32, #tpu.memory_space<vmem>>, vector<1x16x16xf32>
    %1302 = vector.shape_cast %1301 : vector<1x16x16xf32> to vector<16x16xf32>
    %c33_388 = arith.constant 33 : index
    %1303 = memref.load %arg4[%c33_388] : memref<144xf32, #tpu.memory_space<smem>>
    %1304 = vector.broadcast %1303 : f32 to vector<16x16xf32>
    %1305 = arith.mulf %1304, %1302 : vector<16x16xf32>
    %1306 = arith.addf %1288, %1305 : vector<16x16xf32>
    %c69_389 = arith.constant 69 : index
    %1307 = memref.load %arg4[%c69_389] : memref<144xf32, #tpu.memory_space<smem>>
    %1308 = vector.broadcast %1307 : f32 to vector<16x16xf32>
    %1309 = arith.mulf %1308, %1302 : vector<16x16xf32>
    %1310 = arith.addf %1292, %1309 : vector<16x16xf32>
    %c105_390 = arith.constant 105 : index
    %1311 = memref.load %arg4[%c105_390] : memref<144xf32, #tpu.memory_space<smem>>
    %1312 = vector.broadcast %1311 : f32 to vector<16x16xf32>
    %1313 = arith.mulf %1312, %1302 : vector<16x16xf32>
    %1314 = arith.addf %1296, %1313 : vector<16x16xf32>
    %c141_391 = arith.constant 141 : index
    %1315 = memref.load %arg4[%c141_391] : memref<144xf32, #tpu.memory_space<smem>>
    %1316 = vector.broadcast %1315 : f32 to vector<16x16xf32>
    %1317 = arith.mulf %1316, %1302 : vector<16x16xf32>
    %1318 = arith.addf %1300, %1317 : vector<16x16xf32>
    %c3_392 = arith.constant 3 : index
    %c2_393 = arith.constant 2 : index
    %c1_394 = arith.constant 1 : index
    %1319 = vector.load %arg10[%c3_392, %c2_393, %c1_394] : memref<4x18x18xf32, #tpu.memory_space<vmem>>, vector<1x16x16xf32>
    %1320 = vector.shape_cast %1319 : vector<1x16x16xf32> to vector<16x16xf32>
    %c34_395 = arith.constant 34 : index
    %1321 = memref.load %arg4[%c34_395] : memref<144xf32, #tpu.memory_space<smem>>
    %1322 = vector.broadcast %1321 : f32 to vector<16x16xf32>
    %1323 = arith.mulf %1322, %1320 : vector<16x16xf32>
    %1324 = arith.addf %1306, %1323 : vector<16x16xf32>
    %c70_396 = arith.constant 70 : index
    %1325 = memref.load %arg4[%c70_396] : memref<144xf32, #tpu.memory_space<smem>>
    %1326 = vector.broadcast %1325 : f32 to vector<16x16xf32>
    %1327 = arith.mulf %1326, %1320 : vector<16x16xf32>
    %1328 = arith.addf %1310, %1327 : vector<16x16xf32>
    %c106_397 = arith.constant 106 : index
    %1329 = memref.load %arg4[%c106_397] : memref<144xf32, #tpu.memory_space<smem>>
    %1330 = vector.broadcast %1329 : f32 to vector<16x16xf32>
    %1331 = arith.mulf %1330, %1320 : vector<16x16xf32>
    %1332 = arith.addf %1314, %1331 : vector<16x16xf32>
    %c142_398 = arith.constant 142 : index
    %1333 = memref.load %arg4[%c142_398] : memref<144xf32, #tpu.memory_space<smem>>
    %1334 = vector.broadcast %1333 : f32 to vector<16x16xf32>
    %1335 = arith.mulf %1334, %1320 : vector<16x16xf32>
    %1336 = arith.addf %1318, %1335 : vector<16x16xf32>
    %c3_399 = arith.constant 3 : index
    %c2_400 = arith.constant 2 : index
    %c2_401 = arith.constant 2 : index
    %1337 = vector.load %arg10[%c3_399, %c2_400, %c2_401] : memref<4x18x18xf32, #tpu.memory_space<vmem>>, vector<1x16x16xf32>
    %1338 = vector.shape_cast %1337 : vector<1x16x16xf32> to vector<16x16xf32>
    %c35_402 = arith.constant 35 : index
    %1339 = memref.load %arg4[%c35_402] : memref<144xf32, #tpu.memory_space<smem>>
    %1340 = vector.broadcast %1339 : f32 to vector<16x16xf32>
    %1341 = arith.mulf %1340, %1338 : vector<16x16xf32>
    %1342 = arith.addf %1324, %1341 : vector<16x16xf32>
    %c71_403 = arith.constant 71 : index
    %1343 = memref.load %arg4[%c71_403] : memref<144xf32, #tpu.memory_space<smem>>
    %1344 = vector.broadcast %1343 : f32 to vector<16x16xf32>
    %1345 = arith.mulf %1344, %1338 : vector<16x16xf32>
    %1346 = arith.addf %1328, %1345 : vector<16x16xf32>
    %c107_404 = arith.constant 107 : index
    %1347 = memref.load %arg4[%c107_404] : memref<144xf32, #tpu.memory_space<smem>>
    %1348 = vector.broadcast %1347 : f32 to vector<16x16xf32>
    %1349 = arith.mulf %1348, %1338 : vector<16x16xf32>
    %1350 = arith.addf %1332, %1349 : vector<16x16xf32>
    %c143_405 = arith.constant 143 : index
    %1351 = memref.load %arg4[%c143_405] : memref<144xf32, #tpu.memory_space<smem>>
    %1352 = vector.broadcast %1351 : f32 to vector<16x16xf32>
    %1353 = arith.mulf %1352, %1338 : vector<16x16xf32>
    %1354 = arith.addf %1336, %1353 : vector<16x16xf32>
    %cst_406 = arith.constant 0.000000e+00 : f32
    %1355 = vector.broadcast %cst_406 : f32 to vector<16x16xf32>
    %c0_407 = arith.constant 0 : index
    %1356 = memref.load %arg7[%c0_407] : memref<4xf32, #tpu.memory_space<smem>>
    %1357 = vector.broadcast %1356 : f32 to vector<16x16xf32>
    %1358 = arith.addf %1355, %1357 : vector<16x16xf32>
    %cst_408 = arith.constant 0.000000e+00 : f32
    %1359 = vector.broadcast %cst_408 : f32 to vector<16x16xf32>
    %c1_409 = arith.constant 1 : index
    %1360 = memref.load %arg7[%c1_409] : memref<4xf32, #tpu.memory_space<smem>>
    %1361 = vector.broadcast %1360 : f32 to vector<16x16xf32>
    %1362 = arith.addf %1359, %1361 : vector<16x16xf32>
    %cst_410 = arith.constant 0.000000e+00 : f32
    %1363 = vector.broadcast %cst_410 : f32 to vector<16x16xf32>
    %c2_411 = arith.constant 2 : index
    %1364 = memref.load %arg7[%c2_411] : memref<4xf32, #tpu.memory_space<smem>>
    %1365 = vector.broadcast %1364 : f32 to vector<16x16xf32>
    %1366 = arith.addf %1363, %1365 : vector<16x16xf32>
    %cst_412 = arith.constant 0.000000e+00 : f32
    %1367 = vector.broadcast %cst_412 : f32 to vector<16x16xf32>
    %c3_413 = arith.constant 3 : index
    %1368 = memref.load %arg7[%c3_413] : memref<4xf32, #tpu.memory_space<smem>>
    %1369 = vector.broadcast %1368 : f32 to vector<16x16xf32>
    %1370 = arith.addf %1367, %1369 : vector<16x16xf32>
    %c0_414 = arith.constant 0 : index
    %c1_415 = arith.constant 1 : index
    %c1_416 = arith.constant 1 : index
    %1371 = vector.load %arg9[%c0_414, %c1_415, %c1_416] : memref<4x18x18xf32, #tpu.memory_space<vmem>>, vector<1x16x16xf32>
    %1372 = vector.shape_cast %1371 : vector<1x16x16xf32> to vector<16x16xf32>
    %c0_417 = arith.constant 0 : index
    %1373 = memref.load %arg6[%c0_417] : memref<16xf32, #tpu.memory_space<smem>>
    %1374 = vector.broadcast %1373 : f32 to vector<16x16xf32>
    %1375 = arith.mulf %1374, %1372 : vector<16x16xf32>
    %1376 = arith.addf %1358, %1375 : vector<16x16xf32>
    %c4_418 = arith.constant 4 : index
    %1377 = memref.load %arg6[%c4_418] : memref<16xf32, #tpu.memory_space<smem>>
    %1378 = vector.broadcast %1377 : f32 to vector<16x16xf32>
    %1379 = arith.mulf %1378, %1372 : vector<16x16xf32>
    %1380 = arith.addf %1362, %1379 : vector<16x16xf32>
    %c8_419 = arith.constant 8 : index
    %1381 = memref.load %arg6[%c8_419] : memref<16xf32, #tpu.memory_space<smem>>
    %1382 = vector.broadcast %1381 : f32 to vector<16x16xf32>
    %1383 = arith.mulf %1382, %1372 : vector<16x16xf32>
    %1384 = arith.addf %1366, %1383 : vector<16x16xf32>
    %c12_420 = arith.constant 12 : index
    %1385 = memref.load %arg6[%c12_420] : memref<16xf32, #tpu.memory_space<smem>>
    %1386 = vector.broadcast %1385 : f32 to vector<16x16xf32>
    %1387 = arith.mulf %1386, %1372 : vector<16x16xf32>
    %1388 = arith.addf %1370, %1387 : vector<16x16xf32>
    %c1_421 = arith.constant 1 : index
    %c1_422 = arith.constant 1 : index
    %c1_423 = arith.constant 1 : index
    %1389 = vector.load %arg9[%c1_421, %c1_422, %c1_423] : memref<4x18x18xf32, #tpu.memory_space<vmem>>, vector<1x16x16xf32>
    %1390 = vector.shape_cast %1389 : vector<1x16x16xf32> to vector<16x16xf32>
    %c1_424 = arith.constant 1 : index
    %1391 = memref.load %arg6[%c1_424] : memref<16xf32, #tpu.memory_space<smem>>
    %1392 = vector.broadcast %1391 : f32 to vector<16x16xf32>
    %1393 = arith.mulf %1392, %1390 : vector<16x16xf32>
    %1394 = arith.addf %1376, %1393 : vector<16x16xf32>
    %c5_425 = arith.constant 5 : index
    %1395 = memref.load %arg6[%c5_425] : memref<16xf32, #tpu.memory_space<smem>>
    %1396 = vector.broadcast %1395 : f32 to vector<16x16xf32>
    %1397 = arith.mulf %1396, %1390 : vector<16x16xf32>
    %1398 = arith.addf %1380, %1397 : vector<16x16xf32>
    %c9_426 = arith.constant 9 : index
    %1399 = memref.load %arg6[%c9_426] : memref<16xf32, #tpu.memory_space<smem>>
    %1400 = vector.broadcast %1399 : f32 to vector<16x16xf32>
    %1401 = arith.mulf %1400, %1390 : vector<16x16xf32>
    %1402 = arith.addf %1384, %1401 : vector<16x16xf32>
    %c13_427 = arith.constant 13 : index
    %1403 = memref.load %arg6[%c13_427] : memref<16xf32, #tpu.memory_space<smem>>
    %1404 = vector.broadcast %1403 : f32 to vector<16x16xf32>
    %1405 = arith.mulf %1404, %1390 : vector<16x16xf32>
    %1406 = arith.addf %1388, %1405 : vector<16x16xf32>
    %c2_428 = arith.constant 2 : index
    %c1_429 = arith.constant 1 : index
    %c1_430 = arith.constant 1 : index
    %1407 = vector.load %arg9[%c2_428, %c1_429, %c1_430] : memref<4x18x18xf32, #tpu.memory_space<vmem>>, vector<1x16x16xf32>
    %1408 = vector.shape_cast %1407 : vector<1x16x16xf32> to vector<16x16xf32>
    %c2_431 = arith.constant 2 : index
    %1409 = memref.load %arg6[%c2_431] : memref<16xf32, #tpu.memory_space<smem>>
    %1410 = vector.broadcast %1409 : f32 to vector<16x16xf32>
    %1411 = arith.mulf %1410, %1408 : vector<16x16xf32>
    %1412 = arith.addf %1394, %1411 : vector<16x16xf32>
    %c6_432 = arith.constant 6 : index
    %1413 = memref.load %arg6[%c6_432] : memref<16xf32, #tpu.memory_space<smem>>
    %1414 = vector.broadcast %1413 : f32 to vector<16x16xf32>
    %1415 = arith.mulf %1414, %1408 : vector<16x16xf32>
    %1416 = arith.addf %1398, %1415 : vector<16x16xf32>
    %c10_433 = arith.constant 10 : index
    %1417 = memref.load %arg6[%c10_433] : memref<16xf32, #tpu.memory_space<smem>>
    %1418 = vector.broadcast %1417 : f32 to vector<16x16xf32>
    %1419 = arith.mulf %1418, %1408 : vector<16x16xf32>
    %1420 = arith.addf %1402, %1419 : vector<16x16xf32>
    %c14_434 = arith.constant 14 : index
    %1421 = memref.load %arg6[%c14_434] : memref<16xf32, #tpu.memory_space<smem>>
    %1422 = vector.broadcast %1421 : f32 to vector<16x16xf32>
    %1423 = arith.mulf %1422, %1408 : vector<16x16xf32>
    %1424 = arith.addf %1406, %1423 : vector<16x16xf32>
    %c3_435 = arith.constant 3 : index
    %c1_436 = arith.constant 1 : index
    %c1_437 = arith.constant 1 : index
    %1425 = vector.load %arg9[%c3_435, %c1_436, %c1_437] : memref<4x18x18xf32, #tpu.memory_space<vmem>>, vector<1x16x16xf32>
    %1426 = vector.shape_cast %1425 : vector<1x16x16xf32> to vector<16x16xf32>
    %c3_438 = arith.constant 3 : index
    %1427 = memref.load %arg6[%c3_438] : memref<16xf32, #tpu.memory_space<smem>>
    %1428 = vector.broadcast %1427 : f32 to vector<16x16xf32>
    %1429 = arith.mulf %1428, %1426 : vector<16x16xf32>
    %1430 = arith.addf %1412, %1429 : vector<16x16xf32>
    %c7_439 = arith.constant 7 : index
    %1431 = memref.load %arg6[%c7_439] : memref<16xf32, #tpu.memory_space<smem>>
    %1432 = vector.broadcast %1431 : f32 to vector<16x16xf32>
    %1433 = arith.mulf %1432, %1426 : vector<16x16xf32>
    %1434 = arith.addf %1416, %1433 : vector<16x16xf32>
    %c11_440 = arith.constant 11 : index
    %1435 = memref.load %arg6[%c11_440] : memref<16xf32, #tpu.memory_space<smem>>
    %1436 = vector.broadcast %1435 : f32 to vector<16x16xf32>
    %1437 = arith.mulf %1436, %1426 : vector<16x16xf32>
    %1438 = arith.addf %1420, %1437 : vector<16x16xf32>
    %c15_441 = arith.constant 15 : index
    %1439 = memref.load %arg6[%c15_441] : memref<16xf32, #tpu.memory_space<smem>>
    %1440 = vector.broadcast %1439 : f32 to vector<16x16xf32>
    %1441 = arith.mulf %1440, %1426 : vector<16x16xf32>
    %1442 = arith.addf %1424, %1441 : vector<16x16xf32>
    %1443 = arith.addf %1342, %1430 : vector<16x16xf32>
    %cst_442 = arith.constant 0.000000e+00 : f32
    %1444 = vector.broadcast %cst_442 : f32 to vector<16x16xf32>
    %1445 = arith.maximumf %1443, %1444 : vector<16x16xf32>
    %c0_443 = arith.constant 0 : index
    %c0_444 = arith.constant 0 : index
    %c0_445 = arith.constant 0 : index
    %c0_446 = arith.constant 0 : index
    %1446 = vector.load %arg8[%c0_443, %c0_444, %c0_445, %c0_446] : memref<1x4x16x16xf32, #tpu.memory_space<vmem>>, vector<1x1x16x16xf32>
    %1447 = vector.shape_cast %1446 : vector<1x1x16x16xf32> to vector<16x16xf32>
    %1448 = vector.shape_cast %1445 : vector<16x16xf32> to vector<1x1x16x16xf32>
    tpu.vector_store %arg8[%c0_443, %c0_444, %c0_445, %c0_446], %1448 {strides = array<i32>} : memref<1x4x16x16xf32, #tpu.memory_space<vmem>>, vector<1x1x16x16xf32>,
    %1449 = arith.addf %1346, %1434 : vector<16x16xf32>
    %cst_447 = arith.constant 0.000000e+00 : f32
    %1450 = vector.broadcast %cst_447 : f32 to vector<16x16xf32>
    %1451 = arith.maximumf %1449, %1450 : vector<16x16xf32>
    %c0_448 = arith.constant 0 : index
    %c1_449 = arith.constant 1 : index
    %c0_450 = arith.constant 0 : index
    %c0_451 = arith.constant 0 : index
    %1452 = vector.load %arg8[%c0_448, %c1_449, %c0_450, %c0_451] : memref<1x4x16x16xf32, #tpu.memory_space<vmem>>, vector<1x1x16x16xf32>
    %1453 = vector.shape_cast %1452 : vector<1x1x16x16xf32> to vector<16x16xf32>
    %1454 = vector.shape_cast %1451 : vector<16x16xf32> to vector<1x1x16x16xf32>
    tpu.vector_store %arg8[%c0_448, %c1_449, %c0_450, %c0_451], %1454 {strides = array<i32>} : memref<1x4x16x16xf32, #tpu.memory_space<vmem>>, vector<1x1x16x16xf32>,
    %1455 = arith.addf %1350, %1438 : vector<16x16xf32>
    %cst_452 = arith.constant 0.000000e+00 : f32
    %1456 = vector.broadcast %cst_452 : f32 to vector<16x16xf32>
    %1457 = arith.maximumf %1455, %1456 : vector<16x16xf32>
    %c0_453 = arith.constant 0 : index
    %c2_454 = arith.constant 2 : index
    %c0_455 = arith.constant 0 : index
    %c0_456 = arith.constant 0 : index
    %1458 = vector.load %arg8[%c0_453, %c2_454, %c0_455, %c0_456] : memref<1x4x16x16xf32, #tpu.memory_space<vmem>>, vector<1x1x16x16xf32>
    %1459 = vector.shape_cast %1458 : vector<1x1x16x16xf32> to vector<16x16xf32>
    %1460 = vector.shape_cast %1457 : vector<16x16xf32> to vector<1x1x16x16xf32>
    tpu.vector_store %arg8[%c0_453, %c2_454, %c0_455, %c0_456], %1460 {strides = array<i32>} : memref<1x4x16x16xf32, #tpu.memory_space<vmem>>, vector<1x1x16x16xf32>,
    %1461 = arith.addf %1354, %1442 : vector<16x16xf32>
    %cst_457 = arith.constant 0.000000e+00 : f32
    %1462 = vector.broadcast %cst_457 : f32 to vector<16x16xf32>
    %1463 = arith.maximumf %1461, %1462 : vector<16x16xf32>
    %c0_458 = arith.constant 0 : index
    %c3_459 = arith.constant 3 : index
    %c0_460 = arith.constant 0 : index
    %c0_461 = arith.constant 0 : index
    %1464 = vector.load %arg8[%c0_458, %c3_459, %c0_460, %c0_461] : memref<1x4x16x16xf32, #tpu.memory_space<vmem>>, vector<1x1x16x16xf32>
    %1465 = vector.shape_cast %1464 : vector<1x1x16x16xf32> to vector<16x16xf32>
    %1466 = vector.shape_cast %1463 : vector<16x16xf32> to vector<1x1x16x16xf32>
    tpu.vector_store %arg8[%c0_458, %c3_459, %c0_460, %c0_461], %1466 {strides = array<i32>} : memref<1x4x16x16xf32, #tpu.memory_space<vmem>>, vector<1x1x16x16xf32>,
    return
  }
  func.func @transform_0(%arg0: i32) -> (i32, i32, i32, i32) {
    %c0_i32 = arith.constant 0 : i32
    %c0_i32_0 = arith.constant 0 : i32
    %c0_i32_1 = arith.constant 0 : i32
    %c0_i32_2 = arith.constant 0 : i32
    return %arg0, %c0_i32, %c0_i32_0, %c0_i32_1 : i32, i32, i32, i32
  }
  func.func @transform_1(%arg0: i32) -> i32 {
    %c0_i32 = arith.constant 0 : i32
    %c0_i32_0 = arith.constant 0 : i32
    return %c0_i32 : i32
  }
  func.func @transform_2(%arg0: i32) -> i32 {
    %c0_i32 = arith.constant 0 : i32
    %c0_i32_0 = arith.constant 0 : i32
    return %c0_i32 : i32
  }
  func.func @transform_3(%arg0: i32) -> i32 {
    %c0_i32 = arith.constant 0 : i32
    %c0_i32_0 = arith.constant 0 : i32
    return %c0_i32 : i32
  }
  func.func @transform_4(%arg0: i32) -> i32 {
    %c0_i32 = arith.constant 0 : i32
    %c0_i32_0 = arith.constant 0 : i32
    return %c0_i32 : i32
  }
  func.func @transform_5(%arg0: i32) -> i32 {
    %c0_i32 = arith.constant 0 : i32
    %c0_i32_0 = arith.constant 0 : i32
    return %c0_i32 : i32
  }
  func.func @transform_6(%arg0: i32) -> i32 {
    %c0_i32 = arith.constant 0 : i32
    %c0_i32_0 = arith.constant 0 : i32
    return %c0_i32 : i32
  }
  func.func @transform_7(%arg0: i32) -> (i32, i32, i32, i32) {
    %c0_i32 = arith.constant 0 : i32
    %c0_i32_0 = arith.constant 0 : i32
    %c0_i32_1 = arith.constant 0 : i32
    %c0_i32_2 = arith.constant 0 : i32
    return %arg0, %c0_i32, %c0_i32_0, %c0_i32_1 : i32, i32, i32, i32
  }
}

</mosaic_0001>

<llo_original>
// kernel: res_double_conv_forward.1
$region0: #{res_double_conv_forward.1}
  #allocation0 [shape = 'u32[]', space=smem, size = 0x4, offset = 0x4, fixed_abs, tag = 'smem constant byte address 0x4 - core index']
  #allocation1 [shape = 'u32[144,128]{1,0:T(1,128)}', space=vmem, size = 0x12000, scoped, tag = 'internal scratch']
  #allocation2 [shape = 'f32[4,18,18]{2,1,0:T(8,128)}', space=vmem, size = 0xc000, scoped, tag = 'scratch operand']
  #allocation3 [shape = 'f32[4,18,18]{2,1,0:T(8,128)}', space=vmem, size = 0xc000, scoped, tag = 'scratch operand']
  %s0 = inlined_call_operand.vmem [shape: f32[2,4,16,16], index: 0, kind: input, shape index: {}]
  %s1 = inlined_call_operand.vmem [shape: f32[144], index: 1, kind: input, shape index: {}]
  %s2 = inlined_call_operand.vmem [shape: f32[4], index: 2, kind: input, shape index: {}]
  %s3 = inlined_call_operand.vmem [shape: f32[144], index: 3, kind: input, shape index: {}]
  %s4 = inlined_call_operand.vmem [shape: f32[4], index: 4, kind: input, shape index: {}]
  %s5 = inlined_call_operand.vmem [shape: f32[16], index: 5, kind: input, shape index: {}]
  %s6 = inlined_call_operand.vmem [shape: f32[4], index: 6, kind: input, shape index: {}]
  %s7 = inlined_call_operand.hbm [shape: f32[2,4,16,16], index: 7, kind: output, shape index: {}]
  %s8 = sld [smem:[#allocation0]]
  $region85: #{res_double_conv_forward.1} parent=0
    _
  %s10 = ssub.s32 1, %s8
  %s11 = scalar_select 0, %s10, %s8
  $region1: #{res_double_conv_forward.1} parent=0
    #allocation4 [shape = 'u8[1024]{0}', space=smem, size = 0x400, scoped, tag = 'input window, operand 1, single buffered']
    #allocation5 [shape = 's32[2]{0}', space=sflag, size = 0x8, scoped, tag = 'scoped memory for res_double_conv_forward.1']
    #allocation6 [shape = 's32[2]{0}', space=sflag, size = 0x8, scoped, tag = 'scoped memory for res_double_conv_forward.1']
    #allocation7 [shape = 'u8[512]{0}', space=smem, size = 0x200, scoped, tag = 'input window, operand 2, single buffered']
    #allocation8 [shape = 's32[1]{0}', space=sflag, size = 0x4, scoped, tag = 'scoped memory for res_double_conv_forward.1']
    #allocation9 [shape = 'u8[1024]{0}', space=smem, size = 0x400, scoped, tag = 'input window, operand 3, single buffered']
    #allocation10 [shape = 'u8[512]{0}', space=smem, size = 0x200, scoped, tag = 'input window, operand 4, single buffered']
    #allocation11 [shape = 's32[1]{0}', space=sflag, size = 0x4, scoped, tag = 'scoped memory for res_double_conv_forward.1']
    #allocation12 [shape = 'u8[512]{0}', space=smem, size = 0x200, scoped, tag = 'input window, operand 5, single buffered']
    #allocation13 [shape = 'u8[512]{0}', space=smem, size = 0x200, scoped, tag = 'input window, operand 6, single buffered']
    #allocation14 [shape = 's32[1]{0}', space=sflag, size = 0x4, scoped, tag = 'scoped memory for res_double_conv_forward.1']
    #allocation15 [shape = 'u8[65536]{0}', space=vmem, size = 0x10000, scoped, tag = 'output window, operand 0']
    %12 = vsyncpa [#allocation6], 0
    %13 = vsyncpa [#allocation8], 0
    %14 = vsyncpa [#allocation11], 0
    %15 = vsyncpa [#allocation14], 0
    %16 = vsyncpa [#allocation5], 0
    %s17 = scalar_lea.sflag [#allocation5], 1
    %18 = vsyncpa %s17, 0
    loop: start=0, step=1, limit=4
    $region2: #{res_double_conv_forward.1} parent=1 // loop_pre_header
      _
    $region3: #{res_double_conv_forward.1} parent=1 // loop_header
      %s20 = sphi 0, %s24
      %p21 = scmp.ge.s32.totalorder %s20, 4
      %s30 = sphi 0, %s32
      %s33 = sphi 0, %s30
      %s34 = sphi 0, %s33
      %s50 = sphi 0, %s34
      %s54 = sphi 0, %s54
      %s56 = sphi 0, %s54
      %s57 = sphi 0, %s56
      %s71 = sphi 0, %s57
      %s75 = sphi 0, %s75
      %s77 = sphi 0, %s75
      %s78 = sphi 0, %s77
      %s92 = sphi 0, %s78
      %s96 = sphi 0, %s96
      %s98 = sphi 0, %s96
      %s99 = sphi 0, %s98
      %s113 = sphi 0, %s99
      %s117 = sphi 0, %s117
      %s119 = sphi 0, %s117
      %s120 = sphi 0, %s119
      %s134 = sphi 0, %s120
      %s138 = sphi 0, %s138
      %s140 = sphi 0, %s138
      %s141 = sphi 0, %s140
      %s155 = sphi 0, %s141
      %s159 = sphi 0, %s159
      %s161 = sphi 0, %s159
      %s162 = sphi 0, %s161
      %s176 = sphi 0, %s162
      %s182 = sphi 0, %s184
      %s185 = sphi 0, %s182
      %s186 = sphi 0, %s185
      %s202 = sphi 0, %s186
    $region4: #{res_double_conv_forward.1} parent=1 // loop_header_branch
      %23 = sbr.rel (%p21) target = $region8
    $region5: #{res_double_conv_forward.1} parent=1 // loop_body
      %s25 = ssub.s32 %s20, 1
      %s26 = ssub.s32 %s20, 2
      %s27 = sadd.s32 %s20, 1
      %s28 = ssub.s32 %s20, %s27
      %p29 = scmp.eq.s32.totalorder %s28, 0
      %s31 = sadd.s32 %s30, 1
      %s32 = scalar_select %p29, %s30, %s31
      %p35 = pneg %p29
      %p36 = scmp.eq.s32.totalorder %s20, 1
      %p37 = por %p35, %p36
      %p38 = scmp.ne.s32.totalorder %s30, %s33
      %p39 = scmp.eq.s32.totalorder %s20, 0
      %p40 = por %p38, %p39
      %p41 = scmp.ne.s32.totalorder %s30, %s33
      %p42 = scmp.eq.s32.totalorder %s25, 1
      %p43 = por %p41, %p42
      %p44 = scmp.ne.s32.totalorder %s33, %s34
      %p45 = scmp.eq.s32.totalorder %s25, 0
      %p46 = por %p44, %p45
      %p47 = scmp.ne.s32.totalorder %s33, %s34
      %p48 = scmp.eq.s32.totalorder %s26, 1
      %p49 = por %p47, %p48
      %p51 = scmp.ne.s32.totalorder %s34, %s50
      %p52 = scmp.eq.s32.totalorder %s26, 0
      %p53 = por %p51, %p52
      %s55 = sadd.s32 %s54, 1
      %p58 = scmp.eq.s32.totalorder %s20, 1
      %p59 = scmp.ne.s32.totalorder %s54, %s56
      %p60 = scmp.eq.s32.totalorder %s20, 0
      %p61 = por %p59, %p60
      %p62 = scmp.ne.s32.totalorder %s54, %s56
      %p63 = scmp.eq.s32.totalorder %s25, 1
      %p64 = por %p62, %p63
      %p65 = scmp.ne.s32.totalorder %s56, %s57
      %p66 = scmp.eq.s32.totalorder %s25, 0
      %p67 = por %p65, %p66
      %p68 = scmp.ne.s32.totalorder %s56, %s57
      %p69 = scmp.eq.s32.totalorder %s26, 1
      %p70 = por %p68, %p69
      %p72 = scmp.ne.s32.totalorder %s57, %s71
      %p73 = scmp.eq.s32.totalorder %s26, 0
      %p74 = por %p72, %p73
      %s76 = sadd.s32 %s75, 1
      %p79 = scmp.eq.s32.totalorder %s20, 1
      %p80 = scmp.ne.s32.totalorder %s75, %s77
      %p81 = scmp.eq.s32.totalorder %s20, 0
      %p82 = por %p80, %p81
      %p83 = scmp.ne.s32.totalorder %s75, %s77
      %p84 = scmp.eq.s32.totalorder %s25, 1
      %p85 = por %p83, %p84
      %p86 = scmp.ne.s32.totalorder %s77, %s78
      %p87 = scmp.eq.s32.totalorder %s25, 0
      %p88 = por %p86, %p87
      %p89 = scmp.ne.s32.totalorder %s77, %s78
      %p90 = scmp.eq.s32.totalorder %s26, 1
      %p91 = por %p89, %p90
      %p93 = scmp.ne.s32.totalorder %s78, %s92
      %p94 = scmp.eq.s32.totalorder %s26, 0
      %p95 = por %p93, %p94
      %s97 = sadd.s32 %s96, 1
      %p100 = scmp.eq.s32.totalorder %s20, 1
      %p101 = scmp.ne.s32.totalorder %s96, %s98
      %p102 = scmp.eq.s32.totalorder %s20, 0
      %p103 = por %p101, %p102
      %p104 = scmp.ne.s32.totalorder %s96, %s98
      %p105 = scmp.eq.s32.totalorder %s25, 1
      %p106 = por %p104, %p105
      %p107 = scmp.ne.s32.totalorder %s98, %s99
      %p108 = scmp.eq.s32.totalorder %s25, 0
      %p109 = por %p107, %p108
      %p110 = scmp.ne.s32.totalorder %s98, %s99
      %p111 = scmp.eq.s32.totalorder %s26, 1
      %p112 = por %p110, %p111
      %p114 = scmp.ne.s32.totalorder %s99, %s113
      %p115 = scmp.eq.s32.totalorder %s26, 0
      %p116 = por %p114, %p115
      %s118 = sadd.s32 %s117, 1
      %p121 = scmp.eq.s32.totalorder %s20, 1
      %p122 = scmp.ne.s32.totalorder %s117, %s119
      %p123 = scmp.eq.s32.totalorder %s20, 0
      %p124 = por %p122, %p123
      %p125 = scmp.ne.s32.totalorder %s117, %s119
      %p126 = scmp.eq.s32.totalorder %s25, 1
      %p127 = por %p125, %p126
      %p128 = scmp.ne.s32.totalorder %s119, %s120
      %p129 = scmp.eq.s32.totalorder %s25, 0
      %p130 = por %p128, %p129
      %p131 = scmp.ne.s32.totalorder %s119, %s120
      %p132 = scmp.eq.s32.totalorder %s26, 1
      %p133 = por %p131, %p132
      %p135 = scmp.ne.s32.totalorder %s120, %s134
      %p136 = scmp.eq.s32.totalorder %s26, 0
      %p137 = por %p135, %p136
      %s139 = sadd.s32 %s138, 1
      %p142 = scmp.eq.s32.totalorder %s20, 1
      %p143 = scmp.ne.s32.totalorder %s138, %s140
      %p144 = scmp.eq.s32.totalorder %s20, 0
      %p145 = por %p143, %p144
      %p146 = scmp.ne.s32.totalorder %s138, %s140
      %p147 = scmp.eq.s32.totalorder %s25, 1
      %p148 = por %p146, %p147
      %p149 = scmp.ne.s32.totalorder %s140, %s141
      %p150 = scmp.eq.s32.totalorder %s25, 0
      %p151 = por %p149, %p150
      %p152 = scmp.ne.s32.totalorder %s140, %s141
      %p153 = scmp.eq.s32.totalorder %s26, 1
      %p154 = por %p152, %p153
      %p156 = scmp.ne.s32.totalorder %s141, %s155
      %p157 = scmp.eq.s32.totalorder %s26, 0
      %p158 = por %p156, %p157
      %s160 = sadd.s32 %s159, 1
      %p163 = scmp.eq.s32.totalorder %s20, 1
      %p164 = scmp.ne.s32.totalorder %s159, %s161
      %p165 = scmp.eq.s32.totalorder %s20, 0
      %p166 = por %p164, %p165
      %p167 = scmp.ne.s32.totalorder %s159, %s161
      %p168 = scmp.eq.s32.totalorder %s25, 1
      %p169 = por %p167, %p168
      %p170 = scmp.ne.s32.totalorder %s161, %s162
      %p171 = scmp.eq.s32.totalorder %s25, 0
      %p172 = por %p170, %p171
      %p173 = scmp.ne.s32.totalorder %s161, %s162
      %p174 = scmp.eq.s32.totalorder %s26, 1
      %p175 = por %p173, %p174
      %p177 = scmp.ne.s32.totalorder %s162, %s176
      %p178 = scmp.eq.s32.totalorder %s26, 0
      %p179 = por %p177, %p178
      %s180 = ssub.s32 %s20, %s27
      %p181 = scmp.eq.s32.totalorder %s180, 0
      %s183 = sadd.s32 %s182, 1
      %s184 = scalar_select %p181, %s182, %s183
      %p187 = pneg %p181
      %p188 = scmp.eq.s32.totalorder %s20, 1
      %p189 = por %p187, %p188
      %p190 = scmp.ne.s32.totalorder %s182, %s185
      %p191 = scmp.eq.s32.totalorder %s20, 0
      %p192 = por %p190, %p191
      %p193 = scmp.ne.s32.totalorder %s182, %s185
      %p194 = scmp.eq.s32.totalorder %s25, 1
      %p195 = por %p193, %p194
      %p196 = scmp.ne.s32.totalorder %s185, %s186
      %p197 = scmp.eq.s32.totalorder %s25, 0
      %p198 = por %p196, %p197
      %p199 = scmp.ne.s32.totalorder %s185, %s186
      %p200 = scmp.eq.s32.totalorder %s26, 1
      %p201 = por %p199, %p200
      %p203 = scmp.ne.s32.totalorder %s186, %s202
      %p204 = scmp.eq.s32.totalorder %s26, 0
      %p205 = por %p203, %p204
      %p206 = scmp.le.s32.totalorder 1, %s20
      %p207 = scmp.lt.s32.totalorder %s20, 3
      %p208 = pnand %p206, %p207
      %p209 = pneg %p208
      // Predicated region
      $region9: #{res_double_conv_forward.1} parent=5 // pred_check
        _
      $region10: #{res_double_conv_forward.1} parent=5 // pred_check_branch
        %211 = sbr.rel (%p208) target = $region12
      $region11: #{res_double_conv_forward.1} parent=5 // pred_region
        %s212 = ssub.s32 %s20, 1
        // Predicated region
        $region13: #{res_double_conv_forward.1} parent=11 // pred_check
          %p213 = pneg %p67
        $region14: #{res_double_conv_forward.1} parent=11 // pred_check_branch
          %215 = sbr.rel (%p213) target = $region16
        $region15: #{res_double_conv_forward.1} parent=11 // pred_region
          %s217 = ssub.s32 32, 32
          %218 = vsyncadd [#allocation6], %s217
          %s220 = sshll.u32 %s1, 4
          %s221 = int_to_ptr.vmem [resolvable:$true] %s220
          %223 = dma.vmem_to_smem %s221, 32, [#allocation4], [#allocation6]
        $region16: #{res_double_conv_forward.1} parent=11 // pred_fallthru
          _
        // Predicated region
        $region17: #{res_double_conv_forward.1} parent=11 // pred_check
          %p224 = pneg %p88
        $region18: #{res_double_conv_forward.1} parent=11 // pred_check_branch
          %226 = sbr.rel (%p224) target = $region20
        $region19: #{res_double_conv_forward.1} parent=11 // pred_region
          %s228 = ssub.s32 16, 16
          %229 = vsyncadd [#allocation8], %s228
          %s231 = sshll.u32 %s2, 4
          %s232 = int_to_ptr.vmem [resolvable:$true] %s231
          %234 = dma.vmem_to_smem %s232, 16, [#allocation7], [#allocation8]
        $region20: #{res_double_conv_forward.1} parent=11 // pred_fallthru
          _
        // Predicated region
        $region21: #{res_double_conv_forward.1} parent=11 // pred_check
          %p235 = pneg %p109
        $region22: #{res_double_conv_forward.1} parent=11 // pred_check_branch
          %237 = sbr.rel (%p235) target = $region24
        $region23: #{res_double_conv_forward.1} parent=11 // pred_region
          %s239 = ssub.s32 32, 32
          %240 = vsyncadd [#allocation8], %s239
          %s242 = sshll.u32 %s3, 4
          %s243 = int_to_ptr.vmem [resolvable:$true] %s242
          %245 = dma.vmem_to_smem %s243, 32, [#allocation9], [#allocation8]
        $region24: #{res_double_conv_forward.1} parent=11 // pred_fallthru
          _
        // Predicated region
        $region25: #{res_double_conv_forward.1} parent=11 // pred_check
          %p246 = pneg %p130
        $region26: #{res_double_conv_forward.1} parent=11 // pred_check_branch
          %248 = sbr.rel (%p246) target = $region28
        $region27: #{res_double_conv_forward.1} parent=11 // pred_region
          %s250 = ssub.s32 16, 16
          %251 = vsyncadd [#allocation11], %s250
          %s253 = sshll.u32 %s4, 4
          %s254 = int_to_ptr.vmem [resolvable:$true] %s253
          %256 = dma.vmem_to_smem %s254, 16, [#allocation10], [#allocation11]
        $region28: #{res_double_conv_forward.1} parent=11 // pred_fallthru
          _
        // Predicated region
        $region29: #{res_double_conv_forward.1} parent=11 // pred_check
          %p257 = pneg %p151
        $region30: #{res_double_conv_forward.1} parent=11 // pred_check_branch
          %259 = sbr.rel (%p257) target = $region32
        $region31: #{res_double_conv_forward.1} parent=11 // pred_region
          %s261 = ssub.s32 16, 16
          %262 = vsyncadd [#allocation11], %s261
          %s264 = sshll.u32 %s5, 4
          %s265 = int_to_ptr.vmem [resolvable:$true] %s264
          %267 = dma.vmem_to_smem %s265, 16, [#allocation12], [#allocation11]
        $region32: #{res_double_conv_forward.1} parent=11 // pred_fallthru
          _
        // Predicated region
        $region33: #{res_double_conv_forward.1} parent=11 // pred_check
          %p268 = pneg %p172
        $region34: #{res_double_conv_forward.1} parent=11 // pred_check_branch
          %270 = sbr.rel (%p268) target = $region36
        $region35: #{res_double_conv_forward.1} parent=11 // pred_region
          %s272 = ssub.s32 16, 16
          %273 = vsyncadd [#allocation14], %s272
          %s275 = sshll.u32 %s6, 4
          %s276 = int_to_ptr.vmem [resolvable:$true] %s275
          %278 = dma.vmem_to_smem %s276, 16, [#allocation13], [#allocation14]
        $region36: #{res_double_conv_forward.1} parent=11 // pred_fallthru
          _
      $region12: #{res_double_conv_forward.1} parent=5 // pred_fallthru
        _
      %p279 = scmp.lt.s32.totalorder %s20, 2
      // Predicated region
      $region37: #{res_double_conv_forward.1} parent=5 // pred_check
        %p280 = pneg %p279
      $region38: #{res_double_conv_forward.1} parent=5 // pred_check_branch
        %282 = sbr.rel (%p280) target = $region40
      $region39: #{res_double_conv_forward.1} parent=5 // pred_region
        // Predicated region
        $region41: #{res_double_conv_forward.1} parent=39 // pred_check
          %p283 = pneg %p40
        $region42: #{res_double_conv_forward.1} parent=39 // pred_check_branch
          %285 = sbr.rel (%p283) target = $region44
        $region43: #{res_double_conv_forward.1} parent=39 // pred_region
          %p286 = scmp.lt.s32.totalorder %s20, 1
          %s287 = scalar_select %p286, %s20, 1
          %s288 = smul.addr %s287, 8
          %s289 = smul.addr %s288, 8
          %s290 = scalar_lea.vmem %s0, %s289
        $region44: #{res_double_conv_forward.1} parent=39 // pred_fallthru
          _
      $region40: #{res_double_conv_forward.1} parent=5 // pred_fallthru
        _
      %p291 = scmp.le.s32.totalorder 1, %s20
      %p292 = scmp.lt.s32.totalorder %s20, 3
      %p293 = pnand %p291, %p292
      %p294 = pneg %p293
      // Predicated region
      $region45: #{res_double_conv_forward.1} parent=5 // pred_check
        _
      $region46: #{res_double_conv_forward.1} parent=5 // pred_check_branch
        %296 = sbr.rel (%p293) target = $region48
      $region47: #{res_double_conv_forward.1} parent=5 // pred_region
        %s297 = ssub.s32 %s20, 1
        // Predicated region
        $region49: #{res_double_conv_forward.1} parent=47 // pred_check
          %p298 = pneg %p67
        $region50: #{res_double_conv_forward.1} parent=47 // pred_check_branch
          %300 = sbr.rel (%p298) target = $region52
        $region51: #{res_double_conv_forward.1} parent=47 // pred_region
          %301 = dma.done [#allocation6], 32
        $region52: #{res_double_conv_forward.1} parent=47 // pred_fallthru
          _
        // Predicated region
        $region53: #{res_double_conv_forward.1} parent=47 // pred_check
          %p302 = pneg %p88
        $region54: #{res_double_conv_forward.1} parent=47 // pred_check_branch
          %304 = sbr.rel (%p302) target = $region56
        $region55: #{res_double_conv_forward.1} parent=47 // pred_region
          %305 = dma.done [#allocation8], 16
        $region56: #{res_double_conv_forward.1} parent=47 // pred_fallthru
          _
        // Predicated region
        $region57: #{res_double_conv_forward.1} parent=47 // pred_check
          %p306 = pneg %p109
        $region58: #{res_double_conv_forward.1} parent=47 // pred_check_branch
          %308 = sbr.rel (%p306) target = $region60
        $region59: #{res_double_conv_forward.1} parent=47 // pred_region
          %309 = dma.done [#allocation8], 32
        $region60: #{res_double_conv_forward.1} parent=47 // pred_fallthru
          _
        // Predicated region
        $region61: #{res_double_conv_forward.1} parent=47 // pred_check
          %p310 = pneg %p130
        $region62: #{res_double_conv_forward.1} parent=47 // pred_check_branch
          %312 = sbr.rel (%p310) target = $region64
        $region63: #{res_double_conv_forward.1} parent=47 // pred_region
          %313 = dma.done [#allocation11], 16
        $region64: #{res_double_conv_forward.1} parent=47 // pred_fallthru
          _
        // Predicated region
        $region65: #{res_double_conv_forward.1} parent=47 // pred_check
          %p314 = pneg %p151
        $region66: #{res_double_conv_forward.1} parent=47 // pred_check_branch
          %316 = sbr.rel (%p314) target = $region68
        $region67: #{res_double_conv_forward.1} parent=47 // pred_region
          %317 = dma.done [#allocation11], 16
        $region68: #{res_double_conv_forward.1} parent=47 // pred_fallthru
          _
        // Predicated region
        $region69: #{res_double_conv_forward.1} parent=47 // pred_check
          %p318 = pneg %p172
        $region70: #{res_double_conv_forward.1} parent=47 // pred_check_branch
          %320 = sbr.rel (%p318) target = $region72
        $region71: #{res_double_conv_forward.1} parent=47 // pred_region
          %321 = dma.done [#allocation14], 16
        $region72: #{res_double_conv_forward.1} parent=47 // pred_fallthru
          _
        %322 = sfence
        %p323 = scmp.lt.s32.totalorder %s25, 1
        %s324 = scalar_select %p323, %s25, 1
        %s325 = smul.addr %s324, 8
        %s326 = smul.addr %s325, 8
        %s327 = scalar_lea.vmem %s0, %s326
        %p328 = pneg %p46
        %p329 = pneg %p43
        %p330 = pneg %p67
        %p331 = pneg %p64
        %p332 = pneg %p88
        %p333 = pneg %p85
        %p334 = pneg %p109
        %p335 = pneg %p106
        %p336 = pneg %p130
        %p337 = pneg %p127
        %p338 = pneg %p151
        %p339 = pneg %p148
        %p340 = pneg %p172
        %p341 = pneg %p169
        %p342 = pneg %p198
        %p343 = pneg %p195
        %s344 = sand.u32 %s185, 1
        %s345 = scalar_lea.sflag [#allocation5], %s344
        %s346 = sand.u32 %s185, 1
        %s347 = smul.addr %s346, 64
        %s348 = scalar_lea.vmem [#allocation15], %s347
        %p349 = scmp.lt.s32.totalorder %s25, 1
        %s350 = scalar_select %p349, %s25, 1
        %s351 = smul.addr %s350, 8
        %s352 = smul.addr %s351, 8
        %s353 = scalar_lea.vmem %s0, %s352
        %vm354 = vcmask 146432
        %355 = vst.msk [vmem:[#allocation2] sm:$0xff] %vm354, 0.0
        %356 = vst.msk [vmem:[#allocation2 + $0x8] sm:$0xff] %vm354, 0.0
        %vm357 = vcmask 140288
        %358 = vst.msk [vmem:[#allocation2 + $0x10] sm:$0x3] %vm357, 0.0
        %359 = vst.msk [vmem:[#allocation2 + $0x18] sm:$0xff] %vm354, 0.0
        %360 = vst.msk [vmem:[#allocation2 + $0x20] sm:$0xff] %vm354, 0.0
        %361 = vst.msk [vmem:[#allocation2 + $0x28] sm:$0x3] %vm357, 0.0
        %362 = vst.msk [vmem:[#allocation2 + $0x30] sm:$0xff] %vm354, 0.0
        %363 = vst.msk [vmem:[#allocation2 + $0x38] sm:$0xff] %vm354, 0.0
        %364 = vst.msk [vmem:[#allocation2 + $0x40] sm:$0x3] %vm357, 0.0
        %365 = vst.msk [vmem:[#allocation2 + $0x48] sm:$0xff] %vm354, 0.0
        %366 = vst.msk [vmem:[#allocation2 + $0x50] sm:$0xff] %vm354, 0.0
        %367 = vst.msk [vmem:[#allocation2 + $0x58] sm:$0x3] %vm357, 0.0
        %v368 = vld [vmem:[%s353] sm:$0xff]
        %v369 = vld [vmem:[%s353 + $0x8] sm:$0xff]
        %v370 = vld [vmem:[%s353 + $0x10] sm:$0xff]
        %v371 = vld [vmem:[%s353 + $0x18] sm:$0xff]
        %v372 = vld [vmem:[%s353 + $0x20] sm:$0xff]
        %v373 = vld [vmem:[%s353 + $0x28] sm:$0xff]
        %v374 = vld [vmem:[%s353 + $0x30] sm:$0xff]
        %v375 = vld [vmem:[%s353 + $0x38] sm:$0xff]
        %384 = vrot.lane.b32.xlu0 %v368, 1
        %v385 = vpop.permute.xlu0 %384
        %386 = vrot.lane.b32.xlu0 %v369, 1
        %v387 = vpop.permute.xlu0 %386
        %388 = vrot.lane.b32.xlu0 %v370, 1
        %v389 = vpop.permute.xlu0 %388
        %390 = vrot.lane.b32.xlu0 %v371, 1
        %v391 = vpop.permute.xlu0 %390
        %392 = vrot.lane.b32.xlu0 %v372, 1
        %v393 = vpop.permute.xlu0 %392
        %394 = vrot.lane.b32.xlu0 %v373, 1
        %v395 = vpop.permute.xlu0 %394
        %396 = vrot.lane.b32.xlu0 %v374, 1
        %v397 = vpop.permute.xlu0 %396
        %398 = vrot.lane.b32.xlu0 %v375, 1
        %v399 = vpop.permute.xlu0 %398
        %vm408 = vcmask 138248
        %409 = vst.msk [vmem:[#allocation2 + $0x1] sm:$0xff] %vm408, %v385
        %410 = vst.msk [vmem:[#allocation2 + $0x9] sm:$0xff] %vm408, %v387
        %411 = vst.msk [vmem:[#allocation2 + $0x19] sm:$0xff] %vm408, %v389
        %412 = vst.msk [vmem:[#allocation2 + $0x21] sm:$0xff] %vm408, %v391
        %413 = vst.msk [vmem:[#allocation2 + $0x31] sm:$0xff] %vm408, %v393
        %414 = vst.msk [vmem:[#allocation2 + $0x39] sm:$0xff] %vm408, %v395
        %415 = vst.msk [vmem:[#allocation2 + $0x49] sm:$0xff] %vm408, %v397
        %416 = vst.msk [vmem:[#allocation2 + $0x51] sm:$0xff] %vm408, %v399
        %417 = vst.msk [vmem:[#allocation3] sm:$0xff] %vm354, 0.0
        %418 = vst.msk [vmem:[#allocation3 + $0x8] sm:$0xff] %vm354, 0.0
        %419 = vst.msk [vmem:[#allocation3 + $0x10] sm:$0x3] %vm357, 0.0
        %420 = vst.msk [vmem:[#allocation3 + $0x18] sm:$0xff] %vm354, 0.0
        %421 = vst.msk [vmem:[#allocation3 + $0x20] sm:$0xff] %vm354, 0.0
        %422 = vst.msk [vmem:[#allocation3 + $0x28] sm:$0x3] %vm357, 0.0
        %423 = vst.msk [vmem:[#allocation3 + $0x30] sm:$0xff] %vm354, 0.0
        %424 = vst.msk [vmem:[#allocation3 + $0x38] sm:$0xff] %vm354, 0.0
        %425 = vst.msk [vmem:[#allocation3 + $0x40] sm:$0x3] %vm357, 0.0
        %426 = vst.msk [vmem:[#allocation3 + $0x48] sm:$0xff] %vm354, 0.0
        %427 = vst.msk [vmem:[#allocation3 + $0x50] sm:$0xff] %vm354, 0.0
        %428 = vst.msk [vmem:[#allocation3 + $0x58] sm:$0x3] %vm357, 0.0
        %s429 = sld [smem:[#allocation7]]
        %v430 = vstv %s429
        %v431 = vadd.f32 %v430, 0.0
        %s432 = sld [smem:[#allocation7 + $0x1]]
        %v433 = vstv %s432
        %v434 = vadd.f32 %v433, 0.0
        %s435 = sld [smem:[#allocation7 + $0x2]]
        %v436 = vstv %s435
        %v437 = vadd.f32 %v436, 0.0
        %s438 = sld [smem:[#allocation7 + $0x3]]
        %v439 = vstv %s438
        %v440 = vadd.f32 %v439, 0.0
        %v441 = vld [vmem:[#allocation2] sm:$0xff]
        %v442 = vld [vmem:[#allocation2 + $0x8] sm:$0xff]
        %s443 = sld [smem:[#allocation4]]
        %v444 = vstv %s443
        %v445 = vmul.f32 %v444, %v441
        %v446 = vmul.f32 %v444, %v442
        %v447 = vadd.f32 %v431, %v445
        %v448 = vadd.f32 %v431, %v446
        %s449 = sld [smem:[#allocation4 + $0x24]]
        %v450 = vstv %s449
        %v451 = vmul.f32 %v450, %v441
        %v452 = vmul.f32 %v450, %v442
        %v453 = vadd.f32 %v434, %v451
        %v454 = vadd.f32 %v434, %v452
        %s455 = sld [smem:[#allocation4 + $0x48]]
        %v456 = vstv %s455
        %v457 = vmul.f32 %v456, %v441
        %v458 = vmul.f32 %v456, %v442
        %v459 = vadd.f32 %v437, %v457
        %v460 = vadd.f32 %v437, %v458
        %s461 = sld [smem:[#allocation4 + $0x6c]]
        %v462 = vstv %s461
        %v463 = vmul.f32 %v462, %v441
        %v464 = vmul.f32 %v462, %v442
        %v465 = vadd.f32 %v440, %v463
        %v466 = vadd.f32 %v440, %v464
        %s467 = sld [smem:[#allocation4 + $0x1]]
        %v468 = vstv %s467
        %v469 = vmul.f32 %v468, %v441
        %v470 = vmul.f32 %v468, %v442
        %473 = vrot.lane.b32.xlu0 %v469, 127
        %v474 = vpop.permute.xlu0 %473
        %475 = vrot.lane.b32.xlu0 %v470, 127
        %v476 = vpop.permute.xlu0 %475
        %v479 = vadd.f32 %v447, %v474
        %v480 = vadd.f32 %v448, %v476
        %s481 = sld [smem:[#allocation4 + $0x25]]
        %v482 = vstv %s481
        %v483 = vmul.f32 %v482, %v441
        %v484 = vmul.f32 %v482, %v442
        %487 = vrot.lane.b32.xlu0 %v483, 127
        %v488 = vpop.permute.xlu0 %487
        %489 = vrot.lane.b32.xlu0 %v484, 127
        %v490 = vpop.permute.xlu0 %489
        %v493 = vadd.f32 %v453, %v488
        %v494 = vadd.f32 %v454, %v490
        %s495 = sld [smem:[#allocation4 + $0x49]]
        %v496 = vstv %s495
        %v497 = vmul.f32 %v496, %v441
        %v498 = vmul.f32 %v496, %v442
        %501 = vrot.lane.b32.xlu0 %v497, 127
        %v502 = vpop.permute.xlu0 %501
        %503 = vrot.lane.b32.xlu0 %v498, 127
        %v504 = vpop.permute.xlu0 %503
        %v507 = vadd.f32 %v459, %v502
        %v508 = vadd.f32 %v460, %v504
        %s509 = sld [smem:[#allocation4 + $0x6d]]
        %v510 = vstv %s509
        %v511 = vmul.f32 %v510, %v441
        %v512 = vmul.f32 %v510, %v442
        %515 = vrot.lane.b32.xlu0 %v511, 127
        %v516 = vpop.permute.xlu0 %515
        %517 = vrot.lane.b32.xlu0 %v512, 127
        %v518 = vpop.permute.xlu0 %517
        %v521 = vadd.f32 %v465, %v516
        %v522 = vadd.f32 %v466, %v518
        %s523 = sld [smem:[#allocation4 + $0x2]]
        %v524 = vstv %s523
        %v525 = vmul.f32 %v524, %v441
        %v526 = vmul.f32 %v524, %v442
        %529 = vrot.lane.b32.xlu0 %v525, 126
        %v530 = vpop.permute.xlu0 %529
        %531 = vrot.lane.b32.xlu0 %v526, 126
        %v532 = vpop.permute.xlu0 %531
        %v535 = vadd.f32 %v479, %v530
        %v536 = vadd.f32 %v480, %v532
        %s537 = sld [smem:[#allocation4 + $0x26]]
        %v538 = vstv %s537
        %v539 = vmul.f32 %v538, %v441
        %v540 = vmul.f32 %v538, %v442
        %543 = vrot.lane.b32.xlu0 %v539, 126
        %v544 = vpop.permute.xlu0 %543
        %545 = vrot.lane.b32.xlu0 %v540, 126
        %v546 = vpop.permute.xlu0 %545
        %v549 = vadd.f32 %v493, %v544
        %v550 = vadd.f32 %v494, %v546
        %s551 = sld [smem:[#allocation4 + $0x4a]]
        %v552 = vstv %s551
        %v553 = vmul.f32 %v552, %v441
        %v554 = vmul.f32 %v552, %v442
        %557 = vrot.lane.b32.xlu0 %v553, 126
        %v558 = vpop.permute.xlu0 %557
        %559 = vrot.lane.b32.xlu0 %v554, 126
        %v560 = vpop.permute.xlu0 %559
        %v563 = vadd.f32 %v507, %v558
        %v564 = vadd.f32 %v508, %v560
        %s565 = sld [smem:[#allocation4 + $0x6e]]
        %v566 = vstv %s565
        %v567 = vmul.f32 %v566, %v441
        %v568 = vmul.f32 %v566, %v442
        %571 = vrot.lane.b32.xlu0 %v567, 126
        %v572 = vpop.permute.xlu0 %571
        %573 = vrot.lane.b32.xlu0 %v568, 126
        %v574 = vpop.permute.xlu0 %573
        %v577 = vadd.f32 %v521, %v572
        %v578 = vadd.f32 %v522, %v574
        %v579 = vld [vmem:[#allocation2 + $0x1] sm:$0xff]
        %v580 = vld [vmem:[#allocation2 + $0x9] sm:$0xff]
        %s581 = sld [smem:[#allocation4 + $0x3]]
        %v582 = vstv %s581
        %v583 = vmul.f32 %v582, %v579
        %v584 = vmul.f32 %v582, %v580
        %v585 = vadd.f32 %v535, %v583
        %v586 = vadd.f32 %v536, %v584
        %s587 = sld [smem:[#allocation4 + $0x27]]
        %v588 = vstv %s587
        %v589 = vmul.f32 %v588, %v579
        %v590 = vmul.f32 %v588, %v580
        %v591 = vadd.f32 %v549, %v589
        %v592 = vadd.f32 %v550, %v590
        %s593 = sld [smem:[#allocation4 + $0x4b]]
        %v594 = vstv %s593
        %v595 = vmul.f32 %v594, %v579
        %v596 = vmul.f32 %v594, %v580
        %v597 = vadd.f32 %v563, %v595
        %v598 = vadd.f32 %v564, %v596
        %s599 = sld [smem:[#allocation4 + $0x6f]]
        %v600 = vstv %s599
        %v601 = vmul.f32 %v600, %v579
        %v602 = vmul.f32 %v600, %v580
        %v603 = vadd.f32 %v577, %v601
        %v604 = vadd.f32 %v578, %v602
        %s605 = sld [smem:[#allocation4 + $0x4]]
        %v606 = vstv %s605
        %v607 = vmul.f32 %v606, %v579
        %v608 = vmul.f32 %v606, %v580
        %611 = vrot.lane.b32.xlu0 %v607, 127
        %v612 = vpop.permute.xlu0 %611
        %613 = vrot.lane.b32.xlu0 %v608, 127
        %v614 = vpop.permute.xlu0 %613
        %v617 = vadd.f32 %v585, %v612
        %v618 = vadd.f32 %v586, %v614
        %s619 = sld [smem:[#allocation4 + $0x28]]
        %v620 = vstv %s619
        %v621 = vmul.f32 %v620, %v579
        %v622 = vmul.f32 %v620, %v580
        %625 = vrot.lane.b32.xlu0 %v621, 127
        %v626 = vpop.permute.xlu0 %625
        %627 = vrot.lane.b32.xlu0 %v622, 127
        %v628 = vpop.permute.xlu0 %627
        %v631 = vadd.f32 %v591, %v626
        %v632 = vadd.f32 %v592, %v628
        %s633 = sld [smem:[#allocation4 + $0x4c]]
        %v634 = vstv %s633
        %v635 = vmul.f32 %v634, %v579
        %v636 = vmul.f32 %v634, %v580
        %639 = vrot.lane.b32.xlu0 %v635, 127
        %v640 = vpop.permute.xlu0 %639
        %641 = vrot.lane.b32.xlu0 %v636, 127
        %v642 = vpop.permute.xlu0 %641
        %v645 = vadd.f32 %v597, %v640
        %v646 = vadd.f32 %v598, %v642
        %s647 = sld [smem:[#allocation4 + $0x70]]
        %v648 = vstv %s647
        %v649 = vmul.f32 %v648, %v579
        %v650 = vmul.f32 %v648, %v580
        %653 = vrot.lane.b32.xlu0 %v649, 127
        %v654 = vpop.permute.xlu0 %653
        %655 = vrot.lane.b32.xlu0 %v650, 127
        %v656 = vpop.permute.xlu0 %655
        %v659 = vadd.f32 %v603, %v654
        %v660 = vadd.f32 %v604, %v656
        %s661 = sld [smem:[#allocation4 + $0x5]]
        %v662 = vstv %s661
        %v663 = vmul.f32 %v662, %v579
        %v664 = vmul.f32 %v662, %v580
        %667 = vrot.lane.b32.xlu0 %v663, 126
        %v668 = vpop.permute.xlu0 %667
        %669 = vrot.lane.b32.xlu0 %v664, 126
        %v670 = vpop.permute.xlu0 %669
        %v673 = vadd.f32 %v617, %v668
        %v674 = vadd.f32 %v618, %v670
        %s675 = sld [smem:[#allocation4 + $0x29]]
        %v676 = vstv %s675
        %v677 = vmul.f32 %v676, %v579
        %v678 = vmul.f32 %v676, %v580
        %681 = vrot.lane.b32.xlu0 %v677, 126
        %v682 = vpop.permute.xlu0 %681
        %683 = vrot.lane.b32.xlu0 %v678, 126
        %v684 = vpop.permute.xlu0 %683
        %v687 = vadd.f32 %v631, %v682
        %v688 = vadd.f32 %v632, %v684
        %s689 = sld [smem:[#allocation4 + $0x4d]]
        %v690 = vstv %s689
        %v691 = vmul.f32 %v690, %v579
        %v692 = vmul.f32 %v690, %v580
        %695 = vrot.lane.b32.xlu0 %v691, 126
        %v696 = vpop.permute.xlu0 %695
        %697 = vrot.lane.b32.xlu0 %v692, 126
        %v698 = vpop.permute.xlu0 %697
        %v701 = vadd.f32 %v645, %v696
        %v702 = vadd.f32 %v646, %v698
        %s703 = sld [smem:[#allocation4 + $0x71]]
        %v704 = vstv %s703
        %v705 = vmul.f32 %v704, %v579
        %v706 = vmul.f32 %v704, %v580
        %709 = vrot.lane.b32.xlu0 %v705, 126
        %v710 = vpop.permute.xlu0 %709
        %711 = vrot.lane.b32.xlu0 %v706, 126
        %v712 = vpop.permute.xlu0 %711
        %v715 = vadd.f32 %v659, %v710
        %v716 = vadd.f32 %v660, %v712
        %v717 = vld [vmem:[#allocation2 + $0x2] sm:$0xff]
        %v718 = vld [vmem:[#allocation2 + $0xa] sm:$0xff]
        %s719 = sld [smem:[#allocation4 + $0x6]]
        %v720 = vstv %s719
        %v721 = vmul.f32 %v720, %v717
        %v722 = vmul.f32 %v720, %v718
        %v723 = vadd.f32 %v673, %v721
        %v724 = vadd.f32 %v674, %v722
        %s725 = sld [smem:[#allocation4 + $0x2a]]
        %v726 = vstv %s725
        %v727 = vmul.f32 %v726, %v717
        %v728 = vmul.f32 %v726, %v718
        %v729 = vadd.f32 %v687, %v727
        %v730 = vadd.f32 %v688, %v728
        %s731 = sld [smem:[#allocation4 + $0x4e]]
        %v732 = vstv %s731
        %v733 = vmul.f32 %v732, %v717
        %v734 = vmul.f32 %v732, %v718
        %v735 = vadd.f32 %v701, %v733
        %v736 = vadd.f32 %v702, %v734
        %s737 = sld [smem:[#allocation4 + $0x72]]
        %v738 = vstv %s737
        %v739 = vmul.f32 %v738, %v717
        %v740 = vmul.f32 %v738, %v718
        %v741 = vadd.f32 %v715, %v739
        %v742 = vadd.f32 %v716, %v740
        %s743 = sld [smem:[#allocation4 + $0x7]]
        %v744 = vstv %s743
        %v745 = vmul.f32 %v744, %v717
        %v746 = vmul.f32 %v744, %v718
        %749 = vrot.lane.b32.xlu0 %v745, 127
        %v750 = vpop.permute.xlu0 %749
        %751 = vrot.lane.b32.xlu0 %v746, 127
        %v752 = vpop.permute.xlu0 %751
        %v755 = vadd.f32 %v723, %v750
        %v756 = vadd.f32 %v724, %v752
        %s757 = sld [smem:[#allocation4 + $0x2b]]
        %v758 = vstv %s757
        %v759 = vmul.f32 %v758, %v717
        %v760 = vmul.f32 %v758, %v718
        %763 = vrot.lane.b32.xlu0 %v759, 127
        %v764 = vpop.permute.xlu0 %763
        %765 = vrot.lane.b32.xlu0 %v760, 127
        %v766 = vpop.permute.xlu0 %765
        %v769 = vadd.f32 %v729, %v764
        %v770 = vadd.f32 %v730, %v766
        %s771 = sld [smem:[#allocation4 + $0x4f]]
        %v772 = vstv %s771
        %v773 = vmul.f32 %v772, %v717
        %v774 = vmul.f32 %v772, %v718
        %777 = vrot.lane.b32.xlu0 %v773, 127
        %v778 = vpop.permute.xlu0 %777
        %779 = vrot.lane.b32.xlu0 %v774, 127
        %v780 = vpop.permute.xlu0 %779
        %v783 = vadd.f32 %v735, %v778
        %v784 = vadd.f32 %v736, %v780
        %s785 = sld [smem:[#allocation4 + $0x73]]
        %v786 = vstv %s785
        %v787 = vmul.f32 %v786, %v717
        %v788 = vmul.f32 %v786, %v718
        %791 = vrot.lane.b32.xlu0 %v787, 127
        %v792 = vpop.permute.xlu0 %791
        %793 = vrot.lane.b32.xlu0 %v788, 127
        %v794 = vpop.permute.xlu0 %793
        %v797 = vadd.f32 %v741, %v792
        %v798 = vadd.f32 %v742, %v794
        %s799 = sld [smem:[#allocation4 + $0x8]]
        %v800 = vstv %s799
        %v801 = vmul.f32 %v800, %v717
        %v802 = vmul.f32 %v800, %v718
        %805 = vrot.lane.b32.xlu0 %v801, 126
        %v806 = vpop.permute.xlu0 %805
        %807 = vrot.lane.b32.xlu0 %v802, 126
        %v808 = vpop.permute.xlu0 %807
        %v811 = vadd.f32 %v755, %v806
        %v812 = vadd.f32 %v756, %v808
        %s813 = sld [smem:[#allocation4 + $0x2c]]
        %v814 = vstv %s813
        %v815 = vmul.f32 %v814, %v717
        %v816 = vmul.f32 %v814, %v718
        %819 = vrot.lane.b32.xlu0 %v815, 126
        %v820 = vpop.permute.xlu0 %819
        %821 = vrot.lane.b32.xlu0 %v816, 126
        %v822 = vpop.permute.xlu0 %821
        %v825 = vadd.f32 %v769, %v820
        %v826 = vadd.f32 %v770, %v822
        %s827 = sld [smem:[#allocation4 + $0x50]]
        %v828 = vstv %s827
        %v829 = vmul.f32 %v828, %v717
        %v830 = vmul.f32 %v828, %v718
        %833 = vrot.lane.b32.xlu0 %v829, 126
        %v834 = vpop.permute.xlu0 %833
        %835 = vrot.lane.b32.xlu0 %v830, 126
        %v836 = vpop.permute.xlu0 %835
        %v839 = vadd.f32 %v783, %v834
        %v840 = vadd.f32 %v784, %v836
        %s841 = sld [smem:[#allocation4 + $0x74]]
        %v842 = vstv %s841
        %v843 = vmul.f32 %v842, %v717
        %v844 = vmul.f32 %v842, %v718
        %847 = vrot.lane.b32.xlu0 %v843, 126
        %v848 = vpop.permute.xlu0 %847
        %849 = vrot.lane.b32.xlu0 %v844, 126
        %v850 = vpop.permute.xlu0 %849
        %v853 = vadd.f32 %v797, %v848
        %v854 = vadd.f32 %v798, %v850
        %s855 = scalar_lea.vmem [#allocation2], 24
        %v856 = vld [vmem:[%s855] sm:$0xff]
        %v857 = vld [vmem:[%s855 + $0x8] sm:$0xff]
        %s858 = sld [smem:[#allocation4 + $0x9]]
        %v859 = vstv %s858
        %v860 = vmul.f32 %v859, %v856
        %v861 = vmul.f32 %v859, %v857
        %v862 = vadd.f32 %v811, %v860
        %v863 = vadd.f32 %v812, %v861
        %s864 = sld [smem:[#allocation4 + $0x2d]]
        %v865 = vstv %s864
        %v866 = vmul.f32 %v865, %v856
        %v867 = vmul.f32 %v865, %v857
        %v868 = vadd.f32 %v825, %v866
        %v869 = vadd.f32 %v826, %v867
        %s870 = sld [smem:[#allocation4 + $0x51]]
        %v871 = vstv %s870
        %v872 = vmul.f32 %v871, %v856
        %v873 = vmul.f32 %v871, %v857
        %v874 = vadd.f32 %v839, %v872
        %v875 = vadd.f32 %v840, %v873
        %s876 = sld [smem:[#allocation4 + $0x75]]
        %v877 = vstv %s876
        %v878 = vmul.f32 %v877, %v856
        %v879 = vmul.f32 %v877, %v857
        %v880 = vadd.f32 %v853, %v878
        %v881 = vadd.f32 %v854, %v879
        %s882 = sld [smem:[#allocation4 + $0xa]]
        %v883 = vstv %s882
        %v884 = vmul.f32 %v883, %v856
        %v885 = vmul.f32 %v883, %v857
        %888 = vrot.lane.b32.xlu0 %v884, 127
        %v889 = vpop.permute.xlu0 %888
        %890 = vrot.lane.b32.xlu0 %v885, 127
        %v891 = vpop.permute.xlu0 %890
        %v894 = vadd.f32 %v862, %v889
        %v895 = vadd.f32 %v863, %v891
        %s896 = sld [smem:[#allocation4 + $0x2e]]
        %v897 = vstv %s896
        %v898 = vmul.f32 %v897, %v856
        %v899 = vmul.f32 %v897, %v857
        %902 = vrot.lane.b32.xlu0 %v898, 127
        %v903 = vpop.permute.xlu0 %902
        %904 = vrot.lane.b32.xlu0 %v899, 127
        %v905 = vpop.permute.xlu0 %904
        %v908 = vadd.f32 %v868, %v903
        %v909 = vadd.f32 %v869, %v905
        %s910 = sld [smem:[#allocation4 + $0x52]]
        %v911 = vstv %s910
        %v912 = vmul.f32 %v911, %v856
        %v913 = vmul.f32 %v911, %v857
        %916 = vrot.lane.b32.xlu0 %v912, 127
        %v917 = vpop.permute.xlu0 %916
        %918 = vrot.lane.b32.xlu0 %v913, 127
        %v919 = vpop.permute.xlu0 %918
        %v922 = vadd.f32 %v874, %v917
        %v923 = vadd.f32 %v875, %v919
        %s924 = sld [smem:[#allocation4 + $0x76]]
        %v925 = vstv %s924
        %v926 = vmul.f32 %v925, %v856
        %v927 = vmul.f32 %v925, %v857
        %930 = vrot.lane.b32.xlu0 %v926, 127
        %v931 = vpop.permute.xlu0 %930
        %932 = vrot.lane.b32.xlu0 %v927, 127
        %v933 = vpop.permute.xlu0 %932
        %v936 = vadd.f32 %v880, %v931
        %v937 = vadd.f32 %v881, %v933
        %s938 = sld [smem:[#allocation4 + $0xb]]
        %v939 = vstv %s938
        %v940 = vmul.f32 %v939, %v856
        %v941 = vmul.f32 %v939, %v857
        %944 = vrot.lane.b32.xlu0 %v940, 126
        %v945 = vpop.permute.xlu0 %944
        %946 = vrot.lane.b32.xlu0 %v941, 126
        %v947 = vpop.permute.xlu0 %946
        %v950 = vadd.f32 %v894, %v945
        %v951 = vadd.f32 %v895, %v947
        %s952 = sld [smem:[#allocation4 + $0x2f]]
        %v953 = vstv %s952
        %v954 = vmul.f32 %v953, %v856
        %v955 = vmul.f32 %v953, %v857
        %958 = vrot.lane.b32.xlu0 %v954, 126
        %v959 = vpop.permute.xlu0 %958
        %960 = vrot.lane.b32.xlu0 %v955, 126
        %v961 = vpop.permute.xlu0 %960
        %v964 = vadd.f32 %v908, %v959
        %v965 = vadd.f32 %v909, %v961
        %s966 = sld [smem:[#allocation4 + $0x53]]
        %v967 = vstv %s966
        %v968 = vmul.f32 %v967, %v856
        %v969 = vmul.f32 %v967, %v857
        %972 = vrot.lane.b32.xlu0 %v968, 126
        %v973 = vpop.permute.xlu0 %972
        %974 = vrot.lane.b32.xlu0 %v969, 126
        %v975 = vpop.permute.xlu0 %974
        %v978 = vadd.f32 %v922, %v973
        %v979 = vadd.f32 %v923, %v975
        %s980 = sld [smem:[#allocation4 + $0x77]]
        %v981 = vstv %s980
        %v982 = vmul.f32 %v981, %v856
        %v983 = vmul.f32 %v981, %v857
        %986 = vrot.lane.b32.xlu0 %v982, 126
        %v987 = vpop.permute.xlu0 %986
        %988 = vrot.lane.b32.xlu0 %v983, 126
        %v989 = vpop.permute.xlu0 %988
        %v992 = vadd.f32 %v936, %v987
        %v993 = vadd.f32 %v937, %v989
        %v994 = vld [vmem:[%s855 + $0x1] sm:$0xff]
        %v995 = vld [vmem:[%s855 + $0x9] sm:$0xff]
        %s996 = sld [smem:[#allocation4 + $0xc]]
        %v997 = vstv %s996
        %v998 = vmul.f32 %v997, %v994
        %v999 = vmul.f32 %v997, %v995
        %v1000 = vadd.f32 %v950, %v998
        %v1001 = vadd.f32 %v951, %v999
        %s1002 = sld [smem:[#allocation4 + $0x30]]
        %v1003 = vstv %s1002
        %v1004 = vmul.f32 %v1003, %v994
        %v1005 = vmul.f32 %v1003, %v995
        %v1006 = vadd.f32 %v964, %v1004
        %v1007 = vadd.f32 %v965, %v1005
        %s1008 = sld [smem:[#allocation4 + $0x54]]
        %v1009 = vstv %s1008
        %v1010 = vmul.f32 %v1009, %v994
        %v1011 = vmul.f32 %v1009, %v995
        %v1012 = vadd.f32 %v978, %v1010
        %v1013 = vadd.f32 %v979, %v1011
        %s1014 = sld [smem:[#allocation4 + $0x78]]
        %v1015 = vstv %s1014
        %v1016 = vmul.f32 %v1015, %v994
        %v1017 = vmul.f32 %v1015, %v995
        %v1018 = vadd.f32 %v992, %v1016
        %v1019 = vadd.f32 %v993, %v1017
        %s1020 = sld [smem:[#allocation4 + $0xd]]
        %v1021 = vstv %s1020
        %v1022 = vmul.f32 %v1021, %v994
        %v1023 = vmul.f32 %v1021, %v995
        %1026 = vrot.lane.b32.xlu0 %v1022, 127
        %v1027 = vpop.permute.xlu0 %1026
        %1028 = vrot.lane.b32.xlu0 %v1023, 127
        %v1029 = vpop.permute.xlu0 %1028
        %v1032 = vadd.f32 %v1000, %v1027
        %v1033 = vadd.f32 %v1001, %v1029
        %s1034 = sld [smem:[#allocation4 + $0x31]]
        %v1035 = vstv %s1034
        %v1036 = vmul.f32 %v1035, %v994
        %v1037 = vmul.f32 %v1035, %v995
        %1040 = vrot.lane.b32.xlu0 %v1036, 127
        %v1041 = vpop.permute.xlu0 %1040
        %1042 = vrot.lane.b32.xlu0 %v1037, 127
        %v1043 = vpop.permute.xlu0 %1042
        %v1046 = vadd.f32 %v1006, %v1041
        %v1047 = vadd.f32 %v1007, %v1043
        %s1048 = sld [smem:[#allocation4 + $0x55]]
        %v1049 = vstv %s1048
        %v1050 = vmul.f32 %v1049, %v994
        %v1051 = vmul.f32 %v1049, %v995
        %1054 = vrot.lane.b32.xlu0 %v1050, 127
        %v1055 = vpop.permute.xlu0 %1054
        %1056 = vrot.lane.b32.xlu0 %v1051, 127
        %v1057 = vpop.permute.xlu0 %1056
        %v1060 = vadd.f32 %v1012, %v1055
        %v1061 = vadd.f32 %v1013, %v1057
        %s1062 = sld [smem:[#allocation4 + $0x79]]
        %v1063 = vstv %s1062
        %v1064 = vmul.f32 %v1063, %v994
        %v1065 = vmul.f32 %v1063, %v995
        %1068 = vrot.lane.b32.xlu0 %v1064, 127
        %v1069 = vpop.permute.xlu0 %1068
        %1070 = vrot.lane.b32.xlu0 %v1065, 127
        %v1071 = vpop.permute.xlu0 %1070
        %v1074 = vadd.f32 %v1018, %v1069
        %v1075 = vadd.f32 %v1019, %v1071
        %s1076 = sld [smem:[#allocation4 + $0xe]]
        %v1077 = vstv %s1076
        %v1078 = vmul.f32 %v1077, %v994
        %v1079 = vmul.f32 %v1077, %v995
        %1082 = vrot.lane.b32.xlu0 %v1078, 126
        %v1083 = vpop.permute.xlu0 %1082
        %1084 = vrot.lane.b32.xlu0 %v1079, 126
        %v1085 = vpop.permute.xlu0 %1084
        %v1088 = vadd.f32 %v1032, %v1083
        %v1089 = vadd.f32 %v1033, %v1085
        %s1090 = sld [smem:[#allocation4 + $0x32]]
        %v1091 = vstv %s1090
        %v1092 = vmul.f32 %v1091, %v994
        %v1093 = vmul.f32 %v1091, %v995
        %1096 = vrot.lane.b32.xlu0 %v1092, 126
        %v1097 = vpop.permute.xlu0 %1096
        %1098 = vrot.lane.b32.xlu0 %v1093, 126
        %v1099 = vpop.permute.xlu0 %1098
        %v1102 = vadd.f32 %v1046, %v1097
        %v1103 = vadd.f32 %v1047, %v1099
        %s1104 = sld [smem:[#allocation4 + $0x56]]
        %v1105 = vstv %s1104
        %v1106 = vmul.f32 %v1105, %v994
        %v1107 = vmul.f32 %v1105, %v995
        %1110 = vrot.lane.b32.xlu0 %v1106, 126
        %v1111 = vpop.permute.xlu0 %1110
        %1112 = vrot.lane.b32.xlu0 %v1107, 126
        %v1113 = vpop.permute.xlu0 %1112
        %v1116 = vadd.f32 %v1060, %v1111
        %v1117 = vadd.f32 %v1061, %v1113
        %s1118 = sld [smem:[#allocation4 + $0x7a]]
        %v1119 = vstv %s1118
        %v1120 = vmul.f32 %v1119, %v994
        %v1121 = vmul.f32 %v1119, %v995
        %1124 = vrot.lane.b32.xlu0 %v1120, 126
        %v1125 = vpop.permute.xlu0 %1124
        %1126 = vrot.lane.b32.xlu0 %v1121, 126
        %v1127 = vpop.permute.xlu0 %1126
        %v1130 = vadd.f32 %v1074, %v1125
        %v1131 = vadd.f32 %v1075, %v1127
        %v1132 = vld [vmem:[%s855 + $0x2] sm:$0xff]
        %v1133 = vld [vmem:[%s855 + $0xa] sm:$0xff]
        %s1134 = sld [smem:[#allocation4 + $0xf]]
        %v1135 = vstv %s1134
        %v1136 = vmul.f32 %v1135, %v1132
        %v1137 = vmul.f32 %v1135, %v1133
        %v1138 = vadd.f32 %v1088, %v1136
        %v1139 = vadd.f32 %v1089, %v1137
        %s1140 = sld [smem:[#allocation4 + $0x33]]
        %v1141 = vstv %s1140
        %v1142 = vmul.f32 %v1141, %v1132
        %v1143 = vmul.f32 %v1141, %v1133
        %v1144 = vadd.f32 %v1102, %v1142
        %v1145 = vadd.f32 %v1103, %v1143
        %s1146 = sld [smem:[#allocation4 + $0x57]]
        %v1147 = vstv %s1146
        %v1148 = vmul.f32 %v1147, %v1132
        %v1149 = vmul.f32 %v1147, %v1133
        %v1150 = vadd.f32 %v1116, %v1148
        %v1151 = vadd.f32 %v1117, %v1149
        %s1152 = sld [smem:[#allocation4 + $0x7b]]
        %v1153 = vstv %s1152
        %v1154 = vmul.f32 %v1153, %v1132
        %v1155 = vmul.f32 %v1153, %v1133
        %v1156 = vadd.f32 %v1130, %v1154
        %v1157 = vadd.f32 %v1131, %v1155
        %s1158 = sld [smem:[#allocation4 + $0x10]]
        %v1159 = vstv %s1158
        %v1160 = vmul.f32 %v1159, %v1132
        %v1161 = vmul.f32 %v1159, %v1133
        %1164 = vrot.lane.b32.xlu0 %v1160, 127
        %v1165 = vpop.permute.xlu0 %1164
        %1166 = vrot.lane.b32.xlu0 %v1161, 127
        %v1167 = vpop.permute.xlu0 %1166
        %v1170 = vadd.f32 %v1138, %v1165
        %v1171 = vadd.f32 %v1139, %v1167
        %s1172 = sld [smem:[#allocation4 + $0x34]]
        %v1173 = vstv %s1172
        %v1174 = vmul.f32 %v1173, %v1132
        %v1175 = vmul.f32 %v1173, %v1133
        %1178 = vrot.lane.b32.xlu0 %v1174, 127
        %v1179 = vpop.permute.xlu0 %1178
        %1180 = vrot.lane.b32.xlu0 %v1175, 127
        %v1181 = vpop.permute.xlu0 %1180
        %v1184 = vadd.f32 %v1144, %v1179
        %v1185 = vadd.f32 %v1145, %v1181
        %s1186 = sld [smem:[#allocation4 + $0x58]]
        %v1187 = vstv %s1186
        %v1188 = vmul.f32 %v1187, %v1132
        %v1189 = vmul.f32 %v1187, %v1133
        %1192 = vrot.lane.b32.xlu0 %v1188, 127
        %v1193 = vpop.permute.xlu0 %1192
        %1194 = vrot.lane.b32.xlu0 %v1189, 127
        %v1195 = vpop.permute.xlu0 %1194
        %v1198 = vadd.f32 %v1150, %v1193
        %v1199 = vadd.f32 %v1151, %v1195
        %s1200 = sld [smem:[#allocation4 + $0x7c]]
        %v1201 = vstv %s1200
        %v1202 = vmul.f32 %v1201, %v1132
        %v1203 = vmul.f32 %v1201, %v1133
        %1206 = vrot.lane.b32.xlu0 %v1202, 127
        %v1207 = vpop.permute.xlu0 %1206
        %1208 = vrot.lane.b32.xlu0 %v1203, 127
        %v1209 = vpop.permute.xlu0 %1208
        %v1212 = vadd.f32 %v1156, %v1207
        %v1213 = vadd.f32 %v1157, %v1209
        %s1214 = sld [smem:[#allocation4 + $0x11]]
        %v1215 = vstv %s1214
        %v1216 = vmul.f32 %v1215, %v1132
        %v1217 = vmul.f32 %v1215, %v1133
        %1220 = vrot.lane.b32.xlu0 %v1216, 126
        %v1221 = vpop.permute.xlu0 %1220
        %1222 = vrot.lane.b32.xlu0 %v1217, 126
        %v1223 = vpop.permute.xlu0 %1222
        %v1226 = vadd.f32 %v1170, %v1221
        %v1227 = vadd.f32 %v1171, %v1223
        %s1228 = sld [smem:[#allocation4 + $0x35]]
        %v1229 = vstv %s1228
        %v1230 = vmul.f32 %v1229, %v1132
        %v1231 = vmul.f32 %v1229, %v1133
        %1234 = vrot.lane.b32.xlu0 %v1230, 126
        %v1235 = vpop.permute.xlu0 %1234
        %1236 = vrot.lane.b32.xlu0 %v1231, 126
        %v1237 = vpop.permute.xlu0 %1236
        %v1240 = vadd.f32 %v1184, %v1235
        %v1241 = vadd.f32 %v1185, %v1237
        %s1242 = sld [smem:[#allocation4 + $0x59]]
        %v1243 = vstv %s1242
        %v1244 = vmul.f32 %v1243, %v1132
        %v1245 = vmul.f32 %v1243, %v1133
        %1248 = vrot.lane.b32.xlu0 %v1244, 126
        %v1249 = vpop.permute.xlu0 %1248
        %1250 = vrot.lane.b32.xlu0 %v1245, 126
        %v1251 = vpop.permute.xlu0 %1250
        %v1254 = vadd.f32 %v1198, %v1249
        %v1255 = vadd.f32 %v1199, %v1251
        %s1256 = sld [smem:[#allocation4 + $0x7d]]
        %v1257 = vstv %s1256
        %v1258 = vmul.f32 %v1257, %v1132
        %v1259 = vmul.f32 %v1257, %v1133
        %1262 = vrot.lane.b32.xlu0 %v1258, 126
        %v1263 = vpop.permute.xlu0 %1262
        %1264 = vrot.lane.b32.xlu0 %v1259, 126
        %v1265 = vpop.permute.xlu0 %1264
        %v1268 = vadd.f32 %v1212, %v1263
        %v1269 = vadd.f32 %v1213, %v1265
        %s1270 = scalar_lea.vmem [#allocation2], 48
        %v1271 = vld [vmem:[%s1270] sm:$0xff]
        %v1272 = vld [vmem:[%s1270 + $0x8] sm:$0xff]
        %s1273 = sld [smem:[#allocation4 + $0x12]]
        %v1274 = vstv %s1273
        %v1275 = vmul.f32 %v1274, %v1271
        %v1276 = vmul.f32 %v1274, %v1272
        %v1277 = vadd.f32 %v1226, %v1275
        %v1278 = vadd.f32 %v1227, %v1276
        %s1279 = sld [smem:[#allocation4 + $0x36]]
        %v1280 = vstv %s1279
        %v1281 = vmul.f32 %v1280, %v1271
        %v1282 = vmul.f32 %v1280, %v1272
        %v1283 = vadd.f32 %v1240, %v1281
        %v1284 = vadd.f32 %v1241, %v1282
        %s1285 = sld [smem:[#allocation4 + $0x5a]]
        %v1286 = vstv %s1285
        %v1287 = vmul.f32 %v1286, %v1271
        %v1288 = vmul.f32 %v1286, %v1272
        %v1289 = vadd.f32 %v1254, %v1287
        %v1290 = vadd.f32 %v1255, %v1288
        %s1291 = sld [smem:[#allocation4 + $0x7e]]
        %v1292 = vstv %s1291
        %v1293 = vmul.f32 %v1292, %v1271
        %v1294 = vmul.f32 %v1292, %v1272
        %v1295 = vadd.f32 %v1268, %v1293
        %v1296 = vadd.f32 %v1269, %v1294
        %s1297 = sld [smem:[#allocation4 + $0x13]]
        %v1298 = vstv %s1297
        %v1299 = vmul.f32 %v1298, %v1271
        %v1300 = vmul.f32 %v1298, %v1272
        %1303 = vrot.lane.b32.xlu0 %v1299, 127
        %v1304 = vpop.permute.xlu0 %1303
        %1305 = vrot.lane.b32.xlu0 %v1300, 127
        %v1306 = vpop.permute.xlu0 %1305
        %v1309 = vadd.f32 %v1277, %v1304
        %v1310 = vadd.f32 %v1278, %v1306
        %s1311 = sld [smem:[#allocation4 + $0x37]]
        %v1312 = vstv %s1311
        %v1313 = vmul.f32 %v1312, %v1271
        %v1314 = vmul.f32 %v1312, %v1272
        %1317 = vrot.lane.b32.xlu0 %v1313, 127
        %v1318 = vpop.permute.xlu0 %1317
        %1319 = vrot.lane.b32.xlu0 %v1314, 127
        %v1320 = vpop.permute.xlu0 %1319
        %v1323 = vadd.f32 %v1283, %v1318
        %v1324 = vadd.f32 %v1284, %v1320
        %s1325 = sld [smem:[#allocation4 + $0x5b]]
        %v1326 = vstv %s1325
        %v1327 = vmul.f32 %v1326, %v1271
        %v1328 = vmul.f32 %v1326, %v1272
        %1331 = vrot.lane.b32.xlu0 %v1327, 127
        %v1332 = vpop.permute.xlu0 %1331
        %1333 = vrot.lane.b32.xlu0 %v1328, 127
        %v1334 = vpop.permute.xlu0 %1333
        %v1337 = vadd.f32 %v1289, %v1332
        %v1338 = vadd.f32 %v1290, %v1334
        %s1339 = sld [smem:[#allocation4 + $0x7f]]
        %v1340 = vstv %s1339
        %v1341 = vmul.f32 %v1340, %v1271
        %v1342 = vmul.f32 %v1340, %v1272
        %1345 = vrot.lane.b32.xlu0 %v1341, 127
        %v1346 = vpop.permute.xlu0 %1345
        %1347 = vrot.lane.b32.xlu0 %v1342, 127
        %v1348 = vpop.permute.xlu0 %1347
        %v1351 = vadd.f32 %v1295, %v1346
        %v1352 = vadd.f32 %v1296, %v1348
        %s1353 = sld [smem:[#allocation4 + $0x14]]
        %v1354 = vstv %s1353
        %v1355 = vmul.f32 %v1354, %v1271
        %v1356 = vmul.f32 %v1354, %v1272
        %1359 = vrot.lane.b32.xlu0 %v1355, 126
        %v1360 = vpop.permute.xlu0 %1359
        %1361 = vrot.lane.b32.xlu0 %v1356, 126
        %v1362 = vpop.permute.xlu0 %1361
        %v1365 = vadd.f32 %v1309, %v1360
        %v1366 = vadd.f32 %v1310, %v1362
        %s1367 = sld [smem:[#allocation4 + $0x38]]
        %v1368 = vstv %s1367
        %v1369 = vmul.f32 %v1368, %v1271
        %v1370 = vmul.f32 %v1368, %v1272
        %1373 = vrot.lane.b32.xlu0 %v1369, 126
        %v1374 = vpop.permute.xlu0 %1373
        %1375 = vrot.lane.b32.xlu0 %v1370, 126
        %v1376 = vpop.permute.xlu0 %1375
        %v1379 = vadd.f32 %v1323, %v1374
        %v1380 = vadd.f32 %v1324, %v1376
        %s1381 = sld [smem:[#allocation4 + $0x5c]]
        %v1382 = vstv %s1381
        %v1383 = vmul.f32 %v1382, %v1271
        %v1384 = vmul.f32 %v1382, %v1272
        %1387 = vrot.lane.b32.xlu0 %v1383, 126
        %v1388 = vpop.permute.xlu0 %1387
        %1389 = vrot.lane.b32.xlu0 %v1384, 126
        %v1390 = vpop.permute.xlu0 %1389
        %v1393 = vadd.f32 %v1337, %v1388
        %v1394 = vadd.f32 %v1338, %v1390
        %s1395 = sld [smem:[#allocation4 + $0x80]]
        %v1396 = vstv %s1395
        %v1397 = vmul.f32 %v1396, %v1271
        %v1398 = vmul.f32 %v1396, %v1272
        %1401 = vrot.lane.b32.xlu0 %v1397, 126
        %v1402 = vpop.permute.xlu0 %1401
        %1403 = vrot.lane.b32.xlu0 %v1398, 126
        %v1404 = vpop.permute.xlu0 %1403
        %v1407 = vadd.f32 %v1351, %v1402
        %v1408 = vadd.f32 %v1352, %v1404
        %v1409 = vld [vmem:[%s1270 + $0x1] sm:$0xff]
        %v1410 = vld [vmem:[%s1270 + $0x9] sm:$0xff]
        %s1411 = sld [smem:[#allocation4 + $0x15]]
        %v1412 = vstv %s1411
        %v1413 = vmul.f32 %v1412, %v1409
        %v1414 = vmul.f32 %v1412, %v1410
        %v1415 = vadd.f32 %v1365, %v1413
        %v1416 = vadd.f32 %v1366, %v1414
        %s1417 = sld [smem:[#allocation4 + $0x39]]
        %v1418 = vstv %s1417
        %v1419 = vmul.f32 %v1418, %v1409
        %v1420 = vmul.f32 %v1418, %v1410
        %v1421 = vadd.f32 %v1379, %v1419
        %v1422 = vadd.f32 %v1380, %v1420
        %s1423 = sld [smem:[#allocation4 + $0x5d]]
        %v1424 = vstv %s1423
        %v1425 = vmul.f32 %v1424, %v1409
        %v1426 = vmul.f32 %v1424, %v1410
        %v1427 = vadd.f32 %v1393, %v1425
        %v1428 = vadd.f32 %v1394, %v1426
        %s1429 = sld [smem:[#allocation4 + $0x81]]
        %v1430 = vstv %s1429
        %v1431 = vmul.f32 %v1430, %v1409
        %v1432 = vmul.f32 %v1430, %v1410
        %v1433 = vadd.f32 %v1407, %v1431
        %v1434 = vadd.f32 %v1408, %v1432
        %s1435 = sld [smem:[#allocation4 + $0x16]]
        %v1436 = vstv %s1435
        %v1437 = vmul.f32 %v1436, %v1409
        %v1438 = vmul.f32 %v1436, %v1410
        %1441 = vrot.lane.b32.xlu0 %v1437, 127
        %v1442 = vpop.permute.xlu0 %1441
        %1443 = vrot.lane.b32.xlu0 %v1438, 127
        %v1444 = vpop.permute.xlu0 %1443
        %v1447 = vadd.f32 %v1415, %v1442
        %v1448 = vadd.f32 %v1416, %v1444
        %s1449 = sld [smem:[#allocation4 + $0x3a]]
        %v1450 = vstv %s1449
        %v1451 = vmul.f32 %v1450, %v1409
        %v1452 = vmul.f32 %v1450, %v1410
        %1455 = vrot.lane.b32.xlu0 %v1451, 127
        %v1456 = vpop.permute.xlu0 %1455
        %1457 = vrot.lane.b32.xlu0 %v1452, 127
        %v1458 = vpop.permute.xlu0 %1457
        %v1461 = vadd.f32 %v1421, %v1456
        %v1462 = vadd.f32 %v1422, %v1458
        %s1463 = sld [smem:[#allocation4 + $0x5e]]
        %v1464 = vstv %s1463
        %v1465 = vmul.f32 %v1464, %v1409
        %v1466 = vmul.f32 %v1464, %v1410
        %1469 = vrot.lane.b32.xlu0 %v1465, 127
        %v1470 = vpop.permute.xlu0 %1469
        %1471 = vrot.lane.b32.xlu0 %v1466, 127
        %v1472 = vpop.permute.xlu0 %1471
        %v1475 = vadd.f32 %v1427, %v1470
        %v1476 = vadd.f32 %v1428, %v1472
        %s1477 = sld [smem:[#allocation4 + $0x82]]
        %v1478 = vstv %s1477
        %v1479 = vmul.f32 %v1478, %v1409
        %v1480 = vmul.f32 %v1478, %v1410
        %1483 = vrot.lane.b32.xlu0 %v1479, 127
        %v1484 = vpop.permute.xlu0 %1483
        %1485 = vrot.lane.b32.xlu0 %v1480, 127
        %v1486 = vpop.permute.xlu0 %1485
        %v1489 = vadd.f32 %v1433, %v1484
        %v1490 = vadd.f32 %v1434, %v1486
        %s1491 = sld [smem:[#allocation4 + $0x17]]
        %v1492 = vstv %s1491
        %v1493 = vmul.f32 %v1492, %v1409
        %v1494 = vmul.f32 %v1492, %v1410
        %1497 = vrot.lane.b32.xlu0 %v1493, 126
        %v1498 = vpop.permute.xlu0 %1497
        %1499 = vrot.lane.b32.xlu0 %v1494, 126
        %v1500 = vpop.permute.xlu0 %1499
        %v1503 = vadd.f32 %v1447, %v1498
        %v1504 = vadd.f32 %v1448, %v1500
        %s1505 = sld [smem:[#allocation4 + $0x3b]]
        %v1506 = vstv %s1505
        %v1507 = vmul.f32 %v1506, %v1409
        %v1508 = vmul.f32 %v1506, %v1410
        %1511 = vrot.lane.b32.xlu0 %v1507, 126
        %v1512 = vpop.permute.xlu0 %1511
        %1513 = vrot.lane.b32.xlu0 %v1508, 126
        %v1514 = vpop.permute.xlu0 %1513
        %v1517 = vadd.f32 %v1461, %v1512
        %v1518 = vadd.f32 %v1462, %v1514
        %s1519 = sld [smem:[#allocation4 + $0x5f]]
        %v1520 = vstv %s1519
        %v1521 = vmul.f32 %v1520, %v1409
        %v1522 = vmul.f32 %v1520, %v1410
        %1525 = vrot.lane.b32.xlu0 %v1521, 126
        %v1526 = vpop.permute.xlu0 %1525
        %1527 = vrot.lane.b32.xlu0 %v1522, 126
        %v1528 = vpop.permute.xlu0 %1527
        %v1531 = vadd.f32 %v1475, %v1526
        %v1532 = vadd.f32 %v1476, %v1528
        %s1533 = sld [smem:[#allocation4 + $0x83]]
        %v1534 = vstv %s1533
        %v1535 = vmul.f32 %v1534, %v1409
        %v1536 = vmul.f32 %v1534, %v1410
        %1539 = vrot.lane.b32.xlu0 %v1535, 126
        %v1540 = vpop.permute.xlu0 %1539
        %1541 = vrot.lane.b32.xlu0 %v1536, 126
        %v1542 = vpop.permute.xlu0 %1541
        %v1545 = vadd.f32 %v1489, %v1540
        %v1546 = vadd.f32 %v1490, %v1542
        %v1547 = vld [vmem:[%s1270 + $0x2] sm:$0xff]
        %v1548 = vld [vmem:[%s1270 + $0xa] sm:$0xff]
        %s1549 = sld [smem:[#allocation4 + $0x18]]
        %v1550 = vstv %s1549
        %v1551 = vmul.f32 %v1550, %v1547
        %v1552 = vmul.f32 %v1550, %v1548
        %v1553 = vadd.f32 %v1503, %v1551
        %v1554 = vadd.f32 %v1504, %v1552
        %s1555 = sld [smem:[#allocation4 + $0x3c]]
        %v1556 = vstv %s1555
        %v1557 = vmul.f32 %v1556, %v1547
        %v1558 = vmul.f32 %v1556, %v1548
        %v1559 = vadd.f32 %v1517, %v1557
        %v1560 = vadd.f32 %v1518, %v1558
        %s1561 = sld [smem:[#allocation4 + $0x60]]
        %v1562 = vstv %s1561
        %v1563 = vmul.f32 %v1562, %v1547
        %v1564 = vmul.f32 %v1562, %v1548
        %v1565 = vadd.f32 %v1531, %v1563
        %v1566 = vadd.f32 %v1532, %v1564
        %s1567 = sld [smem:[#allocation4 + $0x84]]
        %v1568 = vstv %s1567
        %v1569 = vmul.f32 %v1568, %v1547
        %v1570 = vmul.f32 %v1568, %v1548
        %v1571 = vadd.f32 %v1545, %v1569
        %v1572 = vadd.f32 %v1546, %v1570
        %s1573 = sld [smem:[#allocation4 + $0x19]]
        %v1574 = vstv %s1573
        %v1575 = vmul.f32 %v1574, %v1547
        %v1576 = vmul.f32 %v1574, %v1548
        %1579 = vrot.lane.b32.xlu0 %v1575, 127
        %v1580 = vpop.permute.xlu0 %1579
        %1581 = vrot.lane.b32.xlu0 %v1576, 127
        %v1582 = vpop.permute.xlu0 %1581
        %v1585 = vadd.f32 %v1553, %v1580
        %v1586 = vadd.f32 %v1554, %v1582
        %s1587 = sld [smem:[#allocation4 + $0x3d]]
        %v1588 = vstv %s1587
        %v1589 = vmul.f32 %v1588, %v1547
        %v1590 = vmul.f32 %v1588, %v1548
        %1593 = vrot.lane.b32.xlu0 %v1589, 127
        %v1594 = vpop.permute.xlu0 %1593
        %1595 = vrot.lane.b32.xlu0 %v1590, 127
        %v1596 = vpop.permute.xlu0 %1595
        %v1599 = vadd.f32 %v1559, %v1594
        %v1600 = vadd.f32 %v1560, %v1596
        %s1601 = sld [smem:[#allocation4 + $0x61]]
        %v1602 = vstv %s1601
        %v1603 = vmul.f32 %v1602, %v1547
        %v1604 = vmul.f32 %v1602, %v1548
        %1607 = vrot.lane.b32.xlu0 %v1603, 127
        %v1608 = vpop.permute.xlu0 %1607
        %1609 = vrot.lane.b32.xlu0 %v1604, 127
        %v1610 = vpop.permute.xlu0 %1609
        %v1613 = vadd.f32 %v1565, %v1608
        %v1614 = vadd.f32 %v1566, %v1610
        %s1615 = sld [smem:[#allocation4 + $0x85]]
        %v1616 = vstv %s1615
        %v1617 = vmul.f32 %v1616, %v1547
        %v1618 = vmul.f32 %v1616, %v1548
        %1621 = vrot.lane.b32.xlu0 %v1617, 127
        %v1622 = vpop.permute.xlu0 %1621
        %1623 = vrot.lane.b32.xlu0 %v1618, 127
        %v1624 = vpop.permute.xlu0 %1623
        %v1627 = vadd.f32 %v1571, %v1622
        %v1628 = vadd.f32 %v1572, %v1624
        %s1629 = sld [smem:[#allocation4 + $0x1a]]
        %v1630 = vstv %s1629
        %v1631 = vmul.f32 %v1630, %v1547
        %v1632 = vmul.f32 %v1630, %v1548
        %1635 = vrot.lane.b32.xlu0 %v1631, 126
        %v1636 = vpop.permute.xlu0 %1635
        %1637 = vrot.lane.b32.xlu0 %v1632, 126
        %v1638 = vpop.permute.xlu0 %1637
        %v1641 = vadd.f32 %v1585, %v1636
        %v1642 = vadd.f32 %v1586, %v1638
        %s1643 = sld [smem:[#allocation4 + $0x3e]]
        %v1644 = vstv %s1643
        %v1645 = vmul.f32 %v1644, %v1547
        %v1646 = vmul.f32 %v1644, %v1548
        %1649 = vrot.lane.b32.xlu0 %v1645, 126
        %v1650 = vpop.permute.xlu0 %1649
        %1651 = vrot.lane.b32.xlu0 %v1646, 126
        %v1652 = vpop.permute.xlu0 %1651
        %v1655 = vadd.f32 %v1599, %v1650
        %v1656 = vadd.f32 %v1600, %v1652
        %s1657 = sld [smem:[#allocation4 + $0x62]]
        %v1658 = vstv %s1657
        %v1659 = vmul.f32 %v1658, %v1547
        %v1660 = vmul.f32 %v1658, %v1548
        %1663 = vrot.lane.b32.xlu0 %v1659, 126
        %v1664 = vpop.permute.xlu0 %1663
        %1665 = vrot.lane.b32.xlu0 %v1660, 126
        %v1666 = vpop.permute.xlu0 %1665
        %v1669 = vadd.f32 %v1613, %v1664
        %v1670 = vadd.f32 %v1614, %v1666
        %s1671 = sld [smem:[#allocation4 + $0x86]]
        %v1672 = vstv %s1671
        %v1673 = vmul.f32 %v1672, %v1547
        %v1674 = vmul.f32 %v1672, %v1548
        %1677 = vrot.lane.b32.xlu0 %v1673, 126
        %v1678 = vpop.permute.xlu0 %1677
        %1679 = vrot.lane.b32.xlu0 %v1674, 126
        %v1680 = vpop.permute.xlu0 %1679
        %v1683 = vadd.f32 %v1627, %v1678
        %v1684 = vadd.f32 %v1628, %v1680
        %s1685 = scalar_lea.vmem [#allocation2], 72
        %v1686 = vld [vmem:[%s1685] sm:$0xff]
        %v1687 = vld [vmem:[%s1685 + $0x8] sm:$0xff]
        %s1688 = sld [smem:[#allocation4 + $0x1b]]
        %v1689 = vstv %s1688
        %v1690 = vmul.f32 %v1689, %v1686
        %v1691 = vmul.f32 %v1689, %v1687
        %v1692 = vadd.f32 %v1641, %v1690
        %v1693 = vadd.f32 %v1642, %v1691
        %s1694 = sld [smem:[#allocation4 + $0x3f]]
        %v1695 = vstv %s1694
        %v1696 = vmul.f32 %v1695, %v1686
        %v1697 = vmul.f32 %v1695, %v1687
        %v1698 = vadd.f32 %v1655, %v1696
        %v1699 = vadd.f32 %v1656, %v1697
        %s1700 = sld [smem:[#allocation4 + $0x63]]
        %v1701 = vstv %s1700
        %v1702 = vmul.f32 %v1701, %v1686
        %v1703 = vmul.f32 %v1701, %v1687
        %v1704 = vadd.f32 %v1669, %v1702
        %v1705 = vadd.f32 %v1670, %v1703
        %s1706 = sld [smem:[#allocation4 + $0x87]]
        %v1707 = vstv %s1706
        %v1708 = vmul.f32 %v1707, %v1686
        %v1709 = vmul.f32 %v1707, %v1687
        %v1710 = vadd.f32 %v1683, %v1708
        %v1711 = vadd.f32 %v1684, %v1709
        %s1712 = sld [smem:[#allocation4 + $0x1c]]
        %v1713 = vstv %s1712
        %v1714 = vmul.f32 %v1713, %v1686
        %v1715 = vmul.f32 %v1713, %v1687
        %1718 = vrot.lane.b32.xlu0 %v1714, 127
        %v1719 = vpop.permute.xlu0 %1718
        %1720 = vrot.lane.b32.xlu0 %v1715, 127
        %v1721 = vpop.permute.xlu0 %1720
        %v1724 = vadd.f32 %v1692, %v1719
        %v1725 = vadd.f32 %v1693, %v1721
        %s1726 = sld [smem:[#allocation4 + $0x40]]
        %v1727 = vstv %s1726
        %v1728 = vmul.f32 %v1727, %v1686
        %v1729 = vmul.f32 %v1727, %v1687
        %1732 = vrot.lane.b32.xlu0 %v1728, 127
        %v1733 = vpop.permute.xlu0 %1732
        %1734 = vrot.lane.b32.xlu0 %v1729, 127
        %v1735 = vpop.permute.xlu0 %1734
        %v1738 = vadd.f32 %v1698, %v1733
        %v1739 = vadd.f32 %v1699, %v1735
        %s1740 = sld [smem:[#allocation4 + $0x64]]
        %v1741 = vstv %s1740
        %v1742 = vmul.f32 %v1741, %v1686
        %v1743 = vmul.f32 %v1741, %v1687
        %1746 = vrot.lane.b32.xlu0 %v1742, 127
        %v1747 = vpop.permute.xlu0 %1746
        %1748 = vrot.lane.b32.xlu0 %v1743, 127
        %v1749 = vpop.permute.xlu0 %1748
        %v1752 = vadd.f32 %v1704, %v1747
        %v1753 = vadd.f32 %v1705, %v1749
        %s1754 = sld [smem:[#allocation4 + $0x88]]
        %v1755 = vstv %s1754
        %v1756 = vmul.f32 %v1755, %v1686
        %v1757 = vmul.f32 %v1755, %v1687
        %1760 = vrot.lane.b32.xlu0 %v1756, 127
        %v1761 = vpop.permute.xlu0 %1760
        %1762 = vrot.lane.b32.xlu0 %v1757, 127
        %v1763 = vpop.permute.xlu0 %1762
        %v1766 = vadd.f32 %v1710, %v1761
        %v1767 = vadd.f32 %v1711, %v1763
        %s1768 = sld [smem:[#allocation4 + $0x1d]]
        %v1769 = vstv %s1768
        %v1770 = vmul.f32 %v1769, %v1686
        %v1771 = vmul.f32 %v1769, %v1687
        %1774 = vrot.lane.b32.xlu0 %v1770, 126
        %v1775 = vpop.permute.xlu0 %1774
        %1776 = vrot.lane.b32.xlu0 %v1771, 126
        %v1777 = vpop.permute.xlu0 %1776
        %v1780 = vadd.f32 %v1724, %v1775
        %v1781 = vadd.f32 %v1725, %v1777
        %s1782 = sld [smem:[#allocation4 + $0x41]]
        %v1783 = vstv %s1782
        %v1784 = vmul.f32 %v1783, %v1686
        %v1785 = vmul.f32 %v1783, %v1687
        %1788 = vrot.lane.b32.xlu0 %v1784, 126
        %v1789 = vpop.permute.xlu0 %1788
        %1790 = vrot.lane.b32.xlu0 %v1785, 126
        %v1791 = vpop.permute.xlu0 %1790
        %v1794 = vadd.f32 %v1738, %v1789
        %v1795 = vadd.f32 %v1739, %v1791
        %s1796 = sld [smem:[#allocation4 + $0x65]]
        %v1797 = vstv %s1796
        %v1798 = vmul.f32 %v1797, %v1686
        %v1799 = vmul.f32 %v1797, %v1687
        %1802 = vrot.lane.b32.xlu0 %v1798, 126
        %v1803 = vpop.permute.xlu0 %1802
        %1804 = vrot.lane.b32.xlu0 %v1799, 126
        %v1805 = vpop.permute.xlu0 %1804
        %v1808 = vadd.f32 %v1752, %v1803
        %v1809 = vadd.f32 %v1753, %v1805
        %s1810 = sld [smem:[#allocation4 + $0x89]]
        %v1811 = vstv %s1810
        %v1812 = vmul.f32 %v1811, %v1686
        %v1813 = vmul.f32 %v1811, %v1687
        %1816 = vrot.lane.b32.xlu0 %v1812, 126
        %v1817 = vpop.permute.xlu0 %1816
        %1818 = vrot.lane.b32.xlu0 %v1813, 126
        %v1819 = vpop.permute.xlu0 %1818
        %v1822 = vadd.f32 %v1766, %v1817
        %v1823 = vadd.f32 %v1767, %v1819
        %v1824 = vld [vmem:[%s1685 + $0x1] sm:$0xff]
        %v1825 = vld [vmem:[%s1685 + $0x9] sm:$0xff]
        %s1826 = sld [smem:[#allocation4 + $0x1e]]
        %v1827 = vstv %s1826
        %v1828 = vmul.f32 %v1827, %v1824
        %v1829 = vmul.f32 %v1827, %v1825
        %v1830 = vadd.f32 %v1780, %v1828
        %v1831 = vadd.f32 %v1781, %v1829
        %s1832 = sld [smem:[#allocation4 + $0x42]]
        %v1833 = vstv %s1832
        %v1834 = vmul.f32 %v1833, %v1824
        %v1835 = vmul.f32 %v1833, %v1825
        %v1836 = vadd.f32 %v1794, %v1834
        %v1837 = vadd.f32 %v1795, %v1835
        %s1838 = sld [smem:[#allocation4 + $0x66]]
        %v1839 = vstv %s1838
        %v1840 = vmul.f32 %v1839, %v1824
        %v1841 = vmul.f32 %v1839, %v1825
        %v1842 = vadd.f32 %v1808, %v1840
        %v1843 = vadd.f32 %v1809, %v1841
        %s1844 = sld [smem:[#allocation4 + $0x8a]]
        %v1845 = vstv %s1844
        %v1846 = vmul.f32 %v1845, %v1824
        %v1847 = vmul.f32 %v1845, %v1825
        %v1848 = vadd.f32 %v1822, %v1846
        %v1849 = vadd.f32 %v1823, %v1847
        %s1850 = sld [smem:[#allocation4 + $0x1f]]
        %v1851 = vstv %s1850
        %v1852 = vmul.f32 %v1851, %v1824
        %v1853 = vmul.f32 %v1851, %v1825
        %1856 = vrot.lane.b32.xlu0 %v1852, 127
        %v1857 = vpop.permute.xlu0 %1856
        %1858 = vrot.lane.b32.xlu0 %v1853, 127
        %v1859 = vpop.permute.xlu0 %1858
        %v1862 = vadd.f32 %v1830, %v1857
        %v1863 = vadd.f32 %v1831, %v1859
        %s1864 = sld [smem:[#allocation4 + $0x43]]
        %v1865 = vstv %s1864
        %v1866 = vmul.f32 %v1865, %v1824
        %v1867 = vmul.f32 %v1865, %v1825
        %1870 = vrot.lane.b32.xlu0 %v1866, 127
        %v1871 = vpop.permute.xlu0 %1870
        %1872 = vrot.lane.b32.xlu0 %v1867, 127
        %v1873 = vpop.permute.xlu0 %1872
        %v1876 = vadd.f32 %v1836, %v1871
        %v1877 = vadd.f32 %v1837, %v1873
        %s1878 = sld [smem:[#allocation4 + $0x67]]
        %v1879 = vstv %s1878
        %v1880 = vmul.f32 %v1879, %v1824
        %v1881 = vmul.f32 %v1879, %v1825
        %1884 = vrot.lane.b32.xlu0 %v1880, 127
        %v1885 = vpop.permute.xlu0 %1884
        %1886 = vrot.lane.b32.xlu0 %v1881, 127
        %v1887 = vpop.permute.xlu0 %1886
        %v1890 = vadd.f32 %v1842, %v1885
        %v1891 = vadd.f32 %v1843, %v1887
        %s1892 = sld [smem:[#allocation4 + $0x8b]]
        %v1893 = vstv %s1892
        %v1894 = vmul.f32 %v1893, %v1824
        %v1895 = vmul.f32 %v1893, %v1825
        %1898 = vrot.lane.b32.xlu0 %v1894, 127
        %v1899 = vpop.permute.xlu0 %1898
        %1900 = vrot.lane.b32.xlu0 %v1895, 127
        %v1901 = vpop.permute.xlu0 %1900
        %v1904 = vadd.f32 %v1848, %v1899
        %v1905 = vadd.f32 %v1849, %v1901
        %s1906 = sld [smem:[#allocation4 + $0x20]]
        %v1907 = vstv %s1906
        %v1908 = vmul.f32 %v1907, %v1824
        %v1909 = vmul.f32 %v1907, %v1825
        %1912 = vrot.lane.b32.xlu0 %v1908, 126
        %v1913 = vpop.permute.xlu0 %1912
        %1914 = vrot.lane.b32.xlu0 %v1909, 126
        %v1915 = vpop.permute.xlu0 %1914
        %v1918 = vadd.f32 %v1862, %v1913
        %v1919 = vadd.f32 %v1863, %v1915
        %s1920 = sld [smem:[#allocation4 + $0x44]]
        %v1921 = vstv %s1920
        %v1922 = vmul.f32 %v1921, %v1824
        %v1923 = vmul.f32 %v1921, %v1825
        %1926 = vrot.lane.b32.xlu0 %v1922, 126
        %v1927 = vpop.permute.xlu0 %1926
        %1928 = vrot.lane.b32.xlu0 %v1923, 126
        %v1929 = vpop.permute.xlu0 %1928
        %v1932 = vadd.f32 %v1876, %v1927
        %v1933 = vadd.f32 %v1877, %v1929
        %s1934 = sld [smem:[#allocation4 + $0x68]]
        %v1935 = vstv %s1934
        %v1936 = vmul.f32 %v1935, %v1824
        %v1937 = vmul.f32 %v1935, %v1825
        %1940 = vrot.lane.b32.xlu0 %v1936, 126
        %v1941 = vpop.permute.xlu0 %1940
        %1942 = vrot.lane.b32.xlu0 %v1937, 126
        %v1943 = vpop.permute.xlu0 %1942
        %v1946 = vadd.f32 %v1890, %v1941
        %v1947 = vadd.f32 %v1891, %v1943
        %s1948 = sld [smem:[#allocation4 + $0x8c]]
        %v1949 = vstv %s1948
        %v1950 = vmul.f32 %v1949, %v1824
        %v1951 = vmul.f32 %v1949, %v1825
        %1954 = vrot.lane.b32.xlu0 %v1950, 126
        %v1955 = vpop.permute.xlu0 %1954
        %1956 = vrot.lane.b32.xlu0 %v1951, 126
        %v1957 = vpop.permute.xlu0 %1956
        %v1960 = vadd.f32 %v1904, %v1955
        %v1961 = vadd.f32 %v1905, %v1957
        %v1962 = vld [vmem:[%s1685 + $0x2] sm:$0xff]
        %v1963 = vld [vmem:[%s1685 + $0xa] sm:$0xff]
        %s1964 = sld [smem:[#allocation4 + $0x21]]
        %v1965 = vstv %s1964
        %v1966 = vmul.f32 %v1965, %v1962
        %v1967 = vmul.f32 %v1965, %v1963
        %v1968 = vadd.f32 %v1918, %v1966
        %v1969 = vadd.f32 %v1919, %v1967
        %s1970 = sld [smem:[#allocation4 + $0x45]]
        %v1971 = vstv %s1970
        %v1972 = vmul.f32 %v1971, %v1962
        %v1973 = vmul.f32 %v1971, %v1963
        %v1974 = vadd.f32 %v1932, %v1972
        %v1975 = vadd.f32 %v1933, %v1973
        %s1976 = sld [smem:[#allocation4 + $0x69]]
        %v1977 = vstv %s1976
        %v1978 = vmul.f32 %v1977, %v1962
        %v1979 = vmul.f32 %v1977, %v1963
        %v1980 = vadd.f32 %v1946, %v1978
        %v1981 = vadd.f32 %v1947, %v1979
        %s1982 = sld [smem:[#allocation4 + $0x8d]]
        %v1983 = vstv %s1982
        %v1984 = vmul.f32 %v1983, %v1962
        %v1985 = vmul.f32 %v1983, %v1963
        %v1986 = vadd.f32 %v1960, %v1984
        %v1987 = vadd.f32 %v1961, %v1985
        %s1988 = sld [smem:[#allocation4 + $0x22]]
        %v1989 = vstv %s1988
        %v1990 = vmul.f32 %v1989, %v1962
        %v1991 = vmul.f32 %v1989, %v1963
        %1994 = vrot.lane.b32.xlu0 %v1990, 127
        %v1995 = vpop.permute.xlu0 %1994
        %1996 = vrot.lane.b32.xlu0 %v1991, 127
        %v1997 = vpop.permute.xlu0 %1996
        %v2000 = vadd.f32 %v1968, %v1995
        %v2001 = vadd.f32 %v1969, %v1997
        %s2002 = sld [smem:[#allocation4 + $0x46]]
        %v2003 = vstv %s2002
        %v2004 = vmul.f32 %v2003, %v1962
        %v2005 = vmul.f32 %v2003, %v1963
        %2008 = vrot.lane.b32.xlu0 %v2004, 127
        %v2009 = vpop.permute.xlu0 %2008
        %2010 = vrot.lane.b32.xlu0 %v2005, 127
        %v2011 = vpop.permute.xlu0 %2010
        %v2014 = vadd.f32 %v1974, %v2009
        %v2015 = vadd.f32 %v1975, %v2011
        %s2016 = sld [smem:[#allocation4 + $0x6a]]
        %v2017 = vstv %s2016
        %v2018 = vmul.f32 %v2017, %v1962
        %v2019 = vmul.f32 %v2017, %v1963
        %2022 = vrot.lane.b32.xlu0 %v2018, 127
        %v2023 = vpop.permute.xlu0 %2022
        %2024 = vrot.lane.b32.xlu0 %v2019, 127
        %v2025 = vpop.permute.xlu0 %2024
        %v2028 = vadd.f32 %v1980, %v2023
        %v2029 = vadd.f32 %v1981, %v2025
        %s2030 = sld [smem:[#allocation4 + $0x8e]]
        %v2031 = vstv %s2030
        %v2032 = vmul.f32 %v2031, %v1962
        %v2033 = vmul.f32 %v2031, %v1963
        %2036 = vrot.lane.b32.xlu0 %v2032, 127
        %v2037 = vpop.permute.xlu0 %2036
        %2038 = vrot.lane.b32.xlu0 %v2033, 127
        %v2039 = vpop.permute.xlu0 %2038
        %v2042 = vadd.f32 %v1986, %v2037
        %v2043 = vadd.f32 %v1987, %v2039
        %s2044 = sld [smem:[#allocation4 + $0x23]]
        %v2045 = vstv %s2044
        %v2046 = vmul.f32 %v2045, %v1962
        %v2047 = vmul.f32 %v2045, %v1963
        %2050 = vrot.lane.b32.xlu0 %v2046, 126
        %v2051 = vpop.permute.xlu0 %2050
        %2052 = vrot.lane.b32.xlu0 %v2047, 126
        %v2053 = vpop.permute.xlu0 %2052
        %v2056 = vadd.f32 %v2000, %v2051
        %v2057 = vadd.f32 %v2001, %v2053
        %s2058 = sld [smem:[#allocation4 + $0x47]]
        %v2059 = vstv %s2058
        %v2060 = vmul.f32 %v2059, %v1962
        %v2061 = vmul.f32 %v2059, %v1963
        %2064 = vrot.lane.b32.xlu0 %v2060, 126
        %v2065 = vpop.permute.xlu0 %2064
        %2066 = vrot.lane.b32.xlu0 %v2061, 126
        %v2067 = vpop.permute.xlu0 %2066
        %v2070 = vadd.f32 %v2014, %v2065
        %v2071 = vadd.f32 %v2015, %v2067
        %s2072 = sld [smem:[#allocation4 + $0x6b]]
        %v2073 = vstv %s2072
        %v2074 = vmul.f32 %v2073, %v1962
        %v2075 = vmul.f32 %v2073, %v1963
        %2078 = vrot.lane.b32.xlu0 %v2074, 126
        %v2079 = vpop.permute.xlu0 %2078
        %2080 = vrot.lane.b32.xlu0 %v2075, 126
        %v2081 = vpop.permute.xlu0 %2080
        %v2084 = vadd.f32 %v2028, %v2079
        %v2085 = vadd.f32 %v2029, %v2081
        %s2086 = sld [smem:[#allocation4 + $0x8f]]
        %v2087 = vstv %s2086
        %v2088 = vmul.f32 %v2087, %v1962
        %v2089 = vmul.f32 %v2087, %v1963
        %2092 = vrot.lane.b32.xlu0 %v2088, 126
        %v2093 = vpop.permute.xlu0 %2092
        %2094 = vrot.lane.b32.xlu0 %v2089, 126
        %v2095 = vpop.permute.xlu0 %2094
        %v2098 = vadd.f32 %v2042, %v2093
        %v2099 = vadd.f32 %v2043, %v2095
        %v2100 = vmax.f32 %v2056, 0.0
        %v2101 = vmax.f32 %v2057, 0.0
        %2104 = vrot.lane.b32.xlu0 %v2100, 1
        %v2105 = vpop.permute.xlu0 %2104
        %2106 = vrot.lane.b32.xlu0 %v2101, 1
        %v2107 = vpop.permute.xlu0 %2106
        %2110 = vst.msk [vmem:[#allocation3 + $0x1] sm:$0xff] %vm408, %v2105
        %2111 = vst.msk [vmem:[#allocation3 + $0x9] sm:$0xff] %vm408, %v2107
        %v2112 = vmax.f32 %v2070, 0.0
        %v2113 = vmax.f32 %v2071, 0.0
        %2116 = vrot.lane.b32.xlu0 %v2112, 1
        %v2117 = vpop.permute.xlu0 %2116
        %2118 = vrot.lane.b32.xlu0 %v2113, 1
        %v2119 = vpop.permute.xlu0 %2118
        %s2122 = scalar_lea.vmem [#allocation3], 24
        %2123 = vst.msk [vmem:[%s2122 + $0x1] sm:$0xff] %vm408, %v2117
        %2124 = vst.msk [vmem:[%s2122 + $0x9] sm:$0xff] %vm408, %v2119
        %v2125 = vmax.f32 %v2084, 0.0
        %v2126 = vmax.f32 %v2085, 0.0
        %2129 = vrot.lane.b32.xlu0 %v2125, 1
        %v2130 = vpop.permute.xlu0 %2129
        %2131 = vrot.lane.b32.xlu0 %v2126, 1
        %v2132 = vpop.permute.xlu0 %2131
        %s2135 = scalar_lea.vmem [#allocation3], 48
        %2136 = vst.msk [vmem:[%s2135 + $0x1] sm:$0xff] %vm408, %v2130
        %2137 = vst.msk [vmem:[%s2135 + $0x9] sm:$0xff] %vm408, %v2132
        %v2138 = vmax.f32 %v2098, 0.0
        %v2139 = vmax.f32 %v2099, 0.0
        %2142 = vrot.lane.b32.xlu0 %v2138, 1
        %v2143 = vpop.permute.xlu0 %2142
        %2144 = vrot.lane.b32.xlu0 %v2139, 1
        %v2145 = vpop.permute.xlu0 %2144
        %s2148 = scalar_lea.vmem [#allocation3], 72
        %2149 = vst.msk [vmem:[%s2148 + $0x1] sm:$0xff] %vm408, %v2143
        %2150 = vst.msk [vmem:[%s2148 + $0x9] sm:$0xff] %vm408, %v2145
        %s2151 = sld [smem:[#allocation10]]
        %v2152 = vstv %s2151
        %v2153 = vadd.f32 %v2152, 0.0
        %s2154 = sld [smem:[#allocation10 + $0x1]]
        %v2155 = vstv %s2154
        %v2156 = vadd.f32 %v2155, 0.0
        %s2157 = sld [smem:[#allocation10 + $0x2]]
        %v2158 = vstv %s2157
        %v2159 = vadd.f32 %v2158, 0.0
        %s2160 = sld [smem:[#allocation10 + $0x3]]
        %v2161 = vstv %s2160
        %v2162 = vadd.f32 %v2161, 0.0
        %v2163 = vld [vmem:[#allocation3] sm:$0xff]
        %v2164 = vld [vmem:[#allocation3 + $0x8] sm:$0xff]
        %s2165 = sld [smem:[#allocation9]]
        %v2166 = vstv %s2165
        %v2167 = vmul.f32 %v2166, %v2163
        %v2168 = vmul.f32 %v2166, %v2164
        %v2169 = vadd.f32 %v2153, %v2167
        %v2170 = vadd.f32 %v2153, %v2168
        %s2171 = sld [smem:[#allocation9 + $0x24]]
        %v2172 = vstv %s2171
        %v2173 = vmul.f32 %v2172, %v2163
        %v2174 = vmul.f32 %v2172, %v2164
        %v2175 = vadd.f32 %v2156, %v2173
        %v2176 = vadd.f32 %v2156, %v2174
        %s2177 = sld [smem:[#allocation9 + $0x48]]
        %v2178 = vstv %s2177
        %v2179 = vmul.f32 %v2178, %v2163
        %v2180 = vmul.f32 %v2178, %v2164
        %v2181 = vadd.f32 %v2159, %v2179
        %v2182 = vadd.f32 %v2159, %v2180
        %s2183 = sld [smem:[#allocation9 + $0x6c]]
        %v2184 = vstv %s2183
        %v2185 = vmul.f32 %v2184, %v2163
        %v2186 = vmul.f32 %v2184, %v2164
        %v2187 = vadd.f32 %v2162, %v2185
        %v2188 = vadd.f32 %v2162, %v2186
        %s2189 = sld [smem:[#allocation9 + $0x1]]
        %v2190 = vstv %s2189
        %v2191 = vmul.f32 %v2190, %v2163
        %v2192 = vmul.f32 %v2190, %v2164
        %2195 = vrot.lane.b32.xlu0 %v2191, 127
        %v2196 = vpop.permute.xlu0 %2195
        %2197 = vrot.lane.b32.xlu0 %v2192, 127
        %v2198 = vpop.permute.xlu0 %2197
        %v2201 = vadd.f32 %v2169, %v2196
        %v2202 = vadd.f32 %v2170, %v2198
        %s2203 = sld [smem:[#allocation9 + $0x25]]
        %v2204 = vstv %s2203
        %v2205 = vmul.f32 %v2204, %v2163
        %v2206 = vmul.f32 %v2204, %v2164
        %2209 = vrot.lane.b32.xlu0 %v2205, 127
        %v2210 = vpop.permute.xlu0 %2209
        %2211 = vrot.lane.b32.xlu0 %v2206, 127
        %v2212 = vpop.permute.xlu0 %2211
        %v2215 = vadd.f32 %v2175, %v2210
        %v2216 = vadd.f32 %v2176, %v2212
        %s2217 = sld [smem:[#allocation9 + $0x49]]
        %v2218 = vstv %s2217
        %v2219 = vmul.f32 %v2218, %v2163
        %v2220 = vmul.f32 %v2218, %v2164
        %2223 = vrot.lane.b32.xlu0 %v2219, 127
        %v2224 = vpop.permute.xlu0 %2223
        %2225 = vrot.lane.b32.xlu0 %v2220, 127
        %v2226 = vpop.permute.xlu0 %2225
        %v2229 = vadd.f32 %v2181, %v2224
        %v2230 = vadd.f32 %v2182, %v2226
        %s2231 = sld [smem:[#allocation9 + $0x6d]]
        %v2232 = vstv %s2231
        %v2233 = vmul.f32 %v2232, %v2163
        %v2234 = vmul.f32 %v2232, %v2164
        %2237 = vrot.lane.b32.xlu0 %v2233, 127
        %v2238 = vpop.permute.xlu0 %2237
        %2239 = vrot.lane.b32.xlu0 %v2234, 127
        %v2240 = vpop.permute.xlu0 %2239
        %v2243 = vadd.f32 %v2187, %v2238
        %v2244 = vadd.f32 %v2188, %v2240
        %s2245 = sld [smem:[#allocation9 + $0x2]]
        %v2246 = vstv %s2245
        %v2247 = vmul.f32 %v2246, %v2163
        %v2248 = vmul.f32 %v2246, %v2164
        %2251 = vrot.lane.b32.xlu0 %v2247, 126
        %v2252 = vpop.permute.xlu0 %2251
        %2253 = vrot.lane.b32.xlu0 %v2248, 126
        %v2254 = vpop.permute.xlu0 %2253
        %v2257 = vadd.f32 %v2201, %v2252
        %v2258 = vadd.f32 %v2202, %v2254
        %s2259 = sld [smem:[#allocation9 + $0x26]]
        %v2260 = vstv %s2259
        %v2261 = vmul.f32 %v2260, %v2163
        %v2262 = vmul.f32 %v2260, %v2164
        %2265 = vrot.lane.b32.xlu0 %v2261, 126
        %v2266 = vpop.permute.xlu0 %2265
        %2267 = vrot.lane.b32.xlu0 %v2262, 126
        %v2268 = vpop.permute.xlu0 %2267
        %v2271 = vadd.f32 %v2215, %v2266
        %v2272 = vadd.f32 %v2216, %v2268
        %s2273 = sld [smem:[#allocation9 + $0x4a]]
        %v2274 = vstv %s2273
        %v2275 = vmul.f32 %v2274, %v2163
        %v2276 = vmul.f32 %v2274, %v2164
        %2279 = vrot.lane.b32.xlu0 %v2275, 126
        %v2280 = vpop.permute.xlu0 %2279
        %2281 = vrot.lane.b32.xlu0 %v2276, 126
        %v2282 = vpop.permute.xlu0 %2281
        %v2285 = vadd.f32 %v2229, %v2280
        %v2286 = vadd.f32 %v2230, %v2282
        %s2287 = sld [smem:[#allocation9 + $0x6e]]
        %v2288 = vstv %s2287
        %v2289 = vmul.f32 %v2288, %v2163
        %v2290 = vmul.f32 %v2288, %v2164
        %2293 = vrot.lane.b32.xlu0 %v2289, 126
        %v2294 = vpop.permute.xlu0 %2293
        %2295 = vrot.lane.b32.xlu0 %v2290, 126
        %v2296 = vpop.permute.xlu0 %2295
        %v2299 = vadd.f32 %v2243, %v2294
        %v2300 = vadd.f32 %v2244, %v2296
        %v2301 = vld [vmem:[#allocation3 + $0x1] sm:$0xff]
        %v2302 = vld [vmem:[#allocation3 + $0x9] sm:$0xff]
        %s2303 = sld [smem:[#allocation9 + $0x3]]
        %v2304 = vstv %s2303
        %v2305 = vmul.f32 %v2304, %v2301
        %v2306 = vmul.f32 %v2304, %v2302
        %v2307 = vadd.f32 %v2257, %v2305
        %v2308 = vadd.f32 %v2258, %v2306
        %s2309 = sld [smem:[#allocation9 + $0x27]]
        %v2310 = vstv %s2309
        %v2311 = vmul.f32 %v2310, %v2301
        %v2312 = vmul.f32 %v2310, %v2302
        %v2313 = vadd.f32 %v2271, %v2311
        %v2314 = vadd.f32 %v2272, %v2312
        %s2315 = sld [smem:[#allocation9 + $0x4b]]
        %v2316 = vstv %s2315
        %v2317 = vmul.f32 %v2316, %v2301
        %v2318 = vmul.f32 %v2316, %v2302
        %v2319 = vadd.f32 %v2285, %v2317
        %v2320 = vadd.f32 %v2286, %v2318
        %s2321 = sld [smem:[#allocation9 + $0x6f]]
        %v2322 = vstv %s2321
        %v2323 = vmul.f32 %v2322, %v2301
        %v2324 = vmul.f32 %v2322, %v2302
        %v2325 = vadd.f32 %v2299, %v2323
        %v2326 = vadd.f32 %v2300, %v2324
        %s2327 = sld [smem:[#allocation9 + $0x4]]
        %v2328 = vstv %s2327
        %v2329 = vmul.f32 %v2328, %v2301
        %v2330 = vmul.f32 %v2328, %v2302
        %2333 = vrot.lane.b32.xlu0 %v2329, 127
        %v2334 = vpop.permute.xlu0 %2333
        %2335 = vrot.lane.b32.xlu0 %v2330, 127
        %v2336 = vpop.permute.xlu0 %2335
        %v2339 = vadd.f32 %v2307, %v2334
        %v2340 = vadd.f32 %v2308, %v2336
        %s2341 = sld [smem:[#allocation9 + $0x28]]
        %v2342 = vstv %s2341
        %v2343 = vmul.f32 %v2342, %v2301
        %v2344 = vmul.f32 %v2342, %v2302
        %2347 = vrot.lane.b32.xlu0 %v2343, 127
        %v2348 = vpop.permute.xlu0 %2347
        %2349 = vrot.lane.b32.xlu0 %v2344, 127
        %v2350 = vpop.permute.xlu0 %2349
        %v2353 = vadd.f32 %v2313, %v2348
        %v2354 = vadd.f32 %v2314, %v2350
        %s2355 = sld [smem:[#allocation9 + $0x4c]]
        %v2356 = vstv %s2355
        %v2357 = vmul.f32 %v2356, %v2301
        %v2358 = vmul.f32 %v2356, %v2302
        %2361 = vrot.lane.b32.xlu0 %v2357, 127
        %v2362 = vpop.permute.xlu0 %2361
        %2363 = vrot.lane.b32.xlu0 %v2358, 127
        %v2364 = vpop.permute.xlu0 %2363
        %v2367 = vadd.f32 %v2319, %v2362
        %v2368 = vadd.f32 %v2320, %v2364
        %s2369 = sld [smem:[#allocation9 + $0x70]]
        %v2370 = vstv %s2369
        %v2371 = vmul.f32 %v2370, %v2301
        %v2372 = vmul.f32 %v2370, %v2302
        %2375 = vrot.lane.b32.xlu0 %v2371, 127
        %v2376 = vpop.permute.xlu0 %2375
        %2377 = vrot.lane.b32.xlu0 %v2372, 127
        %v2378 = vpop.permute.xlu0 %2377
        %v2381 = vadd.f32 %v2325, %v2376
        %v2382 = vadd.f32 %v2326, %v2378
        %s2383 = sld [smem:[#allocation9 + $0x5]]
        %v2384 = vstv %s2383
        %v2385 = vmul.f32 %v2384, %v2301
        %v2386 = vmul.f32 %v2384, %v2302
        %2389 = vrot.lane.b32.xlu0 %v2385, 126
        %v2390 = vpop.permute.xlu0 %2389
        %2391 = vrot.lane.b32.xlu0 %v2386, 126
        %v2392 = vpop.permute.xlu0 %2391
        %v2395 = vadd.f32 %v2339, %v2390
        %v2396 = vadd.f32 %v2340, %v2392
        %s2397 = sld [smem:[#allocation9 + $0x29]]
        %v2398 = vstv %s2397
        %v2399 = vmul.f32 %v2398, %v2301
        %v2400 = vmul.f32 %v2398, %v2302
        %2403 = vrot.lane.b32.xlu0 %v2399, 126
        %v2404 = vpop.permute.xlu0 %2403
        %2405 = vrot.lane.b32.xlu0 %v2400, 126
        %v2406 = vpop.permute.xlu0 %2405
        %v2409 = vadd.f32 %v2353, %v2404
        %v2410 = vadd.f32 %v2354, %v2406
        %s2411 = sld [smem:[#allocation9 + $0x4d]]
        %v2412 = vstv %s2411
        %v2413 = vmul.f32 %v2412, %v2301
        %v2414 = vmul.f32 %v2412, %v2302
        %2417 = vrot.lane.b32.xlu0 %v2413, 126
        %v2418 = vpop.permute.xlu0 %2417
        %2419 = vrot.lane.b32.xlu0 %v2414, 126
        %v2420 = vpop.permute.xlu0 %2419
        %v2423 = vadd.f32 %v2367, %v2418
        %v2424 = vadd.f32 %v2368, %v2420
        %s2425 = sld [smem:[#allocation9 + $0x71]]
        %v2426 = vstv %s2425
        %v2427 = vmul.f32 %v2426, %v2301
        %v2428 = vmul.f32 %v2426, %v2302
        %2431 = vrot.lane.b32.xlu0 %v2427, 126
        %v2432 = vpop.permute.xlu0 %2431
        %2433 = vrot.lane.b32.xlu0 %v2428, 126
        %v2434 = vpop.permute.xlu0 %2433
        %v2437 = vadd.f32 %v2381, %v2432
        %v2438 = vadd.f32 %v2382, %v2434
        %v2439 = vld [vmem:[#allocation3 + $0x2] sm:$0xff]
        %v2440 = vld [vmem:[#allocation3 + $0xa] sm:$0xff]
        %s2441 = sld [smem:[#allocation9 + $0x6]]
        %v2442 = vstv %s2441
        %v2443 = vmul.f32 %v2442, %v2439
        %v2444 = vmul.f32 %v2442, %v2440
        %v2445 = vadd.f32 %v2395, %v2443
        %v2446 = vadd.f32 %v2396, %v2444
        %s2447 = sld [smem:[#allocation9 + $0x2a]]
        %v2448 = vstv %s2447
        %v2449 = vmul.f32 %v2448, %v2439
        %v2450 = vmul.f32 %v2448, %v2440
        %v2451 = vadd.f32 %v2409, %v2449
        %v2452 = vadd.f32 %v2410, %v2450
        %s2453 = sld [smem:[#allocation9 + $0x4e]]
        %v2454 = vstv %s2453
        %v2455 = vmul.f32 %v2454, %v2439
        %v2456 = vmul.f32 %v2454, %v2440
        %v2457 = vadd.f32 %v2423, %v2455
        %v2458 = vadd.f32 %v2424, %v2456
        %s2459 = sld [smem:[#allocation9 + $0x72]]
        %v2460 = vstv %s2459
        %v2461 = vmul.f32 %v2460, %v2439
        %v2462 = vmul.f32 %v2460, %v2440
        %v2463 = vadd.f32 %v2437, %v2461
        %v2464 = vadd.f32 %v2438, %v2462
        %s2465 = sld [smem:[#allocation9 + $0x7]]
        %v2466 = vstv %s2465
        %v2467 = vmul.f32 %v2466, %v2439
        %v2468 = vmul.f32 %v2466, %v2440
        %2471 = vrot.lane.b32.xlu0 %v2467, 127
        %v2472 = vpop.permute.xlu0 %2471
        %2473 = vrot.lane.b32.xlu0 %v2468, 127
        %v2474 = vpop.permute.xlu0 %2473
        %v2477 = vadd.f32 %v2445, %v2472
        %v2478 = vadd.f32 %v2446, %v2474
        %s2479 = sld [smem:[#allocation9 + $0x2b]]
        %v2480 = vstv %s2479
        %v2481 = vmul.f32 %v2480, %v2439
        %v2482 = vmul.f32 %v2480, %v2440
        %2485 = vrot.lane.b32.xlu0 %v2481, 127
        %v2486 = vpop.permute.xlu0 %2485
        %2487 = vrot.lane.b32.xlu0 %v2482, 127
        %v2488 = vpop.permute.xlu0 %2487
        %v2491 = vadd.f32 %v2451, %v2486
        %v2492 = vadd.f32 %v2452, %v2488
        %s2493 = sld [smem:[#allocation9 + $0x4f]]
        %v2494 = vstv %s2493
        %v2495 = vmul.f32 %v2494, %v2439
        %v2496 = vmul.f32 %v2494, %v2440
        %2499 = vrot.lane.b32.xlu0 %v2495, 127
        %v2500 = vpop.permute.xlu0 %2499
        %2501 = vrot.lane.b32.xlu0 %v2496, 127
        %v2502 = vpop.permute.xlu0 %2501
        %v2505 = vadd.f32 %v2457, %v2500
        %v2506 = vadd.f32 %v2458, %v2502
        %s2507 = sld [smem:[#allocation9 + $0x73]]
        %v2508 = vstv %s2507
        %v2509 = vmul.f32 %v2508, %v2439
        %v2510 = vmul.f32 %v2508, %v2440
        %2513 = vrot.lane.b32.xlu0 %v2509, 127
        %v2514 = vpop.permute.xlu0 %2513
        %2515 = vrot.lane.b32.xlu0 %v2510, 127
        %v2516 = vpop.permute.xlu0 %2515
        %v2519 = vadd.f32 %v2463, %v2514
        %v2520 = vadd.f32 %v2464, %v2516
        %s2521 = sld [smem:[#allocation9 + $0x8]]
        %v2522 = vstv %s2521
        %v2523 = vmul.f32 %v2522, %v2439
        %v2524 = vmul.f32 %v2522, %v2440
        %2527 = vrot.lane.b32.xlu0 %v2523, 126
        %v2528 = vpop.permute.xlu0 %2527
        %2529 = vrot.lane.b32.xlu0 %v2524, 126
        %v2530 = vpop.permute.xlu0 %2529
        %v2533 = vadd.f32 %v2477, %v2528
        %v2534 = vadd.f32 %v2478, %v2530
        %s2535 = sld [smem:[#allocation9 + $0x2c]]
        %v2536 = vstv %s2535
        %v2537 = vmul.f32 %v2536, %v2439
        %v2538 = vmul.f32 %v2536, %v2440
        %2541 = vrot.lane.b32.xlu0 %v2537, 126
        %v2542 = vpop.permute.xlu0 %2541
        %2543 = vrot.lane.b32.xlu0 %v2538, 126
        %v2544 = vpop.permute.xlu0 %2543
        %v2547 = vadd.f32 %v2491, %v2542
        %v2548 = vadd.f32 %v2492, %v2544
        %s2549 = sld [smem:[#allocation9 + $0x50]]
        %v2550 = vstv %s2549
        %v2551 = vmul.f32 %v2550, %v2439
        %v2552 = vmul.f32 %v2550, %v2440
        %2555 = vrot.lane.b32.xlu0 %v2551, 126
        %v2556 = vpop.permute.xlu0 %2555
        %2557 = vrot.lane.b32.xlu0 %v2552, 126
        %v2558 = vpop.permute.xlu0 %2557
        %v2561 = vadd.f32 %v2505, %v2556
        %v2562 = vadd.f32 %v2506, %v2558
        %s2563 = sld [smem:[#allocation9 + $0x74]]
        %v2564 = vstv %s2563
        %v2565 = vmul.f32 %v2564, %v2439
        %v2566 = vmul.f32 %v2564, %v2440
        %2569 = vrot.lane.b32.xlu0 %v2565, 126
        %v2570 = vpop.permute.xlu0 %2569
        %2571 = vrot.lane.b32.xlu0 %v2566, 126
        %v2572 = vpop.permute.xlu0 %2571
        %v2575 = vadd.f32 %v2519, %v2570
        %v2576 = vadd.f32 %v2520, %v2572
        %v2577 = vld [vmem:[%s2122] sm:$0xff]
        %v2578 = vld [vmem:[%s2122 + $0x8] sm:$0xff]
        %s2579 = sld [smem:[#allocation9 + $0x9]]
        %v2580 = vstv %s2579
        %v2581 = vmul.f32 %v2580, %v2577
        %v2582 = vmul.f32 %v2580, %v2578
        %v2583 = vadd.f32 %v2533, %v2581
        %v2584 = vadd.f32 %v2534, %v2582
        %s2585 = sld [smem:[#allocation9 + $0x2d]]
        %v2586 = vstv %s2585
        %v2587 = vmul.f32 %v2586, %v2577
        %v2588 = vmul.f32 %v2586, %v2578
        %v2589 = vadd.f32 %v2547, %v2587
        %v2590 = vadd.f32 %v2548, %v2588
        %s2591 = sld [smem:[#allocation9 + $0x51]]
        %v2592 = vstv %s2591
        %v2593 = vmul.f32 %v2592, %v2577
        %v2594 = vmul.f32 %v2592, %v2578
        %v2595 = vadd.f32 %v2561, %v2593
        %v2596 = vadd.f32 %v2562, %v2594
        %s2597 = sld [smem:[#allocation9 + $0x75]]
        %v2598 = vstv %s2597
        %v2599 = vmul.f32 %v2598, %v2577
        %v2600 = vmul.f32 %v2598, %v2578
        %v2601 = vadd.f32 %v2575, %v2599
        %v2602 = vadd.f32 %v2576, %v2600
        %s2603 = sld [smem:[#allocation9 + $0xa]]
        %v2604 = vstv %s2603
        %v2605 = vmul.f32 %v2604, %v2577
        %v2606 = vmul.f32 %v2604, %v2578
        %2609 = vrot.lane.b32.xlu0 %v2605, 127
        %v2610 = vpop.permute.xlu0 %2609
        %2611 = vrot.lane.b32.xlu0 %v2606, 127
        %v2612 = vpop.permute.xlu0 %2611
        %v2615 = vadd.f32 %v2583, %v2610
        %v2616 = vadd.f32 %v2584, %v2612
        %s2617 = sld [smem:[#allocation9 + $0x2e]]
        %v2618 = vstv %s2617
        %v2619 = vmul.f32 %v2618, %v2577
        %v2620 = vmul.f32 %v2618, %v2578
        %2623 = vrot.lane.b32.xlu0 %v2619, 127
        %v2624 = vpop.permute.xlu0 %2623
        %2625 = vrot.lane.b32.xlu0 %v2620, 127
        %v2626 = vpop.permute.xlu0 %2625
        %v2629 = vadd.f32 %v2589, %v2624
        %v2630 = vadd.f32 %v2590, %v2626
        %s2631 = sld [smem:[#allocation9 + $0x52]]
        %v2632 = vstv %s2631
        %v2633 = vmul.f32 %v2632, %v2577
        %v2634 = vmul.f32 %v2632, %v2578
        %2637 = vrot.lane.b32.xlu0 %v2633, 127
        %v2638 = vpop.permute.xlu0 %2637
        %2639 = vrot.lane.b32.xlu0 %v2634, 127
        %v2640 = vpop.permute.xlu0 %2639
        %v2643 = vadd.f32 %v2595, %v2638
        %v2644 = vadd.f32 %v2596, %v2640
        %s2645 = sld [smem:[#allocation9 + $0x76]]
        %v2646 = vstv %s2645
        %v2647 = vmul.f32 %v2646, %v2577
        %v2648 = vmul.f32 %v2646, %v2578
        %2651 = vrot.lane.b32.xlu0 %v2647, 127
        %v2652 = vpop.permute.xlu0 %2651
        %2653 = vrot.lane.b32.xlu0 %v2648, 127
        %v2654 = vpop.permute.xlu0 %2653
        %v2657 = vadd.f32 %v2601, %v2652
        %v2658 = vadd.f32 %v2602, %v2654
        %s2659 = sld [smem:[#allocation9 + $0xb]]
        %v2660 = vstv %s2659
        %v2661 = vmul.f32 %v2660, %v2577
        %v2662 = vmul.f32 %v2660, %v2578
        %2665 = vrot.lane.b32.xlu0 %v2661, 126
        %v2666 = vpop.permute.xlu0 %2665
        %2667 = vrot.lane.b32.xlu0 %v2662, 126
        %v2668 = vpop.permute.xlu0 %2667
        %v2671 = vadd.f32 %v2615, %v2666
        %v2672 = vadd.f32 %v2616, %v2668
        %s2673 = sld [smem:[#allocation9 + $0x2f]]
        %v2674 = vstv %s2673
        %v2675 = vmul.f32 %v2674, %v2577
        %v2676 = vmul.f32 %v2674, %v2578
        %2679 = vrot.lane.b32.xlu0 %v2675, 126
        %v2680 = vpop.permute.xlu0 %2679
        %2681 = vrot.lane.b32.xlu0 %v2676, 126
        %v2682 = vpop.permute.xlu0 %2681
        %v2685 = vadd.f32 %v2629, %v2680
        %v2686 = vadd.f32 %v2630, %v2682
        %s2687 = sld [smem:[#allocation9 + $0x53]]
        %v2688 = vstv %s2687
        %v2689 = vmul.f32 %v2688, %v2577
        %v2690 = vmul.f32 %v2688, %v2578
        %2693 = vrot.lane.b32.xlu0 %v2689, 126
        %v2694 = vpop.permute.xlu0 %2693
        %2695 = vrot.lane.b32.xlu0 %v2690, 126
        %v2696 = vpop.permute.xlu0 %2695
        %v2699 = vadd.f32 %v2643, %v2694
        %v2700 = vadd.f32 %v2644, %v2696
        %s2701 = sld [smem:[#allocation9 + $0x77]]
        %v2702 = vstv %s2701
        %v2703 = vmul.f32 %v2702, %v2577
        %v2704 = vmul.f32 %v2702, %v2578
        %2707 = vrot.lane.b32.xlu0 %v2703, 126
        %v2708 = vpop.permute.xlu0 %2707
        %2709 = vrot.lane.b32.xlu0 %v2704, 126
        %v2710 = vpop.permute.xlu0 %2709
        %v2713 = vadd.f32 %v2657, %v2708
        %v2714 = vadd.f32 %v2658, %v2710
        %v2715 = vld [vmem:[%s2122 + $0x1] sm:$0xff]
        %v2716 = vld [vmem:[%s2122 + $0x9] sm:$0xff]
        %s2717 = sld [smem:[#allocation9 + $0xc]]
        %v2718 = vstv %s2717
        %v2719 = vmul.f32 %v2718, %v2715
        %v2720 = vmul.f32 %v2718, %v2716
        %v2721 = vadd.f32 %v2671, %v2719
        %v2722 = vadd.f32 %v2672, %v2720
        %s2723 = sld [smem:[#allocation9 + $0x30]]
        %v2724 = vstv %s2723
        %v2725 = vmul.f32 %v2724, %v2715
        %v2726 = vmul.f32 %v2724, %v2716
        %v2727 = vadd.f32 %v2685, %v2725
        %v2728 = vadd.f32 %v2686, %v2726
        %s2729 = sld [smem:[#allocation9 + $0x54]]
        %v2730 = vstv %s2729
        %v2731 = vmul.f32 %v2730, %v2715
        %v2732 = vmul.f32 %v2730, %v2716
        %v2733 = vadd.f32 %v2699, %v2731
        %v2734 = vadd.f32 %v2700, %v2732
        %s2735 = sld [smem:[#allocation9 + $0x78]]
        %v2736 = vstv %s2735
        %v2737 = vmul.f32 %v2736, %v2715
        %v2738 = vmul.f32 %v2736, %v2716
        %v2739 = vadd.f32 %v2713, %v2737
        %v2740 = vadd.f32 %v2714, %v2738
        %s2741 = sld [smem:[#allocation9 + $0xd]]
        %v2742 = vstv %s2741
        %v2743 = vmul.f32 %v2742, %v2715
        %v2744 = vmul.f32 %v2742, %v2716
        %2747 = vrot.lane.b32.xlu0 %v2743, 127
        %v2748 = vpop.permute.xlu0 %2747
        %2749 = vrot.lane.b32.xlu0 %v2744, 127
        %v2750 = vpop.permute.xlu0 %2749
        %v2753 = vadd.f32 %v2721, %v2748
        %v2754 = vadd.f32 %v2722, %v2750
        %s2755 = sld [smem:[#allocation9 + $0x31]]
        %v2756 = vstv %s2755
        %v2757 = vmul.f32 %v2756, %v2715
        %v2758 = vmul.f32 %v2756, %v2716
        %2761 = vrot.lane.b32.xlu0 %v2757, 127
        %v2762 = vpop.permute.xlu0 %2761
        %2763 = vrot.lane.b32.xlu0 %v2758, 127
        %v2764 = vpop.permute.xlu0 %2763
        %v2767 = vadd.f32 %v2727, %v2762
        %v2768 = vadd.f32 %v2728, %v2764
        %s2769 = sld [smem:[#allocation9 + $0x55]]
        %v2770 = vstv %s2769
        %v2771 = vmul.f32 %v2770, %v2715
        %v2772 = vmul.f32 %v2770, %v2716
        %2775 = vrot.lane.b32.xlu0 %v2771, 127
        %v2776 = vpop.permute.xlu0 %2775
        %2777 = vrot.lane.b32.xlu0 %v2772, 127
        %v2778 = vpop.permute.xlu0 %2777
        %v2781 = vadd.f32 %v2733, %v2776
        %v2782 = vadd.f32 %v2734, %v2778
        %s2783 = sld [smem:[#allocation9 + $0x79]]
        %v2784 = vstv %s2783
        %v2785 = vmul.f32 %v2784, %v2715
        %v2786 = vmul.f32 %v2784, %v2716
        %2789 = vrot.lane.b32.xlu0 %v2785, 127
        %v2790 = vpop.permute.xlu0 %2789
        %2791 = vrot.lane.b32.xlu0 %v2786, 127
        %v2792 = vpop.permute.xlu0 %2791
        %v2795 = vadd.f32 %v2739, %v2790
        %v2796 = vadd.f32 %v2740, %v2792
        %s2797 = sld [smem:[#allocation9 + $0xe]]
        %v2798 = vstv %s2797
        %v2799 = vmul.f32 %v2798, %v2715
        %v2800 = vmul.f32 %v2798, %v2716
        %2803 = vrot.lane.b32.xlu0 %v2799, 126
        %v2804 = vpop.permute.xlu0 %2803
        %2805 = vrot.lane.b32.xlu0 %v2800, 126
        %v2806 = vpop.permute.xlu0 %2805
        %v2809 = vadd.f32 %v2753, %v2804
        %v2810 = vadd.f32 %v2754, %v2806
        %s2811 = sld [smem:[#allocation9 + $0x32]]
        %v2812 = vstv %s2811
        %v2813 = vmul.f32 %v2812, %v2715
        %v2814 = vmul.f32 %v2812, %v2716
        %2817 = vrot.lane.b32.xlu0 %v2813, 126
        %v2818 = vpop.permute.xlu0 %2817
        %2819 = vrot.lane.b32.xlu0 %v2814, 126
        %v2820 = vpop.permute.xlu0 %2819
        %v2823 = vadd.f32 %v2767, %v2818
        %v2824 = vadd.f32 %v2768, %v2820
        %s2825 = sld [smem:[#allocation9 + $0x56]]
        %v2826 = vstv %s2825
        %v2827 = vmul.f32 %v2826, %v2715
        %v2828 = vmul.f32 %v2826, %v2716
        %2831 = vrot.lane.b32.xlu0 %v2827, 126
        %v2832 = vpop.permute.xlu0 %2831
        %2833 = vrot.lane.b32.xlu0 %v2828, 126
        %v2834 = vpop.permute.xlu0 %2833
        %v2837 = vadd.f32 %v2781, %v2832
        %v2838 = vadd.f32 %v2782, %v2834
        %s2839 = sld [smem:[#allocation9 + $0x7a]]
        %v2840 = vstv %s2839
        %v2841 = vmul.f32 %v2840, %v2715
        %v2842 = vmul.f32 %v2840, %v2716
        %2845 = vrot.lane.b32.xlu0 %v2841, 126
        %v2846 = vpop.permute.xlu0 %2845
        %2847 = vrot.lane.b32.xlu0 %v2842, 126
        %v2848 = vpop.permute.xlu0 %2847
        %v2851 = vadd.f32 %v2795, %v2846
        %v2852 = vadd.f32 %v2796, %v2848
        %v2853 = vld [vmem:[%s2122 + $0x2] sm:$0xff]
        %v2854 = vld [vmem:[%s2122 + $0xa] sm:$0xff]
        %s2855 = sld [smem:[#allocation9 + $0xf]]
        %v2856 = vstv %s2855
        %v2857 = vmul.f32 %v2856, %v2853
        %v2858 = vmul.f32 %v2856, %v2854
        %v2859 = vadd.f32 %v2809, %v2857
        %v2860 = vadd.f32 %v2810, %v2858
        %s2861 = sld [smem:[#allocation9 + $0x33]]
        %v2862 = vstv %s2861
        %v2863 = vmul.f32 %v2862, %v2853
        %v2864 = vmul.f32 %v2862, %v2854
        %v2865 = vadd.f32 %v2823, %v2863
        %v2866 = vadd.f32 %v2824, %v2864
        %s2867 = sld [smem:[#allocation9 + $0x57]]
        %v2868 = vstv %s2867
        %v2869 = vmul.f32 %v2868, %v2853
        %v2870 = vmul.f32 %v2868, %v2854
        %v2871 = vadd.f32 %v2837, %v2869
        %v2872 = vadd.f32 %v2838, %v2870
        %s2873 = sld [smem:[#allocation9 + $0x7b]]
        %v2874 = vstv %s2873
        %v2875 = vmul.f32 %v2874, %v2853
        %v2876 = vmul.f32 %v2874, %v2854
        %v2877 = vadd.f32 %v2851, %v2875
        %v2878 = vadd.f32 %v2852, %v2876
        %s2879 = sld [smem:[#allocation9 + $0x10]]
        %v2880 = vstv %s2879
        %v2881 = vmul.f32 %v2880, %v2853
        %v2882 = vmul.f32 %v2880, %v2854
        %2885 = vrot.lane.b32.xlu0 %v2881, 127
        %v2886 = vpop.permute.xlu0 %2885
        %2887 = vrot.lane.b32.xlu0 %v2882, 127
        %v2888 = vpop.permute.xlu0 %2887
        %v2891 = vadd.f32 %v2859, %v2886
        %v2892 = vadd.f32 %v2860, %v2888
        %s2893 = sld [smem:[#allocation9 + $0x34]]
        %v2894 = vstv %s2893
        %v2895 = vmul.f32 %v2894, %v2853
        %v2896 = vmul.f32 %v2894, %v2854
        %2899 = vrot.lane.b32.xlu0 %v2895, 127
        %v2900 = vpop.permute.xlu0 %2899
        %2901 = vrot.lane.b32.xlu0 %v2896, 127
        %v2902 = vpop.permute.xlu0 %2901
        %v2905 = vadd.f32 %v2865, %v2900
        %v2906 = vadd.f32 %v2866, %v2902
        %s2907 = sld [smem:[#allocation9 + $0x58]]
        %v2908 = vstv %s2907
        %v2909 = vmul.f32 %v2908, %v2853
        %v2910 = vmul.f32 %v2908, %v2854
        %2913 = vrot.lane.b32.xlu0 %v2909, 127
        %v2914 = vpop.permute.xlu0 %2913
        %2915 = vrot.lane.b32.xlu0 %v2910, 127
        %v2916 = vpop.permute.xlu0 %2915
        %v2919 = vadd.f32 %v2871, %v2914
        %v2920 = vadd.f32 %v2872, %v2916
        %s2921 = sld [smem:[#allocation9 + $0x7c]]
        %v2922 = vstv %s2921
        %v2923 = vmul.f32 %v2922, %v2853
        %v2924 = vmul.f32 %v2922, %v2854
        %2927 = vrot.lane.b32.xlu0 %v2923, 127
        %v2928 = vpop.permute.xlu0 %2927
        %2929 = vrot.lane.b32.xlu0 %v2924, 127
        %v2930 = vpop.permute.xlu0 %2929
        %v2933 = vadd.f32 %v2877, %v2928
        %v2934 = vadd.f32 %v2878, %v2930
        %s2935 = sld [smem:[#allocation9 + $0x11]]
        %v2936 = vstv %s2935
        %v2937 = vmul.f32 %v2936, %v2853
        %v2938 = vmul.f32 %v2936, %v2854
        %2941 = vrot.lane.b32.xlu0 %v2937, 126
        %v2942 = vpop.permute.xlu0 %2941
        %2943 = vrot.lane.b32.xlu0 %v2938, 126
        %v2944 = vpop.permute.xlu0 %2943
        %v2947 = vadd.f32 %v2891, %v2942
        %v2948 = vadd.f32 %v2892, %v2944
        %s2949 = sld [smem:[#allocation9 + $0x35]]
        %v2950 = vstv %s2949
        %v2951 = vmul.f32 %v2950, %v2853
        %v2952 = vmul.f32 %v2950, %v2854
        %2955 = vrot.lane.b32.xlu0 %v2951, 126
        %v2956 = vpop.permute.xlu0 %2955
        %2957 = vrot.lane.b32.xlu0 %v2952, 126
        %v2958 = vpop.permute.xlu0 %2957
        %v2961 = vadd.f32 %v2905, %v2956
        %v2962 = vadd.f32 %v2906, %v2958
        %s2963 = sld [smem:[#allocation9 + $0x59]]
        %v2964 = vstv %s2963
        %v2965 = vmul.f32 %v2964, %v2853
        %v2966 = vmul.f32 %v2964, %v2854
        %2969 = vrot.lane.b32.xlu0 %v2965, 126
        %v2970 = vpop.permute.xlu0 %2969
        %2971 = vrot.lane.b32.xlu0 %v2966, 126
        %v2972 = vpop.permute.xlu0 %2971
        %v2975 = vadd.f32 %v2919, %v2970
        %v2976 = vadd.f32 %v2920, %v2972
        %s2977 = sld [smem:[#allocation9 + $0x7d]]
        %v2978 = vstv %s2977
        %v2979 = vmul.f32 %v2978, %v2853
        %v2980 = vmul.f32 %v2978, %v2854
        %2983 = vrot.lane.b32.xlu0 %v2979, 126
        %v2984 = vpop.permute.xlu0 %2983
        %2985 = vrot.lane.b32.xlu0 %v2980, 126
        %v2986 = vpop.permute.xlu0 %2985
        %v2989 = vadd.f32 %v2933, %v2984
        %v2990 = vadd.f32 %v2934, %v2986
        %v2991 = vld [vmem:[%s2135] sm:$0xff]
        %v2992 = vld [vmem:[%s2135 + $0x8] sm:$0xff]
        %s2993 = sld [smem:[#allocation9 + $0x12]]
        %v2994 = vstv %s2993
        %v2995 = vmul.f32 %v2994, %v2991
        %v2996 = vmul.f32 %v2994, %v2992
        %v2997 = vadd.f32 %v2947, %v2995
        %v2998 = vadd.f32 %v2948, %v2996
        %s2999 = sld [smem:[#allocation9 + $0x36]]
        %v3000 = vstv %s2999
        %v3001 = vmul.f32 %v3000, %v2991
        %v3002 = vmul.f32 %v3000, %v2992
        %v3003 = vadd.f32 %v2961, %v3001
        %v3004 = vadd.f32 %v2962, %v3002
        %s3005 = sld [smem:[#allocation9 + $0x5a]]
        %v3006 = vstv %s3005
        %v3007 = vmul.f32 %v3006, %v2991
        %v3008 = vmul.f32 %v3006, %v2992
        %v3009 = vadd.f32 %v2975, %v3007
        %v3010 = vadd.f32 %v2976, %v3008
        %s3011 = sld [smem:[#allocation9 + $0x7e]]
        %v3012 = vstv %s3011
        %v3013 = vmul.f32 %v3012, %v2991
        %v3014 = vmul.f32 %v3012, %v2992
        %v3015 = vadd.f32 %v2989, %v3013
        %v3016 = vadd.f32 %v2990, %v3014
        %s3017 = sld [smem:[#allocation9 + $0x13]]
        %v3018 = vstv %s3017
        %v3019 = vmul.f32 %v3018, %v2991
        %v3020 = vmul.f32 %v3018, %v2992
        %3023 = vrot.lane.b32.xlu0 %v3019, 127
        %v3024 = vpop.permute.xlu0 %3023
        %3025 = vrot.lane.b32.xlu0 %v3020, 127
        %v3026 = vpop.permute.xlu0 %3025
        %v3029 = vadd.f32 %v2997, %v3024
        %v3030 = vadd.f32 %v2998, %v3026
        %s3031 = sld [smem:[#allocation9 + $0x37]]
        %v3032 = vstv %s3031
        %v3033 = vmul.f32 %v3032, %v2991
        %v3034 = vmul.f32 %v3032, %v2992
        %3037 = vrot.lane.b32.xlu0 %v3033, 127
        %v3038 = vpop.permute.xlu0 %3037
        %3039 = vrot.lane.b32.xlu0 %v3034, 127
        %v3040 = vpop.permute.xlu0 %3039
        %v3043 = vadd.f32 %v3003, %v3038
        %v3044 = vadd.f32 %v3004, %v3040
        %s3045 = sld [smem:[#allocation9 + $0x5b]]
        %v3046 = vstv %s3045
        %v3047 = vmul.f32 %v3046, %v2991
        %v3048 = vmul.f32 %v3046, %v2992
        %3051 = vrot.lane.b32.xlu0 %v3047, 127
        %v3052 = vpop.permute.xlu0 %3051
        %3053 = vrot.lane.b32.xlu0 %v3048, 127
        %v3054 = vpop.permute.xlu0 %3053
        %v3057 = vadd.f32 %v3009, %v3052
        %v3058 = vadd.f32 %v3010, %v3054
        %s3059 = sld [smem:[#allocation9 + $0x7f]]
        %v3060 = vstv %s3059
        %v3061 = vmul.f32 %v3060, %v2991
        %v3062 = vmul.f32 %v3060, %v2992
        %3065 = vrot.lane.b32.xlu0 %v3061, 127
        %v3066 = vpop.permute.xlu0 %3065
        %3067 = vrot.lane.b32.xlu0 %v3062, 127
        %v3068 = vpop.permute.xlu0 %3067
        %v3071 = vadd.f32 %v3015, %v3066
        %v3072 = vadd.f32 %v3016, %v3068
        %s3073 = sld [smem:[#allocation9 + $0x14]]
        %v3074 = vstv %s3073
        %v3075 = vmul.f32 %v3074, %v2991
        %v3076 = vmul.f32 %v3074, %v2992
        %3079 = vrot.lane.b32.xlu0 %v3075, 126
        %v3080 = vpop.permute.xlu0 %3079
        %3081 = vrot.lane.b32.xlu0 %v3076, 126
        %v3082 = vpop.permute.xlu0 %3081
        %v3085 = vadd.f32 %v3029, %v3080
        %v3086 = vadd.f32 %v3030, %v3082
        %s3087 = sld [smem:[#allocation9 + $0x38]]
        %v3088 = vstv %s3087
        %v3089 = vmul.f32 %v3088, %v2991
        %v3090 = vmul.f32 %v3088, %v2992
        %3093 = vrot.lane.b32.xlu0 %v3089, 126
        %v3094 = vpop.permute.xlu0 %3093
        %3095 = vrot.lane.b32.xlu0 %v3090, 126
        %v3096 = vpop.permute.xlu0 %3095
        %v3099 = vadd.f32 %v3043, %v3094
        %v3100 = vadd.f32 %v3044, %v3096
        %s3101 = sld [smem:[#allocation9 + $0x5c]]
        %v3102 = vstv %s3101
        %v3103 = vmul.f32 %v3102, %v2991
        %v3104 = vmul.f32 %v3102, %v2992
        %3107 = vrot.lane.b32.xlu0 %v3103, 126
        %v3108 = vpop.permute.xlu0 %3107
        %3109 = vrot.lane.b32.xlu0 %v3104, 126
        %v3110 = vpop.permute.xlu0 %3109
        %v3113 = vadd.f32 %v3057, %v3108
        %v3114 = vadd.f32 %v3058, %v3110
        %s3115 = sld [smem:[#allocation9 + $0x80]]
        %v3116 = vstv %s3115
        %v3117 = vmul.f32 %v3116, %v2991
        %v3118 = vmul.f32 %v3116, %v2992
        %3121 = vrot.lane.b32.xlu0 %v3117, 126
        %v3122 = vpop.permute.xlu0 %3121
        %3123 = vrot.lane.b32.xlu0 %v3118, 126
        %v3124 = vpop.permute.xlu0 %3123
        %v3127 = vadd.f32 %v3071, %v3122
        %v3128 = vadd.f32 %v3072, %v3124
        %v3129 = vld [vmem:[%s2135 + $0x1] sm:$0xff]
        %v3130 = vld [vmem:[%s2135 + $0x9] sm:$0xff]
        %s3131 = sld [smem:[#allocation9 + $0x15]]
        %v3132 = vstv %s3131
        %v3133 = vmul.f32 %v3132, %v3129
        %v3134 = vmul.f32 %v3132, %v3130
        %v3135 = vadd.f32 %v3085, %v3133
        %v3136 = vadd.f32 %v3086, %v3134
        %s3137 = sld [smem:[#allocation9 + $0x39]]
        %v3138 = vstv %s3137
        %v3139 = vmul.f32 %v3138, %v3129
        %v3140 = vmul.f32 %v3138, %v3130
        %v3141 = vadd.f32 %v3099, %v3139
        %v3142 = vadd.f32 %v3100, %v3140
        %s3143 = sld [smem:[#allocation9 + $0x5d]]
        %v3144 = vstv %s3143
        %v3145 = vmul.f32 %v3144, %v3129
        %v3146 = vmul.f32 %v3144, %v3130
        %v3147 = vadd.f32 %v3113, %v3145
        %v3148 = vadd.f32 %v3114, %v3146
        %s3149 = sld [smem:[#allocation9 + $0x81]]
        %v3150 = vstv %s3149
        %v3151 = vmul.f32 %v3150, %v3129
        %v3152 = vmul.f32 %v3150, %v3130
        %v3153 = vadd.f32 %v3127, %v3151
        %v3154 = vadd.f32 %v3128, %v3152
        %s3155 = sld [smem:[#allocation9 + $0x16]]
        %v3156 = vstv %s3155
        %v3157 = vmul.f32 %v3156, %v3129
        %v3158 = vmul.f32 %v3156, %v3130
        %3161 = vrot.lane.b32.xlu0 %v3157, 127
        %v3162 = vpop.permute.xlu0 %3161
        %3163 = vrot.lane.b32.xlu0 %v3158, 127
        %v3164 = vpop.permute.xlu0 %3163
        %v3167 = vadd.f32 %v3135, %v3162
        %v3168 = vadd.f32 %v3136, %v3164
        %s3169 = sld [smem:[#allocation9 + $0x3a]]
        %v3170 = vstv %s3169
        %v3171 = vmul.f32 %v3170, %v3129
        %v3172 = vmul.f32 %v3170, %v3130
        %3175 = vrot.lane.b32.xlu0 %v3171, 127
        %v3176 = vpop.permute.xlu0 %3175
        %3177 = vrot.lane.b32.xlu0 %v3172, 127
        %v3178 = vpop.permute.xlu0 %3177
        %v3181 = vadd.f32 %v3141, %v3176
        %v3182 = vadd.f32 %v3142, %v3178
        %s3183 = sld [smem:[#allocation9 + $0x5e]]
        %v3184 = vstv %s3183
        %v3185 = vmul.f32 %v3184, %v3129
        %v3186 = vmul.f32 %v3184, %v3130
        %3189 = vrot.lane.b32.xlu0 %v3185, 127
        %v3190 = vpop.permute.xlu0 %3189
        %3191 = vrot.lane.b32.xlu0 %v3186, 127
        %v3192 = vpop.permute.xlu0 %3191
        %v3195 = vadd.f32 %v3147, %v3190
        %v3196 = vadd.f32 %v3148, %v3192
        %s3197 = sld [smem:[#allocation9 + $0x82]]
        %v3198 = vstv %s3197
        %v3199 = vmul.f32 %v3198, %v3129
        %v3200 = vmul.f32 %v3198, %v3130
        %3203 = vrot.lane.b32.xlu0 %v3199, 127
        %v3204 = vpop.permute.xlu0 %3203
        %3205 = vrot.lane.b32.xlu0 %v3200, 127
        %v3206 = vpop.permute.xlu0 %3205
        %v3209 = vadd.f32 %v3153, %v3204
        %v3210 = vadd.f32 %v3154, %v3206
        %s3211 = sld [smem:[#allocation9 + $0x17]]
        %v3212 = vstv %s3211
        %v3213 = vmul.f32 %v3212, %v3129
        %v3214 = vmul.f32 %v3212, %v3130
        %3217 = vrot.lane.b32.xlu0 %v3213, 126
        %v3218 = vpop.permute.xlu0 %3217
        %3219 = vrot.lane.b32.xlu0 %v3214, 126
        %v3220 = vpop.permute.xlu0 %3219
        %v3223 = vadd.f32 %v3167, %v3218
        %v3224 = vadd.f32 %v3168, %v3220
        %s3225 = sld [smem:[#allocation9 + $0x3b]]
        %v3226 = vstv %s3225
        %v3227 = vmul.f32 %v3226, %v3129
        %v3228 = vmul.f32 %v3226, %v3130
        %3231 = vrot.lane.b32.xlu0 %v3227, 126
        %v3232 = vpop.permute.xlu0 %3231
        %3233 = vrot.lane.b32.xlu0 %v3228, 126
        %v3234 = vpop.permute.xlu0 %3233
        %v3237 = vadd.f32 %v3181, %v3232
        %v3238 = vadd.f32 %v3182, %v3234
        %s3239 = sld [smem:[#allocation9 + $0x5f]]
        %v3240 = vstv %s3239
        %v3241 = vmul.f32 %v3240, %v3129
        %v3242 = vmul.f32 %v3240, %v3130
        %3245 = vrot.lane.b32.xlu0 %v3241, 126
        %v3246 = vpop.permute.xlu0 %3245
        %3247 = vrot.lane.b32.xlu0 %v3242, 126
        %v3248 = vpop.permute.xlu0 %3247
        %v3251 = vadd.f32 %v3195, %v3246
        %v3252 = vadd.f32 %v3196, %v3248
        %s3253 = sld [smem:[#allocation9 + $0x83]]
        %v3254 = vstv %s3253
        %v3255 = vmul.f32 %v3254, %v3129
        %v3256 = vmul.f32 %v3254, %v3130
        %3259 = vrot.lane.b32.xlu0 %v3255, 126
        %v3260 = vpop.permute.xlu0 %3259
        %3261 = vrot.lane.b32.xlu0 %v3256, 126
        %v3262 = vpop.permute.xlu0 %3261
        %v3265 = vadd.f32 %v3209, %v3260
        %v3266 = vadd.f32 %v3210, %v3262
        %v3267 = vld [vmem:[%s2135 + $0x2] sm:$0xff]
        %v3268 = vld [vmem:[%s2135 + $0xa] sm:$0xff]
        %s3269 = sld [smem:[#allocation9 + $0x18]]
        %v3270 = vstv %s3269
        %v3271 = vmul.f32 %v3270, %v3267
        %v3272 = vmul.f32 %v3270, %v3268
        %v3273 = vadd.f32 %v3223, %v3271
        %v3274 = vadd.f32 %v3224, %v3272
        %s3275 = sld [smem:[#allocation9 + $0x3c]]
        %v3276 = vstv %s3275
        %v3277 = vmul.f32 %v3276, %v3267
        %v3278 = vmul.f32 %v3276, %v3268
        %v3279 = vadd.f32 %v3237, %v3277
        %v3280 = vadd.f32 %v3238, %v3278
        %s3281 = sld [smem:[#allocation9 + $0x60]]
        %v3282 = vstv %s3281
        %v3283 = vmul.f32 %v3282, %v3267
        %v3284 = vmul.f32 %v3282, %v3268
        %v3285 = vadd.f32 %v3251, %v3283
        %v3286 = vadd.f32 %v3252, %v3284
        %s3287 = sld [smem:[#allocation9 + $0x84]]
        %v3288 = vstv %s3287
        %v3289 = vmul.f32 %v3288, %v3267
        %v3290 = vmul.f32 %v3288, %v3268
        %v3291 = vadd.f32 %v3265, %v3289
        %v3292 = vadd.f32 %v3266, %v3290
        %s3293 = sld [smem:[#allocation9 + $0x19]]
        %v3294 = vstv %s3293
        %v3295 = vmul.f32 %v3294, %v3267
        %v3296 = vmul.f32 %v3294, %v3268
        %3299 = vrot.lane.b32.xlu0 %v3295, 127
        %v3300 = vpop.permute.xlu0 %3299
        %3301 = vrot.lane.b32.xlu0 %v3296, 127
        %v3302 = vpop.permute.xlu0 %3301
        %v3305 = vadd.f32 %v3273, %v3300
        %v3306 = vadd.f32 %v3274, %v3302
        %s3307 = sld [smem:[#allocation9 + $0x3d]]
        %v3308 = vstv %s3307
        %v3309 = vmul.f32 %v3308, %v3267
        %v3310 = vmul.f32 %v3308, %v3268
        %3313 = vrot.lane.b32.xlu0 %v3309, 127
        %v3314 = vpop.permute.xlu0 %3313
        %3315 = vrot.lane.b32.xlu0 %v3310, 127
        %v3316 = vpop.permute.xlu0 %3315
        %v3319 = vadd.f32 %v3279, %v3314
        %v3320 = vadd.f32 %v3280, %v3316
        %s3321 = sld [smem:[#allocation9 + $0x61]]
        %v3322 = vstv %s3321
        %v3323 = vmul.f32 %v3322, %v3267
        %v3324 = vmul.f32 %v3322, %v3268
        %3327 = vrot.lane.b32.xlu0 %v3323, 127
        %v3328 = vpop.permute.xlu0 %3327
        %3329 = vrot.lane.b32.xlu0 %v3324, 127
        %v3330 = vpop.permute.xlu0 %3329
        %v3333 = vadd.f32 %v3285, %v3328
        %v3334 = vadd.f32 %v3286, %v3330
        %s3335 = sld [smem:[#allocation9 + $0x85]]
        %v3336 = vstv %s3335
        %v3337 = vmul.f32 %v3336, %v3267
        %v3338 = vmul.f32 %v3336, %v3268
        %3341 = vrot.lane.b32.xlu0 %v3337, 127
        %v3342 = vpop.permute.xlu0 %3341
        %3343 = vrot.lane.b32.xlu0 %v3338, 127
        %v3344 = vpop.permute.xlu0 %3343
        %v3347 = vadd.f32 %v3291, %v3342
        %v3348 = vadd.f32 %v3292, %v3344
        %s3349 = sld [smem:[#allocation9 + $0x1a]]
        %v3350 = vstv %s3349
        %v3351 = vmul.f32 %v3350, %v3267
        %v3352 = vmul.f32 %v3350, %v3268
        %3355 = vrot.lane.b32.xlu0 %v3351, 126
        %v3356 = vpop.permute.xlu0 %3355
        %3357 = vrot.lane.b32.xlu0 %v3352, 126
        %v3358 = vpop.permute.xlu0 %3357
        %v3361 = vadd.f32 %v3305, %v3356
        %v3362 = vadd.f32 %v3306, %v3358
        %s3363 = sld [smem:[#allocation9 + $0x3e]]
        %v3364 = vstv %s3363
        %v3365 = vmul.f32 %v3364, %v3267
        %v3366 = vmul.f32 %v3364, %v3268
        %3369 = vrot.lane.b32.xlu0 %v3365, 126
        %v3370 = vpop.permute.xlu0 %3369
        %3371 = vrot.lane.b32.xlu0 %v3366, 126
        %v3372 = vpop.permute.xlu0 %3371
        %v3375 = vadd.f32 %v3319, %v3370
        %v3376 = vadd.f32 %v3320, %v3372
        %s3377 = sld [smem:[#allocation9 + $0x62]]
        %v3378 = vstv %s3377
        %v3379 = vmul.f32 %v3378, %v3267
        %v3380 = vmul.f32 %v3378, %v3268
        %3383 = vrot.lane.b32.xlu0 %v3379, 126
        %v3384 = vpop.permute.xlu0 %3383
        %3385 = vrot.lane.b32.xlu0 %v3380, 126
        %v3386 = vpop.permute.xlu0 %3385
        %v3389 = vadd.f32 %v3333, %v3384
        %v3390 = vadd.f32 %v3334, %v3386
        %s3391 = sld [smem:[#allocation9 + $0x86]]
        %v3392 = vstv %s3391
        %v3393 = vmul.f32 %v3392, %v3267
        %v3394 = vmul.f32 %v3392, %v3268
        %3397 = vrot.lane.b32.xlu0 %v3393, 126
        %v3398 = vpop.permute.xlu0 %3397
        %3399 = vrot.lane.b32.xlu0 %v3394, 126
        %v3400 = vpop.permute.xlu0 %3399
        %v3403 = vadd.f32 %v3347, %v3398
        %v3404 = vadd.f32 %v3348, %v3400
        %v3405 = vld [vmem:[%s2148] sm:$0xff]
        %v3406 = vld [vmem:[%s2148 + $0x8] sm:$0xff]
        %s3407 = sld [smem:[#allocation9 + $0x1b]]
        %v3408 = vstv %s3407
        %v3409 = vmul.f32 %v3408, %v3405
        %v3410 = vmul.f32 %v3408, %v3406
        %v3411 = vadd.f32 %v3361, %v3409
        %v3412 = vadd.f32 %v3362, %v3410
        %s3413 = sld [smem:[#allocation9 + $0x3f]]
        %v3414 = vstv %s3413
        %v3415 = vmul.f32 %v3414, %v3405
        %v3416 = vmul.f32 %v3414, %v3406
        %v3417 = vadd.f32 %v3375, %v3415
        %v3418 = vadd.f32 %v3376, %v3416
        %s3419 = sld [smem:[#allocation9 + $0x63]]
        %v3420 = vstv %s3419
        %v3421 = vmul.f32 %v3420, %v3405
        %v3422 = vmul.f32 %v3420, %v3406
        %v3423 = vadd.f32 %v3389, %v3421
        %v3424 = vadd.f32 %v3390, %v3422
        %s3425 = sld [smem:[#allocation9 + $0x87]]
        %v3426 = vstv %s3425
        %v3427 = vmul.f32 %v3426, %v3405
        %v3428 = vmul.f32 %v3426, %v3406
        %v3429 = vadd.f32 %v3403, %v3427
        %v3430 = vadd.f32 %v3404, %v3428
        %s3431 = sld [smem:[#allocation9 + $0x1c]]
        %v3432 = vstv %s3431
        %v3433 = vmul.f32 %v3432, %v3405
        %v3434 = vmul.f32 %v3432, %v3406
        %3437 = vrot.lane.b32.xlu0 %v3433, 127
        %v3438 = vpop.permute.xlu0 %3437
        %3439 = vrot.lane.b32.xlu0 %v3434, 127
        %v3440 = vpop.permute.xlu0 %3439
        %v3443 = vadd.f32 %v3411, %v3438
        %v3444 = vadd.f32 %v3412, %v3440
        %s3445 = sld [smem:[#allocation9 + $0x40]]
        %v3446 = vstv %s3445
        %v3447 = vmul.f32 %v3446, %v3405
        %v3448 = vmul.f32 %v3446, %v3406
        %3451 = vrot.lane.b32.xlu0 %v3447, 127
        %v3452 = vpop.permute.xlu0 %3451
        %3453 = vrot.lane.b32.xlu0 %v3448, 127
        %v3454 = vpop.permute.xlu0 %3453
        %v3457 = vadd.f32 %v3417, %v3452
        %v3458 = vadd.f32 %v3418, %v3454
        %s3459 = sld [smem:[#allocation9 + $0x64]]
        %v3460 = vstv %s3459
        %v3461 = vmul.f32 %v3460, %v3405
        %v3462 = vmul.f32 %v3460, %v3406
        %3465 = vrot.lane.b32.xlu0 %v3461, 127
        %v3466 = vpop.permute.xlu0 %3465
        %3467 = vrot.lane.b32.xlu0 %v3462, 127
        %v3468 = vpop.permute.xlu0 %3467
        %v3471 = vadd.f32 %v3423, %v3466
        %v3472 = vadd.f32 %v3424, %v3468
        %s3473 = sld [smem:[#allocation9 + $0x88]]
        %v3474 = vstv %s3473
        %v3475 = vmul.f32 %v3474, %v3405
        %v3476 = vmul.f32 %v3474, %v3406
        %3479 = vrot.lane.b32.xlu0 %v3475, 127
        %v3480 = vpop.permute.xlu0 %3479
        %3481 = vrot.lane.b32.xlu0 %v3476, 127
        %v3482 = vpop.permute.xlu0 %3481
        %v3485 = vadd.f32 %v3429, %v3480
        %v3486 = vadd.f32 %v3430, %v3482
        %s3487 = sld [smem:[#allocation9 + $0x1d]]
        %v3488 = vstv %s3487
        %v3489 = vmul.f32 %v3488, %v3405
        %v3490 = vmul.f32 %v3488, %v3406
        %3493 = vrot.lane.b32.xlu0 %v3489, 126
        %v3494 = vpop.permute.xlu0 %3493
        %3495 = vrot.lane.b32.xlu0 %v3490, 126
        %v3496 = vpop.permute.xlu0 %3495
        %v3499 = vadd.f32 %v3443, %v3494
        %v3500 = vadd.f32 %v3444, %v3496
        %s3501 = sld [smem:[#allocation9 + $0x41]]
        %v3502 = vstv %s3501
        %v3503 = vmul.f32 %v3502, %v3405
        %v3504 = vmul.f32 %v3502, %v3406
        %3507 = vrot.lane.b32.xlu0 %v3503, 126
        %v3508 = vpop.permute.xlu0 %3507
        %3509 = vrot.lane.b32.xlu0 %v3504, 126
        %v3510 = vpop.permute.xlu0 %3509
        %v3513 = vadd.f32 %v3457, %v3508
        %v3514 = vadd.f32 %v3458, %v3510
        %s3515 = sld [smem:[#allocation9 + $0x65]]
        %v3516 = vstv %s3515
        %v3517 = vmul.f32 %v3516, %v3405
        %v3518 = vmul.f32 %v3516, %v3406
        %3521 = vrot.lane.b32.xlu0 %v3517, 126
        %v3522 = vpop.permute.xlu0 %3521
        %3523 = vrot.lane.b32.xlu0 %v3518, 126
        %v3524 = vpop.permute.xlu0 %3523
        %v3527 = vadd.f32 %v3471, %v3522
        %v3528 = vadd.f32 %v3472, %v3524
        %s3529 = sld [smem:[#allocation9 + $0x89]]
        %v3530 = vstv %s3529
        %v3531 = vmul.f32 %v3530, %v3405
        %v3532 = vmul.f32 %v3530, %v3406
        %3535 = vrot.lane.b32.xlu0 %v3531, 126
        %v3536 = vpop.permute.xlu0 %3535
        %3537 = vrot.lane.b32.xlu0 %v3532, 126
        %v3538 = vpop.permute.xlu0 %3537
        %v3541 = vadd.f32 %v3485, %v3536
        %v3542 = vadd.f32 %v3486, %v3538
        %v3543 = vld [vmem:[%s2148 + $0x1] sm:$0xff]
        %v3544 = vld [vmem:[%s2148 + $0x9] sm:$0xff]
        %s3545 = sld [smem:[#allocation9 + $0x1e]]
        %v3546 = vstv %s3545
        %v3547 = vmul.f32 %v3546, %v3543
        %v3548 = vmul.f32 %v3546, %v3544
        %v3549 = vadd.f32 %v3499, %v3547
        %v3550 = vadd.f32 %v3500, %v3548
        %s3551 = sld [smem:[#allocation9 + $0x42]]
        %v3552 = vstv %s3551
        %v3553 = vmul.f32 %v3552, %v3543
        %v3554 = vmul.f32 %v3552, %v3544
        %v3555 = vadd.f32 %v3513, %v3553
        %v3556 = vadd.f32 %v3514, %v3554
        %s3557 = sld [smem:[#allocation9 + $0x66]]
        %v3558 = vstv %s3557
        %v3559 = vmul.f32 %v3558, %v3543
        %v3560 = vmul.f32 %v3558, %v3544
        %v3561 = vadd.f32 %v3527, %v3559
        %v3562 = vadd.f32 %v3528, %v3560
        %s3563 = sld [smem:[#allocation9 + $0x8a]]
        %v3564 = vstv %s3563
        %v3565 = vmul.f32 %v3564, %v3543
        %v3566 = vmul.f32 %v3564, %v3544
        %v3567 = vadd.f32 %v3541, %v3565
        %v3568 = vadd.f32 %v3542, %v3566
        %s3569 = sld [smem:[#allocation9 + $0x1f]]
        %v3570 = vstv %s3569
        %v3571 = vmul.f32 %v3570, %v3543
        %v3572 = vmul.f32 %v3570, %v3544
        %3575 = vrot.lane.b32.xlu0 %v3571, 127
        %v3576 = vpop.permute.xlu0 %3575
        %3577 = vrot.lane.b32.xlu0 %v3572, 127
        %v3578 = vpop.permute.xlu0 %3577
        %v3581 = vadd.f32 %v3549, %v3576
        %v3582 = vadd.f32 %v3550, %v3578
        %s3583 = sld [smem:[#allocation9 + $0x43]]
        %v3584 = vstv %s3583
        %v3585 = vmul.f32 %v3584, %v3543
        %v3586 = vmul.f32 %v3584, %v3544
        %3589 = vrot.lane.b32.xlu0 %v3585, 127
        %v3590 = vpop.permute.xlu0 %3589
        %3591 = vrot.lane.b32.xlu0 %v3586, 127
        %v3592 = vpop.permute.xlu0 %3591
        %v3595 = vadd.f32 %v3555, %v3590
        %v3596 = vadd.f32 %v3556, %v3592
        %s3597 = sld [smem:[#allocation9 + $0x67]]
        %v3598 = vstv %s3597
        %v3599 = vmul.f32 %v3598, %v3543
        %v3600 = vmul.f32 %v3598, %v3544
        %3603 = vrot.lane.b32.xlu0 %v3599, 127
        %v3604 = vpop.permute.xlu0 %3603
        %3605 = vrot.lane.b32.xlu0 %v3600, 127
        %v3606 = vpop.permute.xlu0 %3605
        %v3609 = vadd.f32 %v3561, %v3604
        %v3610 = vadd.f32 %v3562, %v3606
        %s3611 = sld [smem:[#allocation9 + $0x8b]]
        %v3612 = vstv %s3611
        %v3613 = vmul.f32 %v3612, %v3543
        %v3614 = vmul.f32 %v3612, %v3544
        %3617 = vrot.lane.b32.xlu0 %v3613, 127
        %v3618 = vpop.permute.xlu0 %3617
        %3619 = vrot.lane.b32.xlu0 %v3614, 127
        %v3620 = vpop.permute.xlu0 %3619
        %v3623 = vadd.f32 %v3567, %v3618
        %v3624 = vadd.f32 %v3568, %v3620
        %s3625 = sld [smem:[#allocation9 + $0x20]]
        %v3626 = vstv %s3625
        %v3627 = vmul.f32 %v3626, %v3543
        %v3628 = vmul.f32 %v3626, %v3544
        %3631 = vrot.lane.b32.xlu0 %v3627, 126
        %v3632 = vpop.permute.xlu0 %3631
        %3633 = vrot.lane.b32.xlu0 %v3628, 126
        %v3634 = vpop.permute.xlu0 %3633
        %v3637 = vadd.f32 %v3581, %v3632
        %v3638 = vadd.f32 %v3582, %v3634
        %s3639 = sld [smem:[#allocation9 + $0x44]]
        %v3640 = vstv %s3639
        %v3641 = vmul.f32 %v3640, %v3543
        %v3642 = vmul.f32 %v3640, %v3544
        %3645 = vrot.lane.b32.xlu0 %v3641, 126
        %v3646 = vpop.permute.xlu0 %3645
        %3647 = vrot.lane.b32.xlu0 %v3642, 126
        %v3648 = vpop.permute.xlu0 %3647
        %v3651 = vadd.f32 %v3595, %v3646
        %v3652 = vadd.f32 %v3596, %v3648
        %s3653 = sld [smem:[#allocation9 + $0x68]]
        %v3654 = vstv %s3653
        %v3655 = vmul.f32 %v3654, %v3543
        %v3656 = vmul.f32 %v3654, %v3544
        %3659 = vrot.lane.b32.xlu0 %v3655, 126
        %v3660 = vpop.permute.xlu0 %3659
        %3661 = vrot.lane.b32.xlu0 %v3656, 126
        %v3662 = vpop.permute.xlu0 %3661
        %v3665 = vadd.f32 %v3609, %v3660
        %v3666 = vadd.f32 %v3610, %v3662
        %s3667 = sld [smem:[#allocation9 + $0x8c]]
        %v3668 = vstv %s3667
        %v3669 = vmul.f32 %v3668, %v3543
        %v3670 = vmul.f32 %v3668, %v3544
        %3673 = vrot.lane.b32.xlu0 %v3669, 126
        %v3674 = vpop.permute.xlu0 %3673
        %3675 = vrot.lane.b32.xlu0 %v3670, 126
        %v3676 = vpop.permute.xlu0 %3675
        %v3679 = vadd.f32 %v3623, %v3674
        %v3680 = vadd.f32 %v3624, %v3676
        %v3681 = vld [vmem:[%s2148 + $0x2] sm:$0xff]
        %v3682 = vld [vmem:[%s2148 + $0xa] sm:$0xff]
        %s3683 = sld [smem:[#allocation9 + $0x21]]
        %v3684 = vstv %s3683
        %v3685 = vmul.f32 %v3684, %v3681
        %v3686 = vmul.f32 %v3684, %v3682
        %v3687 = vadd.f32 %v3637, %v3685
        %v3688 = vadd.f32 %v3638, %v3686
        %s3689 = sld [smem:[#allocation9 + $0x45]]
        %v3690 = vstv %s3689
        %v3691 = vmul.f32 %v3690, %v3681
        %v3692 = vmul.f32 %v3690, %v3682
        %v3693 = vadd.f32 %v3651, %v3691
        %v3694 = vadd.f32 %v3652, %v3692
        %s3695 = sld [smem:[#allocation9 + $0x69]]
        %v3696 = vstv %s3695
        %v3697 = vmul.f32 %v3696, %v3681
        %v3698 = vmul.f32 %v3696, %v3682
        %v3699 = vadd.f32 %v3665, %v3697
        %v3700 = vadd.f32 %v3666, %v3698
        %s3701 = sld [smem:[#allocation9 + $0x8d]]
        %v3702 = vstv %s3701
        %v3703 = vmul.f32 %v3702, %v3681
        %v3704 = vmul.f32 %v3702, %v3682
        %v3705 = vadd.f32 %v3679, %v3703
        %v3706 = vadd.f32 %v3680, %v3704
        %s3707 = sld [smem:[#allocation9 + $0x22]]
        %v3708 = vstv %s3707
        %v3709 = vmul.f32 %v3708, %v3681
        %v3710 = vmul.f32 %v3708, %v3682
        %3713 = vrot.lane.b32.xlu0 %v3709, 127
        %v3714 = vpop.permute.xlu0 %3713
        %3715 = vrot.lane.b32.xlu0 %v3710, 127
        %v3716 = vpop.permute.xlu0 %3715
        %v3719 = vadd.f32 %v3687, %v3714
        %v3720 = vadd.f32 %v3688, %v3716
        %s3721 = sld [smem:[#allocation9 + $0x46]]
        %v3722 = vstv %s3721
        %v3723 = vmul.f32 %v3722, %v3681
        %v3724 = vmul.f32 %v3722, %v3682
        %3727 = vrot.lane.b32.xlu0 %v3723, 127
        %v3728 = vpop.permute.xlu0 %3727
        %3729 = vrot.lane.b32.xlu0 %v3724, 127
        %v3730 = vpop.permute.xlu0 %3729
        %v3733 = vadd.f32 %v3693, %v3728
        %v3734 = vadd.f32 %v3694, %v3730
        %s3735 = sld [smem:[#allocation9 + $0x6a]]
        %v3736 = vstv %s3735
        %v3737 = vmul.f32 %v3736, %v3681
        %v3738 = vmul.f32 %v3736, %v3682
        %3741 = vrot.lane.b32.xlu0 %v3737, 127
        %v3742 = vpop.permute.xlu0 %3741
        %3743 = vrot.lane.b32.xlu0 %v3738, 127
        %v3744 = vpop.permute.xlu0 %3743
        %v3747 = vadd.f32 %v3699, %v3742
        %v3748 = vadd.f32 %v3700, %v3744
        %s3749 = sld [smem:[#allocation9 + $0x8e]]
        %v3750 = vstv %s3749
        %v3751 = vmul.f32 %v3750, %v3681
        %v3752 = vmul.f32 %v3750, %v3682
        %3755 = vrot.lane.b32.xlu0 %v3751, 127
        %v3756 = vpop.permute.xlu0 %3755
        %3757 = vrot.lane.b32.xlu0 %v3752, 127
        %v3758 = vpop.permute.xlu0 %3757
        %v3761 = vadd.f32 %v3705, %v3756
        %v3762 = vadd.f32 %v3706, %v3758
        %s3763 = sld [smem:[#allocation9 + $0x23]]
        %v3764 = vstv %s3763
        %v3765 = vmul.f32 %v3764, %v3681
        %v3766 = vmul.f32 %v3764, %v3682
        %3769 = vrot.lane.b32.xlu0 %v3765, 126
        %v3770 = vpop.permute.xlu0 %3769
        %3771 = vrot.lane.b32.xlu0 %v3766, 126
        %v3772 = vpop.permute.xlu0 %3771
        %v3775 = vadd.f32 %v3719, %v3770
        %v3776 = vadd.f32 %v3720, %v3772
        %s3777 = sld [smem:[#allocation9 + $0x47]]
        %v3778 = vstv %s3777
        %v3779 = vmul.f32 %v3778, %v3681
        %v3780 = vmul.f32 %v3778, %v3682
        %3783 = vrot.lane.b32.xlu0 %v3779, 126
        %v3784 = vpop.permute.xlu0 %3783
        %3785 = vrot.lane.b32.xlu0 %v3780, 126
        %v3786 = vpop.permute.xlu0 %3785
        %v3789 = vadd.f32 %v3733, %v3784
        %v3790 = vadd.f32 %v3734, %v3786
        %s3791 = sld [smem:[#allocation9 + $0x6b]]
        %v3792 = vstv %s3791
        %v3793 = vmul.f32 %v3792, %v3681
        %v3794 = vmul.f32 %v3792, %v3682
        %3797 = vrot.lane.b32.xlu0 %v3793, 126
        %v3798 = vpop.permute.xlu0 %3797
        %3799 = vrot.lane.b32.xlu0 %v3794, 126
        %v3800 = vpop.permute.xlu0 %3799
        %v3803 = vadd.f32 %v3747, %v3798
        %v3804 = vadd.f32 %v3748, %v3800
        %s3805 = sld [smem:[#allocation9 + $0x8f]]
        %v3806 = vstv %s3805
        %v3807 = vmul.f32 %v3806, %v3681
        %v3808 = vmul.f32 %v3806, %v3682
        %3811 = vrot.lane.b32.xlu0 %v3807, 126
        %v3812 = vpop.permute.xlu0 %3811
        %3813 = vrot.lane.b32.xlu0 %v3808, 126
        %v3814 = vpop.permute.xlu0 %3813
        %v3817 = vadd.f32 %v3761, %v3812
        %v3818 = vadd.f32 %v3762, %v3814
        %s3819 = sld [smem:[#allocation13]]
        %v3820 = vstv %s3819
        %v3821 = vadd.f32 %v3820, 0.0
        %s3822 = sld [smem:[#allocation13 + $0x1]]
        %v3823 = vstv %s3822
        %v3824 = vadd.f32 %v3823, 0.0
        %s3825 = sld [smem:[#allocation13 + $0x2]]
        %v3826 = vstv %s3825
        %v3827 = vadd.f32 %v3826, 0.0
        %s3828 = sld [smem:[#allocation13 + $0x3]]
        %v3829 = vstv %s3828
        %v3830 = vadd.f32 %v3829, 0.0
        %v3831 = vld [vmem:[#allocation2 + $0x1] sm:$0xff]
        %v3832 = vld [vmem:[#allocation2 + $0x9] sm:$0xff]
        %s3833 = sld [smem:[#allocation12]]
        %v3834 = vstv %s3833
        %v3835 = vmul.f32 %v3834, %v3831
        %v3836 = vmul.f32 %v3834, %v3832
        %v3837 = vadd.f32 %v3821, %v3835
        %v3838 = vadd.f32 %v3821, %v3836
        %s3839 = sld [smem:[#allocation12 + $0x4]]
        %v3840 = vstv %s3839
        %v3841 = vmul.f32 %v3840, %v3831
        %v3842 = vmul.f32 %v3840, %v3832
        %v3843 = vadd.f32 %v3824, %v3841
        %v3844 = vadd.f32 %v3824, %v3842
        %s3845 = sld [smem:[#allocation12 + $0x8]]
        %v3846 = vstv %s3845
        %v3847 = vmul.f32 %v3846, %v3831
        %v3848 = vmul.f32 %v3846, %v3832
        %v3849 = vadd.f32 %v3827, %v3847
        %v3850 = vadd.f32 %v3827, %v3848
        %s3851 = sld [smem:[#allocation12 + $0xc]]
        %v3852 = vstv %s3851
        %v3853 = vmul.f32 %v3852, %v3831
        %v3854 = vmul.f32 %v3852, %v3832
        %v3855 = vadd.f32 %v3830, %v3853
        %v3856 = vadd.f32 %v3830, %v3854
        %v3857 = vld [vmem:[%s855 + $0x1] sm:$0xff]
        %v3858 = vld [vmem:[%s855 + $0x9] sm:$0xff]
        %s3859 = sld [smem:[#allocation12 + $0x1]]
        %v3860 = vstv %s3859
        %v3861 = vmul.f32 %v3860, %v3857
        %v3862 = vmul.f32 %v3860, %v3858
        %v3863 = vadd.f32 %v3837, %v3861
        %v3864 = vadd.f32 %v3838, %v3862
        %s3865 = sld [smem:[#allocation12 + $0x5]]
        %v3866 = vstv %s3865
        %v3867 = vmul.f32 %v3866, %v3857
        %v3868 = vmul.f32 %v3866, %v3858
        %v3869 = vadd.f32 %v3843, %v3867
        %v3870 = vadd.f32 %v3844, %v3868
        %s3871 = sld [smem:[#allocation12 + $0x9]]
        %v3872 = vstv %s3871
        %v3873 = vmul.f32 %v3872, %v3857
        %v3874 = vmul.f32 %v3872, %v3858
        %v3875 = vadd.f32 %v3849, %v3873
        %v3876 = vadd.f32 %v3850, %v3874
        %s3877 = sld [smem:[#allocation12 + $0xd]]
        %v3878 = vstv %s3877
        %v3879 = vmul.f32 %v3878, %v3857
        %v3880 = vmul.f32 %v3878, %v3858
        %v3881 = vadd.f32 %v3855, %v3879
        %v3882 = vadd.f32 %v3856, %v3880
        %v3883 = vld [vmem:[%s1270 + $0x1] sm:$0xff]
        %v3884 = vld [vmem:[%s1270 + $0x9] sm:$0xff]
        %s3885 = sld [smem:[#allocation12 + $0x2]]
        %v3886 = vstv %s3885
        %v3887 = vmul.f32 %v3886, %v3883
        %v3888 = vmul.f32 %v3886, %v3884
        %v3889 = vadd.f32 %v3863, %v3887
        %v3890 = vadd.f32 %v3864, %v3888
        %s3891 = sld [smem:[#allocation12 + $0x6]]
        %v3892 = vstv %s3891
        %v3893 = vmul.f32 %v3892, %v3883
        %v3894 = vmul.f32 %v3892, %v3884
        %v3895 = vadd.f32 %v3869, %v3893
        %v3896 = vadd.f32 %v3870, %v3894
        %s3897 = sld [smem:[#allocation12 + $0xa]]
        %v3898 = vstv %s3897
        %v3899 = vmul.f32 %v3898, %v3883
        %v3900 = vmul.f32 %v3898, %v3884
        %v3901 = vadd.f32 %v3875, %v3899
        %v3902 = vadd.f32 %v3876, %v3900
        %s3903 = sld [smem:[#allocation12 + $0xe]]
        %v3904 = vstv %s3903
        %v3905 = vmul.f32 %v3904, %v3883
        %v3906 = vmul.f32 %v3904, %v3884
        %v3907 = vadd.f32 %v3881, %v3905
        %v3908 = vadd.f32 %v3882, %v3906
        %v3909 = vld [vmem:[%s1685 + $0x1] sm:$0xff]
        %v3910 = vld [vmem:[%s1685 + $0x9] sm:$0xff]
        %s3911 = sld [smem:[#allocation12 + $0x3]]
        %v3912 = vstv %s3911
        %v3913 = vmul.f32 %v3912, %v3909
        %v3914 = vmul.f32 %v3912, %v3910
        %v3915 = vadd.f32 %v3889, %v3913
        %v3916 = vadd.f32 %v3890, %v3914
        %s3917 = sld [smem:[#allocation12 + $0x7]]
        %v3918 = vstv %s3917
        %v3919 = vmul.f32 %v3918, %v3909
        %v3920 = vmul.f32 %v3918, %v3910
        %v3921 = vadd.f32 %v3895, %v3919
        %v3922 = vadd.f32 %v3896, %v3920
        %s3923 = sld [smem:[#allocation12 + $0xb]]
        %v3924 = vstv %s3923
        %v3925 = vmul.f32 %v3924, %v3909
        %v3926 = vmul.f32 %v3924, %v3910
        %v3927 = vadd.f32 %v3901, %v3925
        %v3928 = vadd.f32 %v3902, %v3926
        %s3929 = sld [smem:[#allocation12 + $0xf]]
        %v3930 = vstv %s3929
        %v3931 = vmul.f32 %v3930, %v3909
        %v3932 = vmul.f32 %v3930, %v3910
        %v3933 = vadd.f32 %v3907, %v3931
        %v3934 = vadd.f32 %v3908, %v3932
        %3937 = vrot.lane.b32.xlu0 %v3915, 127
        %v3938 = vpop.permute.xlu0 %3937
        %3939 = vrot.lane.b32.xlu0 %v3916, 127
        %v3940 = vpop.permute.xlu0 %3939
        %v3943 = vadd.f32 %v3775, %v3938
        %v3944 = vadd.f32 %v3776, %v3940
        %v3945 = vmax.f32 %v3943, 0.0
        %v3946 = vmax.f32 %v3944, 0.0
        %vm3947 = vcmask 130048
        %3948 = vst.msk [vmem:[%s348] sm:$0xff] %vm3947, %v3945
        %3949 = vst.msk [vmem:[%s348 + $0x8] sm:$0xff] %vm3947, %v3946
        %3952 = vrot.lane.b32.xlu0 %v3921, 127
        %v3953 = vpop.permute.xlu0 %3952
        %3954 = vrot.lane.b32.xlu0 %v3922, 127
        %v3955 = vpop.permute.xlu0 %3954
        %v3958 = vadd.f32 %v3789, %v3953
        %v3959 = vadd.f32 %v3790, %v3955
        %v3960 = vmax.f32 %v3958, 0.0
        %v3961 = vmax.f32 %v3959, 0.0
        %s3962 = scalar_lea.vmem %s348, 16 [#allocation15]
        %3963 = vst.msk [vmem:[%s3962] sm:$0xff] %vm3947, %v3960
        %3964 = vst.msk [vmem:[%s3962 + $0x8] sm:$0xff] %vm3947, %v3961
        %3967 = vrot.lane.b32.xlu0 %v3927, 127
        %v3968 = vpop.permute.xlu0 %3967
        %3969 = vrot.lane.b32.xlu0 %v3928, 127
        %v3970 = vpop.permute.xlu0 %3969
        %v3973 = vadd.f32 %v3803, %v3968
        %v3974 = vadd.f32 %v3804, %v3970
        %v3975 = vmax.f32 %v3973, 0.0
        %v3976 = vmax.f32 %v3974, 0.0
        %s3977 = scalar_lea.vmem %s348, 32 [#allocation15]
        %3978 = vst.msk [vmem:[%s3977] sm:$0xff] %vm3947, %v3975
        %3979 = vst.msk [vmem:[%s3977 + $0x8] sm:$0xff] %vm3947, %v3976
        %3982 = vrot.lane.b32.xlu0 %v3933, 127
        %v3983 = vpop.permute.xlu0 %3982
        %3984 = vrot.lane.b32.xlu0 %v3934, 127
        %v3985 = vpop.permute.xlu0 %3984
        %v3988 = vadd.f32 %v3817, %v3983
        %v3989 = vadd.f32 %v3818, %v3985
        %v3990 = vmax.f32 %v3988, 0.0
        %v3991 = vmax.f32 %v3989, 0.0
        %s3992 = scalar_lea.vmem %s348, 48 [#allocation15]
        %3993 = vst.msk [vmem:[%s3992] sm:$0xff] %vm3947, %v3990
        %3994 = vst.msk [vmem:[%s3992 + $0x8] sm:$0xff] %vm3947, %v3991
        %s3995 = sand.u32 %s185, 1
        %s3996 = scalar_lea.sflag [#allocation5], %s3995
        %s3997 = sand.u32 %s185, 1
        %s3998 = smul.addr %s3997, 64
        %s3999 = scalar_lea.vmem [#allocation15], %s3998
        // Predicated region
        $region73: #{res_double_conv_forward.1} parent=47 // pred_check
          %p4000 = pneg %p195
        $region74: #{res_double_conv_forward.1} parent=47 // pred_check_branch
          %4002 = sbr.rel (%p4000) target = $region76
        $region75: #{res_double_conv_forward.1} parent=47 // pred_region
          %s4004 = ssub.s32 1024, 1024
          %4005 = vsyncadd %s3996, %s4004
          %s4006 = smul.addr %s25, 8
          %s4007 = smul.addr %s4006, 128
          %s4008 = scalar_lea.hbm %s7, %s4007
          %s4009 = sshll.u32 %s3999, 4
          %s4010 = int_to_ptr.vmem [resolvable:$true] %s4009
          %4015 = dma.vmem_to_hbm [thread:$0]  %s4010, 1024, %s4008, %s3996, 128, 128, 8
        $region76: #{res_double_conv_forward.1} parent=47 // pred_fallthru
          _
      $region48: #{res_double_conv_forward.1} parent=5 // pred_fallthru
        _
      %p4016 = scmp.le.s32.totalorder 2, %s20
      // Predicated region
      $region77: #{res_double_conv_forward.1} parent=5 // pred_check
        %p4017 = pneg %p4016
      $region78: #{res_double_conv_forward.1} parent=5 // pred_check_branch
        %4019 = sbr.rel (%p4017) target = $region80
      $region79: #{res_double_conv_forward.1} parent=5 // pred_region
        %s4020 = ssub.s32 %s20, 2
        // Predicated region
        $region81: #{res_double_conv_forward.1} parent=79 // pred_check
          %p4021 = pneg %p201
        $region82: #{res_double_conv_forward.1} parent=79 // pred_check_branch
          %4023 = sbr.rel (%p4021) target = $region84
        $region83: #{res_double_conv_forward.1} parent=79 // pred_region
          %s4024 = sand.u32 %s186, 1
          %s4025 = scalar_lea.sflag [#allocation5], %s4024
          %s4026 = sand.u32 %s186, 1
          %s4027 = smul.addr %s4026, 64
          %s4028 = scalar_lea.vmem [#allocation15], %s4027
          %4029 = dma.done %s4025, 1024
        $region84: #{res_double_conv_forward.1} parent=79 // pred_fallthru
          _
      $region80: #{res_double_conv_forward.1} parent=5 // pred_fallthru
        _
    $region6: #{res_double_conv_forward.1} parent=1 // loop_footer
      %s24 = sadd.s32 1, %s20
    $region7: #{res_double_conv_forward.1} parent=1 // loop_footer_branch
      %19 = sbr.rel target = $region3
    $region8: #{res_double_conv_forward.1} parent=1 // loop_exit
      _
    %4030 = vsyncpa [#allocation5], 1
    %s4031 = scalar_lea.sflag [#allocation5], 1
    %4032 = vsyncpa %s4031, 1
    %4033 = vsyncpa [#allocation6], 1
    %s4034 = scalar_lea.sflag [#allocation6], 1
    %4035 = vsyncpa %s4034, 1
    %4036 = vsyncpa [#allocation8], 1
    %4037 = vsyncpa [#allocation11], 1
    %4038 = vsyncpa [#allocation14], 1

</llo_original>
